<compile_context>
chip_gen: v5e
topology: v5e:2x2
jax: 0.10.0
libtpu: 0.0.40
codegen_flags: <defaults>
</compile_context>

<pallas_src>
import functools

import jax
import jax.numpy as jnp
from jax.experimental import pallas as pl
from jax.experimental.pallas import tpu as pltpu


def _sigmoid(x):
    return 1.0 / (1.0 + jnp.exp(-x))


# ----------------------------------------------------------------------------
# Fused kernel: masked LSTM + block-diagonal dot attention + FC, single
# program, everything stays in VMEM / vregs.
# ----------------------------------------------------------------------------
def decoder_kernel(word_ref,   # (T*BP, Din) cdt   seq-major, batch padded
                   h0_ref,     # (BP, H)     f32
                   c0_ref,     # (BP, H)     f32
                   lens_ref,   # (BP, 1)     i32   (0 for padding rows)
                   enc_ref,    # (B*S, H)    cdt   batch-major encoder rows
                   mask_ref,   # (T*BP, B*S) f32   1.0 on own-batch columns
                   wih_ref,    # (Din, 4H)   cdt   fused gate order i,f,g,o
                   whh_ref,    # (H, 4H)     cdt
                   b_ref,      # (1, 4H)     f32   (b_ih + b_hh)
                   wfc_ref,    # (2H, O)     cdt   fc.weight.T
                   bfc_ref,    # (1, O)      f32
                   cell_ref,   # out (T*BP, O) f32
                   hT_ref,     # out (BP, H)   f32
                   cT_ref,     # out (BP, H)   f32
                   *, precision, approx_softmax):
    BP, H = h0_ref.shape
    T = word_ref.shape[0] // BP
    cdt = wih_ref.dtype
    f32 = jnp.float32
    is_f32 = cdt == jnp.float32

    # ---- hoisted input projection: one (T*BP, Din) @ (Din, 4H) MXU matmul ---
    xproj = jnp.dot(word_ref[...], wih_ref[...],
                    preferred_element_type=f32,
                    precision=precision) + b_ref[...]           # (T*BP, 4H) f32

    whh = whh_ref[...]                                          # (H, 4H) cdt
    lens = lens_ref[...]                                        # (BP, 1) i32
    h = h0_ref[...]                                             # (BP, H) f32
    c = c0_ref[...]

    # ---- recurrence: fully unrolled, only h @ Whh_fused on the serial path --
    dec_steps = []
    for t in range(T):
        h_in = h if is_f32 else h.astype(cdt)
        gates = xproj[t * BP:(t + 1) * BP, :] + jnp.dot(
            h_in, whh, preferred_element_type=f32, precision=precision)
        i_g = _sigmoid(gates[:, 0 * H:1 * H])
        f_g = _sigmoid(gates[:, 1 * H:2 * H])
        g_g = jnp.tanh(gates[:, 2 * H:3 * H])
        o_g = _sigmoid(gates[:, 3 * H:4 * H])
        c_new = f_g * c + i_g * g_g
        h_new = o_g * jnp.tanh(c_new)
        valid = t < lens                                        # (BP, 1) bool
        dec_steps.append(jnp.where(valid, h_new, 0.0))          # pad_packed 0s
        h = jnp.where(valid, h_new, h)
        c = jnp.where(valid, c_new, c)

    hT_ref[...] = h
    cT_ref[...] = c

    # ---- attention for all (t, b) rows at once --------------------------------
    # dec rows are (t, b) -> t*BP + b ; enc rows are (b, s) -> b*S + s.
    # mask[r, c] = 1 iff row r's batch == column c's batch, so one masked
    # softmax over the lane axis reproduces the per-batch softmax over S.
    dec = jnp.concatenate(dec_steps, axis=0)                    # (T*BP, H) f32
    dec_c = dec if is_f32 else dec.astype(cdt)
    enc = enc_ref[...]                                          # (B*S, H) cdt

    ratios = jax.lax.dot_general(dec_c, enc, (((1,), (1,)), ((), ())),
                                 preferred_element_type=f32,
                                 precision=precision)           # (T*BP, B*S)
    mask = mask_ref[...]
    biased = ratios + (mask - 1.0) * 1e9                        # -1e9 off-batch
    m = jnp.max(biased, axis=-1, keepdims=True)
    e = jnp.exp(biased - m) * mask
    den = jnp.sum(e, axis=-1, keepdims=True)
    if approx_softmax:
        prob = e * pl.reciprocal(den, approx=True)              # bf16 path only
    else:
        prob = e / den                                          # exact, f32 path
    prob_c = prob if is_f32 else prob.astype(cdt)
    att = jnp.dot(prob_c, enc, preferred_element_type=f32,
                  precision=precision)                          # (T*BP, H) f32
    att_c = att if is_f32 else att.astype(cdt)

    # ---- FC over all B*T rows: dec@W[:H] + att@W[H:] + b == concat@W --------
    cell_ref[...] = (
        jnp.dot(dec_c, wfc_ref[0:H, :], preferred_element_type=f32,
                precision=precision)
        + jnp.dot(att_c, wfc_ref[H:2 * H, :], preferred_element_type=f32,
                  precision=precision)
        + bfc_ref[...])


# ----------------------------------------------------------------------------
# Wrapper
# ----------------------------------------------------------------------------
def rnn_decoder_attention_fast(word, h, c, input_lens, enc_outputs, params,
                               compute_dtype=jnp.float32):
    """word: (B,T,Din) batch-first; h,c: (1,B,H); input_lens: (B,) int;
    enc_outputs: (S,B,H) seq-first.  Returns (cell_out (T,B,O), context_mask,
    (h,c)) like the PyTorch module."""
    B, T, Din = word.shape
    H = h.shape[-1]
    S = enc_outputs.shape[0]
    O = params["bfc"].shape[-1]
    fourH = params["wih"].shape[-1]
    cdt = compute_dtype
    f32 = jnp.float32

    BP = max(8, ((B + 7) // 8) * 8)          # pad batch to the sublane width

    if cdt == f32:
        precision = jax.lax.Precision.HIGHEST    # strict parity path
        approx_softmax = False
    else:
        precision = None
        approx_softmax = True

    # --- layout plumbing (tiny, plain JAX) -----------------------------------
    word_t = jnp.transpose(word, (1, 0, 2))                      # (T, B, Din)
    word_t = jnp.pad(word_t, ((0, 0), (0, BP - B), (0, 0)))
    word_flat = word_t.reshape(T * BP, Din).astype(cdt)          # row = t*BP+b

    h0 = jnp.pad(h[0].astype(f32), ((0, BP - B), (0, 0)))        # (BP, H)
    c0 = jnp.pad(c[0].astype(f32), ((0, BP - B), (0, 0)))
    lens_p = jnp.pad(input_lens.astype(jnp.int32),
                     (0, BP - B)).reshape(BP, 1)

    enc_flat = (jnp.transpose(enc_outputs, (1, 0, 2))            # (B, S, H)
                .reshape(B * S, H).astype(cdt))                  # row = b*S+s

    # block-diagonal attention mask (padding rows clamp to batch B-1: harmless,
    # their outputs are sliced away; keeps the softmax denominator nonzero)
    row_b = jnp.minimum(jnp.arange(T * BP, dtype=jnp.int32) % BP, B - 1)
    col_b = jnp.arange(B * S, dtype=jnp.int32) // S
    attn_mask = (row_b[:, None] == col_b[None, :]).astype(f32)   # (T*BP, B*S)

    vmem = pl.BlockSpec(memory_space=pltpu.MemorySpace.VMEM)
    kernel = functools.partial(decoder_kernel, precision=precision,
                               approx_softmax=approx_softmax)

    cell_flat, hT, cT = pl.pallas_call(
        kernel,
        out_shape=(jax.ShapeDtypeStruct((T * BP, O), f32),
                   jax.ShapeDtypeStruct((BP, H), f32),
                   jax.ShapeDtypeStruct((BP, H), f32)),
        in_specs=[vmem] * 11,
        out_specs=(vmem, vmem, vmem),
    )(word_flat, h0, c0, lens_p, enc_flat, attn_mask,
      params["wih"].astype(cdt), params["whh"].astype(cdt),
      params["b"].reshape(1, fourH).astype(f32),
      params["wfc_t"].astype(cdt),
      params["bfc"].reshape(1, O).astype(f32))

    # rows are t*BP + b: reshape + slice gives the module's (T, B, O) directly
    cell_out = cell_flat.reshape(T, BP, O)[:, :B, :]

    # context_mask (plain JAX glue; torch returns int64, we emit int32)
    context_mask = (jnp.arange(T)[None, :]
                    < input_lens[:, None]).astype(jnp.int32)

    return cell_out, context_mask, (hT[:B][None], cT[:B][None])


# ----------------------------------------------------------------------------
# Pure-JAX reference (same math, HIGHEST precision) for correctness check
# ----------------------------------------------------------------------------
def reference(word, h, c, input_lens, enc_outputs, params):
    B, T, _ = word.shape
    H = h.shape[-1]
    hi = jax.lax.Precision.HIGHEST
    hh, cc = h[0], c[0]
    outs = []
    for t in range(T):
        x = word[:, t, :]
        gates = (jnp.dot(x, params["wih"], precision=hi)
                 + jnp.dot(hh, params["whh"], precision=hi) + params["b"])
        i = _sigmoid(gates[:, 0 * H:1 * H])
        f = _sigmoid(gates[:, 1 * H:2 * H])
        g = jnp.tanh(gates[:, 2 * H:3 * H])
        o = _sigmoid(gates[:, 3 * H:4 * H])
        c_new = f * cc + i * g
        h_new = o * jnp.tanh(c_new)
        valid = (t < input_lens)[:, None]
        outs.append(jnp.where(valid, h_new, 0.0))
        hh = jnp.where(valid, h_new, hh)
        cc = jnp.where(valid, c_new, cc)
    out = jnp.stack(outs, 0)                                     # (T, B, H)
    enc_b = jnp.transpose(enc_outputs, (1, 0, 2))                # (B, S, H)
    dec_b = jnp.transpose(out, (1, 0, 2))                        # (B, T, H)
    ratios = jnp.einsum('bsh,bth->bst', enc_b, dec_b, precision=hi)
    prob = jax.nn.softmax(ratios, axis=1)
    attended = jnp.einsum('bst,bsh->bth', prob, enc_b, precision=hi)
    concat = jnp.concatenate([dec_b, attended], axis=-1)
    cell = jnp.dot(concat, params["wfc_t"], precision=hi) + params["bfc"]
    return jnp.transpose(cell, (1, 0, 2)), (hh, cc)


if __name__ == "__main__":
    B, T, S = 2, 8, 10
    Din, H, O = 16, 32, 8     # input_size, hidden_size, num_output

    key = jax.random.PRNGKey(0)
    ks = jax.random.split(key, 9)

    # Fused-gate parameters (gate order i, f, g, o along the 4H axis, as PyTorch).
    params = {
        "wih":   0.1 * jax.random.normal(ks[0], (Din, 4 * H), jnp.float32),
        "whh":   0.1 * jax.random.normal(ks[1], (H, 4 * H), jnp.float32),
        "b":     0.1 * jax.random.normal(ks[2], (1, 4 * H), jnp.float32),
        "wfc_t": 0.1 * jax.random.normal(ks[3], (2 * H, O), jnp.float32),  # fc.weight.T
        "bfc":   0.1 * jax.random.normal(ks[4], (O,), jnp.float32),
    }

    word = jax.random.normal(ks[5], (B, T, Din), jnp.float32)
    h0 = jax.random.normal(ks[6], (1, B, H), jnp.float32)
    c0 = jax.random.normal(ks[7], (1, B, H), jnp.float32)
    enc_outputs = jax.random.normal(ks[8], (S, B, H), jnp.float32)
    input_lens = jnp.array([T, 5], dtype=jnp.int32)   # max == T (pad_packed length)

    ref_cell, (ref_h, ref_c) = reference(word, h0, c0, input_lens, enc_outputs,
                                         params)

    # --- f32 MXU path (HIGHEST contraction precision, exact softmax) ---------
    cell_out, context_mask, (hT, cT) = rnn_decoder_attention_fast(
        word, h0, c0, input_lens, enc_outputs, params,
        compute_dtype=jnp.float32)
    jax.block_until_ready((cell_out, context_mask, hT, cT))
    assert cell_out.shape == (T, B, O)
    assert context_mask.shape == (B, T)
    assert hT.shape == (1, B, H) and cT.shape == (1, B, H)
    assert jnp.allclose(cell_out, ref_cell, rtol=2e-3, atol=2e-3)
    assert jnp.allclose(hT[0], ref_h, rtol=2e-3, atol=2e-3)
    assert jnp.allclose(cT[0], ref_c, rtol=2e-3, atol=2e-3)

    # --- bf16 MXU path (f32 state/accumulation, approx softmax recip) --------
    cell_bf, _, (h_bf, c_bf) = rnn_decoder_attention_fast(
        word, h0, c0, input_lens, enc_outputs, params,
        compute_dtype=jnp.bfloat16)
    jax.block_until_ready(cell_bf)
    assert jnp.allclose(cell_bf, ref_cell, rtol=5e-2, atol=5e-2)
    assert jnp.allclose(h_bf[0], ref_h, rtol=5e-2, atol=5e-2)
    assert jnp.allclose(c_bf[0], ref_c, rtol=5e-2, atol=5e-2)

    print("KERNEL_OK")
</pallas_src>

<mosaic_0001>
module attributes {stable_mosaic.version = 11 : i64} {
  func.func @decoder_kernel(%arg0: memref<64x16xf32, #tpu.memory_space<vmem>>, %arg1: memref<8x32xf32, #tpu.memory_space<vmem>>, %arg2: memref<8x32xf32, #tpu.memory_space<vmem>>, %arg3: memref<8x1xi32, #tpu.memory_space<vmem>>, %arg4: memref<20x32xf32, #tpu.memory_space<vmem>>, %arg5: memref<64x20xf32, #tpu.memory_space<vmem>>, %arg6: memref<16x128xf32, #tpu.memory_space<vmem>>, %arg7: memref<32x128xf32, #tpu.memory_space<vmem>>, %arg8: memref<1x128xf32, #tpu.memory_space<vmem>>, %arg9: memref<64x8xf32, #tpu.memory_space<vmem>>, %arg10: memref<1x8xf32, #tpu.memory_space<vmem>>, %arg11: memref<64x8xf32, #tpu.memory_space<vmem>>, %arg12: memref<8x32xf32, #tpu.memory_space<vmem>>, %arg13: memref<8x32xf32, #tpu.memory_space<vmem>>) attributes {dimension_semantics = [], scalar_prefetch = 0 : i64, scratch_operands = 0 : i64, tpu.core_type = #tpu.core_type<tc>} {
    %c0 = arith.constant 0 : index
    %c0_0 = arith.constant 0 : index
    %0 = vector.load %arg0[%c0, %c0_0] : memref<64x16xf32, #tpu.memory_space<vmem>>, vector<64x16xf32>
    %c0_1 = arith.constant 0 : index
    %c0_2 = arith.constant 0 : index
    %1 = vector.load %arg6[%c0_1, %c0_2] : memref<16x128xf32, #tpu.memory_space<vmem>>, vector<16x128xf32>
    %cst = arith.constant dense<0.000000e+00> : vector<64x128xf32>
    %2 = tpu.matmul %0, %1, %cst {dimension_numbers = #tpu.dot_dimension_numbers<[1], [0], [0], [1], [0, 0, 1, 1], [], []>, precision = #tpu.contract_precision<fp32>} : vector<64x16xf32>, vector<16x128xf32>, vector<64x128xf32> -> vector<64x128xf32>
    %c0_3 = arith.constant 0 : index
    %c0_4 = arith.constant 0 : index
    %3 = vector.load %arg8[%c0_3, %c0_4] : memref<1x128xf32, #tpu.memory_space<vmem>>, vector<1x128xf32>
    %4 = vector.broadcast %3 : vector<1x128xf32> to vector<64x128xf32>
    %5 = arith.addf %2, %4 : vector<64x128xf32>
    %c0_5 = arith.constant 0 : index
    %c0_6 = arith.constant 0 : index
    %6 = vector.load %arg7[%c0_5, %c0_6] : memref<32x128xf32, #tpu.memory_space<vmem>>, vector<32x128xf32>
    %c0_7 = arith.constant 0 : index
    %c0_8 = arith.constant 0 : index
    %7 = vector.load %arg3[%c0_7, %c0_8] : memref<8x1xi32, #tpu.memory_space<vmem>>, vector<8x1xi32>
    %c0_9 = arith.constant 0 : index
    %c0_10 = arith.constant 0 : index
    %8 = vector.load %arg1[%c0_9, %c0_10] : memref<8x32xf32, #tpu.memory_space<vmem>>, vector<8x32xf32>
    %c0_11 = arith.constant 0 : index
    %c0_12 = arith.constant 0 : index
    %9 = vector.load %arg2[%c0_11, %c0_12] : memref<8x32xf32, #tpu.memory_space<vmem>>, vector<8x32xf32>
    %10 = vector.extract_strided_slice %5 {offsets = [0, 0], sizes = [8, 128], strides = [1, 1]} : vector<64x128xf32> to vector<8x128xf32>
    %cst_13 = arith.constant dense<0.000000e+00> : vector<8x128xf32>
    %11 = tpu.matmul %8, %6, %cst_13 {dimension_numbers = #tpu.dot_dimension_numbers<[1], [0], [0], [1], [0, 0, 1, 1], [], []>, precision = #tpu.contract_precision<fp32>} : vector<8x32xf32>, vector<32x128xf32>, vector<8x128xf32> -> vector<8x128xf32>
    %12 = arith.addf %10, %11 : vector<8x128xf32>
    %13 = vector.extract_strided_slice %12 {offsets = [0, 0], sizes = [8, 32], strides = [1, 1]} : vector<8x128xf32> to vector<8x32xf32>
    %cst_14 = arith.constant 0.000000e+00 : f32
    %14 = vector.broadcast %cst_14 : f32 to vector<8x32xf32>
    %15 = arith.subf %14, %13 : vector<8x32xf32>
    %16 = math.exp %15 : vector<8x32xf32>
    %cst_15 = arith.constant 1.000000e+00 : f32
    %17 = vector.broadcast %cst_15 : f32 to vector<8x32xf32>
    %18 = arith.addf %17, %16 : vector<8x32xf32>
    %cst_16 = arith.constant 1.000000e+00 : f32
    %19 = vector.broadcast %cst_16 : f32 to vector<8x32xf32>
    %20 = arith.divf %19, %18 : vector<8x32xf32>
    %21 = vector.extract_strided_slice %12 {offsets = [0, 32], sizes = [8, 32], strides = [1, 1]} : vector<8x128xf32> to vector<8x32xf32>
    %cst_17 = arith.constant 0.000000e+00 : f32
    %22 = vector.broadcast %cst_17 : f32 to vector<8x32xf32>
    %23 = arith.subf %22, %21 : vector<8x32xf32>
    %24 = math.exp %23 : vector<8x32xf32>
    %cst_18 = arith.constant 1.000000e+00 : f32
    %25 = vector.broadcast %cst_18 : f32 to vector<8x32xf32>
    %26 = arith.addf %25, %24 : vector<8x32xf32>
    %cst_19 = arith.constant 1.000000e+00 : f32
    %27 = vector.broadcast %cst_19 : f32 to vector<8x32xf32>
    %28 = arith.divf %27, %26 : vector<8x32xf32>
    %29 = vector.extract_strided_slice %12 {offsets = [0, 64], sizes = [8, 32], strides = [1, 1]} : vector<8x128xf32> to vector<8x32xf32>
    %30 = math.tanh %29 : vector<8x32xf32>
    %31 = vector.extract_strided_slice %12 {offsets = [0, 96], sizes = [8, 32], strides = [1, 1]} : vector<8x128xf32> to vector<8x32xf32>
    %cst_20 = arith.constant 0.000000e+00 : f32
    %32 = vector.broadcast %cst_20 : f32 to vector<8x32xf32>
    %33 = arith.subf %32, %31 : vector<8x32xf32>
    %34 = math.exp %33 : vector<8x32xf32>
    %cst_21 = arith.constant 1.000000e+00 : f32
    %35 = vector.broadcast %cst_21 : f32 to vector<8x32xf32>
    %36 = arith.addf %35, %34 : vector<8x32xf32>
    %cst_22 = arith.constant 1.000000e+00 : f32
    %37 = vector.broadcast %cst_22 : f32 to vector<8x32xf32>
    %38 = arith.divf %37, %36 : vector<8x32xf32>
    %39 = arith.mulf %28, %9 : vector<8x32xf32>
    %40 = arith.mulf %20, %30 : vector<8x32xf32>
    %41 = arith.addf %39, %40 : vector<8x32xf32>
    %42 = math.tanh %41 : vector<8x32xf32>
    %43 = arith.mulf %38, %42 : vector<8x32xf32>
    %c0_i32 = arith.constant 0 : i32
    %44 = vector.broadcast %c0_i32 : i32 to vector<8x1xi32>
    %45 = arith.cmpi sgt, %7, %44 : vector<8x1xi32>
    %cst_23 = arith.constant 0.000000e+00 : f32
    %46 = vector.shape_cast %45 : vector<8x1xi1> to vector<8x1xi1>
    %47 = vector.broadcast %46 : vector<8x1xi1> to vector<8x32xi1>
    %48 = vector.broadcast %cst_23 : f32 to vector<8x32xf32>
    %49 = arith.select %47, %43, %48 : vector<8x32xi1>, vector<8x32xf32>
    %50 = vector.shape_cast %45 : vector<8x1xi1> to vector<8x1xi1>
    %51 = vector.broadcast %50 : vector<8x1xi1> to vector<8x32xi1>
    %52 = arith.select %51, %43, %8 : vector<8x32xi1>, vector<8x32xf32>
    %53 = vector.shape_cast %45 : vector<8x1xi1> to vector<8x1xi1>
    %54 = vector.broadcast %53 : vector<8x1xi1> to vector<8x32xi1>
    %55 = arith.select %54, %41, %9 : vector<8x32xi1>, vector<8x32xf32>
    %56 = vector.extract_strided_slice %5 {offsets = [8, 0], sizes = [8, 128], strides = [1, 1]} : vector<64x128xf32> to vector<8x128xf32>
    %cst_24 = arith.constant dense<0.000000e+00> : vector<8x128xf32>
    %57 = tpu.matmul %52, %6, %cst_24 {dimension_numbers = #tpu.dot_dimension_numbers<[1], [0], [0], [1], [0, 0, 1, 1], [], []>, precision = #tpu.contract_precision<fp32>} : vector<8x32xf32>, vector<32x128xf32>, vector<8x128xf32> -> vector<8x128xf32>
    %58 = arith.addf %56, %57 : vector<8x128xf32>
    %59 = vector.extract_strided_slice %58 {offsets = [0, 0], sizes = [8, 32], strides = [1, 1]} : vector<8x128xf32> to vector<8x32xf32>
    %cst_25 = arith.constant 0.000000e+00 : f32
    %60 = vector.broadcast %cst_25 : f32 to vector<8x32xf32>
    %61 = arith.subf %60, %59 : vector<8x32xf32>
    %62 = math.exp %61 : vector<8x32xf32>
    %cst_26 = arith.constant 1.000000e+00 : f32
    %63 = vector.broadcast %cst_26 : f32 to vector<8x32xf32>
    %64 = arith.addf %63, %62 : vector<8x32xf32>
    %cst_27 = arith.constant 1.000000e+00 : f32
    %65 = vector.broadcast %cst_27 : f32 to vector<8x32xf32>
    %66 = arith.divf %65, %64 : vector<8x32xf32>
    %67 = vector.extract_strided_slice %58 {offsets = [0, 32], sizes = [8, 32], strides = [1, 1]} : vector<8x128xf32> to vector<8x32xf32>
    %cst_28 = arith.constant 0.000000e+00 : f32
    %68 = vector.broadcast %cst_28 : f32 to vector<8x32xf32>
    %69 = arith.subf %68, %67 : vector<8x32xf32>
    %70 = math.exp %69 : vector<8x32xf32>
    %cst_29 = arith.constant 1.000000e+00 : f32
    %71 = vector.broadcast %cst_29 : f32 to vector<8x32xf32>
    %72 = arith.addf %71, %70 : vector<8x32xf32>
    %cst_30 = arith.constant 1.000000e+00 : f32
    %73 = vector.broadcast %cst_30 : f32 to vector<8x32xf32>
    %74 = arith.divf %73, %72 : vector<8x32xf32>
    %75 = vector.extract_strided_slice %58 {offsets = [0, 64], sizes = [8, 32], strides = [1, 1]} : vector<8x128xf32> to vector<8x32xf32>
    %76 = math.tanh %75 : vector<8x32xf32>
    %77 = vector.extract_strided_slice %58 {offsets = [0, 96], sizes = [8, 32], strides = [1, 1]} : vector<8x128xf32> to vector<8x32xf32>
    %cst_31 = arith.constant 0.000000e+00 : f32
    %78 = vector.broadcast %cst_31 : f32 to vector<8x32xf32>
    %79 = arith.subf %78, %77 : vector<8x32xf32>
    %80 = math.exp %79 : vector<8x32xf32>
    %cst_32 = arith.constant 1.000000e+00 : f32
    %81 = vector.broadcast %cst_32 : f32 to vector<8x32xf32>
    %82 = arith.addf %81, %80 : vector<8x32xf32>
    %cst_33 = arith.constant 1.000000e+00 : f32
    %83 = vector.broadcast %cst_33 : f32 to vector<8x32xf32>
    %84 = arith.divf %83, %82 : vector<8x32xf32>
    %85 = arith.mulf %74, %55 : vector<8x32xf32>
    %86 = arith.mulf %66, %76 : vector<8x32xf32>
    %87 = arith.addf %85, %86 : vector<8x32xf32>
    %88 = math.tanh %87 : vector<8x32xf32>
    %89 = arith.mulf %84, %88 : vector<8x32xf32>
    %c1_i32 = arith.constant 1 : i32
    %90 = vector.broadcast %c1_i32 : i32 to vector<8x1xi32>
    %91 = arith.cmpi sgt, %7, %90 : vector<8x1xi32>
    %cst_34 = arith.constant 0.000000e+00 : f32
    %92 = vector.shape_cast %91 : vector<8x1xi1> to vector<8x1xi1>
    %93 = vector.broadcast %92 : vector<8x1xi1> to vector<8x32xi1>
    %94 = vector.broadcast %cst_34 : f32 to vector<8x32xf32>
    %95 = arith.select %93, %89, %94 : vector<8x32xi1>, vector<8x32xf32>
    %96 = vector.shape_cast %91 : vector<8x1xi1> to vector<8x1xi1>
    %97 = vector.broadcast %96 : vector<8x1xi1> to vector<8x32xi1>
    %98 = arith.select %97, %89, %52 : vector<8x32xi1>, vector<8x32xf32>
    %99 = vector.shape_cast %91 : vector<8x1xi1> to vector<8x1xi1>
    %100 = vector.broadcast %99 : vector<8x1xi1> to vector<8x32xi1>
    %101 = arith.select %100, %87, %55 : vector<8x32xi1>, vector<8x32xf32>
    %102 = vector.extract_strided_slice %5 {offsets = [16, 0], sizes = [8, 128], strides = [1, 1]} : vector<64x128xf32> to vector<8x128xf32>
    %cst_35 = arith.constant dense<0.000000e+00> : vector<8x128xf32>
    %103 = tpu.matmul %98, %6, %cst_35 {dimension_numbers = #tpu.dot_dimension_numbers<[1], [0], [0], [1], [0, 0, 1, 1], [], []>, precision = #tpu.contract_precision<fp32>} : vector<8x32xf32>, vector<32x128xf32>, vector<8x128xf32> -> vector<8x128xf32>
    %104 = arith.addf %102, %103 : vector<8x128xf32>
    %105 = vector.extract_strided_slice %104 {offsets = [0, 0], sizes = [8, 32], strides = [1, 1]} : vector<8x128xf32> to vector<8x32xf32>
    %cst_36 = arith.constant 0.000000e+00 : f32
    %106 = vector.broadcast %cst_36 : f32 to vector<8x32xf32>
    %107 = arith.subf %106, %105 : vector<8x32xf32>
    %108 = math.exp %107 : vector<8x32xf32>
    %cst_37 = arith.constant 1.000000e+00 : f32
    %109 = vector.broadcast %cst_37 : f32 to vector<8x32xf32>
    %110 = arith.addf %109, %108 : vector<8x32xf32>
    %cst_38 = arith.constant 1.000000e+00 : f32
    %111 = vector.broadcast %cst_38 : f32 to vector<8x32xf32>
    %112 = arith.divf %111, %110 : vector<8x32xf32>
    %113 = vector.extract_strided_slice %104 {offsets = [0, 32], sizes = [8, 32], strides = [1, 1]} : vector<8x128xf32> to vector<8x32xf32>
    %cst_39 = arith.constant 0.000000e+00 : f32
    %114 = vector.broadcast %cst_39 : f32 to vector<8x32xf32>
    %115 = arith.subf %114, %113 : vector<8x32xf32>
    %116 = math.exp %115 : vector<8x32xf32>
    %cst_40 = arith.constant 1.000000e+00 : f32
    %117 = vector.broadcast %cst_40 : f32 to vector<8x32xf32>
    %118 = arith.addf %117, %116 : vector<8x32xf32>
    %cst_41 = arith.constant 1.000000e+00 : f32
    %119 = vector.broadcast %cst_41 : f32 to vector<8x32xf32>
    %120 = arith.divf %119, %118 : vector<8x32xf32>
    %121 = vector.extract_strided_slice %104 {offsets = [0, 64], sizes = [8, 32], strides = [1, 1]} : vector<8x128xf32> to vector<8x32xf32>
    %122 = math.tanh %121 : vector<8x32xf32>
    %123 = vector.extract_strided_slice %104 {offsets = [0, 96], sizes = [8, 32], strides = [1, 1]} : vector<8x128xf32> to vector<8x32xf32>
    %cst_42 = arith.constant 0.000000e+00 : f32
    %124 = vector.broadcast %cst_42 : f32 to vector<8x32xf32>
    %125 = arith.subf %124, %123 : vector<8x32xf32>
    %126 = math.exp %125 : vector<8x32xf32>
    %cst_43 = arith.constant 1.000000e+00 : f32
    %127 = vector.broadcast %cst_43 : f32 to vector<8x32xf32>
    %128 = arith.addf %127, %126 : vector<8x32xf32>
    %cst_44 = arith.constant 1.000000e+00 : f32
    %129 = vector.broadcast %cst_44 : f32 to vector<8x32xf32>
    %130 = arith.divf %129, %128 : vector<8x32xf32>
    %131 = arith.mulf %120, %101 : vector<8x32xf32>
    %132 = arith.mulf %112, %122 : vector<8x32xf32>
    %133 = arith.addf %131, %132 : vector<8x32xf32>
    %134 = math.tanh %133 : vector<8x32xf32>
    %135 = arith.mulf %130, %134 : vector<8x32xf32>
    %c2_i32 = arith.constant 2 : i32
    %136 = vector.broadcast %c2_i32 : i32 to vector<8x1xi32>
    %137 = arith.cmpi sgt, %7, %136 : vector<8x1xi32>
    %cst_45 = arith.constant 0.000000e+00 : f32
    %138 = vector.shape_cast %137 : vector<8x1xi1> to vector<8x1xi1>
    %139 = vector.broadcast %138 : vector<8x1xi1> to vector<8x32xi1>
    %140 = vector.broadcast %cst_45 : f32 to vector<8x32xf32>
    %141 = arith.select %139, %135, %140 : vector<8x32xi1>, vector<8x32xf32>
    %142 = vector.shape_cast %137 : vector<8x1xi1> to vector<8x1xi1>
    %143 = vector.broadcast %142 : vector<8x1xi1> to vector<8x32xi1>
    %144 = arith.select %143, %135, %98 : vector<8x32xi1>, vector<8x32xf32>
    %145 = vector.shape_cast %137 : vector<8x1xi1> to vector<8x1xi1>
    %146 = vector.broadcast %145 : vector<8x1xi1> to vector<8x32xi1>
    %147 = arith.select %146, %133, %101 : vector<8x32xi1>, vector<8x32xf32>
    %148 = vector.extract_strided_slice %5 {offsets = [24, 0], sizes = [8, 128], strides = [1, 1]} : vector<64x128xf32> to vector<8x128xf32>
    %cst_46 = arith.constant dense<0.000000e+00> : vector<8x128xf32>
    %149 = tpu.matmul %144, %6, %cst_46 {dimension_numbers = #tpu.dot_dimension_numbers<[1], [0], [0], [1], [0, 0, 1, 1], [], []>, precision = #tpu.contract_precision<fp32>} : vector<8x32xf32>, vector<32x128xf32>, vector<8x128xf32> -> vector<8x128xf32>
    %150 = arith.addf %148, %149 : vector<8x128xf32>
    %151 = vector.extract_strided_slice %150 {offsets = [0, 0], sizes = [8, 32], strides = [1, 1]} : vector<8x128xf32> to vector<8x32xf32>
    %cst_47 = arith.constant 0.000000e+00 : f32
    %152 = vector.broadcast %cst_47 : f32 to vector<8x32xf32>
    %153 = arith.subf %152, %151 : vector<8x32xf32>
    %154 = math.exp %153 : vector<8x32xf32>
    %cst_48 = arith.constant 1.000000e+00 : f32
    %155 = vector.broadcast %cst_48 : f32 to vector<8x32xf32>
    %156 = arith.addf %155, %154 : vector<8x32xf32>
    %cst_49 = arith.constant 1.000000e+00 : f32
    %157 = vector.broadcast %cst_49 : f32 to vector<8x32xf32>
    %158 = arith.divf %157, %156 : vector<8x32xf32>
    %159 = vector.extract_strided_slice %150 {offsets = [0, 32], sizes = [8, 32], strides = [1, 1]} : vector<8x128xf32> to vector<8x32xf32>
    %cst_50 = arith.constant 0.000000e+00 : f32
    %160 = vector.broadcast %cst_50 : f32 to vector<8x32xf32>
    %161 = arith.subf %160, %159 : vector<8x32xf32>
    %162 = math.exp %161 : vector<8x32xf32>
    %cst_51 = arith.constant 1.000000e+00 : f32
    %163 = vector.broadcast %cst_51 : f32 to vector<8x32xf32>
    %164 = arith.addf %163, %162 : vector<8x32xf32>
    %cst_52 = arith.constant 1.000000e+00 : f32
    %165 = vector.broadcast %cst_52 : f32 to vector<8x32xf32>
    %166 = arith.divf %165, %164 : vector<8x32xf32>
    %167 = vector.extract_strided_slice %150 {offsets = [0, 64], sizes = [8, 32], strides = [1, 1]} : vector<8x128xf32> to vector<8x32xf32>
    %168 = math.tanh %167 : vector<8x32xf32>
    %169 = vector.extract_strided_slice %150 {offsets = [0, 96], sizes = [8, 32], strides = [1, 1]} : vector<8x128xf32> to vector<8x32xf32>
    %cst_53 = arith.constant 0.000000e+00 : f32
    %170 = vector.broadcast %cst_53 : f32 to vector<8x32xf32>
    %171 = arith.subf %170, %169 : vector<8x32xf32>
    %172 = math.exp %171 : vector<8x32xf32>
    %cst_54 = arith.constant 1.000000e+00 : f32
    %173 = vector.broadcast %cst_54 : f32 to vector<8x32xf32>
    %174 = arith.addf %173, %172 : vector<8x32xf32>
    %cst_55 = arith.constant 1.000000e+00 : f32
    %175 = vector.broadcast %cst_55 : f32 to vector<8x32xf32>
    %176 = arith.divf %175, %174 : vector<8x32xf32>
    %177 = arith.mulf %166, %147 : vector<8x32xf32>
    %178 = arith.mulf %158, %168 : vector<8x32xf32>
    %179 = arith.addf %177, %178 : vector<8x32xf32>
    %180 = math.tanh %179 : vector<8x32xf32>
    %181 = arith.mulf %176, %180 : vector<8x32xf32>
    %c3_i32 = arith.constant 3 : i32
    %182 = vector.broadcast %c3_i32 : i32 to vector<8x1xi32>
    %183 = arith.cmpi sgt, %7, %182 : vector<8x1xi32>
    %cst_56 = arith.constant 0.000000e+00 : f32
    %184 = vector.shape_cast %183 : vector<8x1xi1> to vector<8x1xi1>
    %185 = vector.broadcast %184 : vector<8x1xi1> to vector<8x32xi1>
    %186 = vector.broadcast %cst_56 : f32 to vector<8x32xf32>
    %187 = arith.select %185, %181, %186 : vector<8x32xi1>, vector<8x32xf32>
    %188 = vector.shape_cast %183 : vector<8x1xi1> to vector<8x1xi1>
    %189 = vector.broadcast %188 : vector<8x1xi1> to vector<8x32xi1>
    %190 = arith.select %189, %181, %144 : vector<8x32xi1>, vector<8x32xf32>
    %191 = vector.shape_cast %183 : vector<8x1xi1> to vector<8x1xi1>
    %192 = vector.broadcast %191 : vector<8x1xi1> to vector<8x32xi1>
    %193 = arith.select %192, %179, %147 : vector<8x32xi1>, vector<8x32xf32>
    %194 = vector.extract_strided_slice %5 {offsets = [32, 0], sizes = [8, 128], strides = [1, 1]} : vector<64x128xf32> to vector<8x128xf32>
    %cst_57 = arith.constant dense<0.000000e+00> : vector<8x128xf32>
    %195 = tpu.matmul %190, %6, %cst_57 {dimension_numbers = #tpu.dot_dimension_numbers<[1], [0], [0], [1], [0, 0, 1, 1], [], []>, precision = #tpu.contract_precision<fp32>} : vector<8x32xf32>, vector<32x128xf32>, vector<8x128xf32> -> vector<8x128xf32>
    %196 = arith.addf %194, %195 : vector<8x128xf32>
    %197 = vector.extract_strided_slice %196 {offsets = [0, 0], sizes = [8, 32], strides = [1, 1]} : vector<8x128xf32> to vector<8x32xf32>
    %cst_58 = arith.constant 0.000000e+00 : f32
    %198 = vector.broadcast %cst_58 : f32 to vector<8x32xf32>
    %199 = arith.subf %198, %197 : vector<8x32xf32>
    %200 = math.exp %199 : vector<8x32xf32>
    %cst_59 = arith.constant 1.000000e+00 : f32
    %201 = vector.broadcast %cst_59 : f32 to vector<8x32xf32>
    %202 = arith.addf %201, %200 : vector<8x32xf32>
    %cst_60 = arith.constant 1.000000e+00 : f32
    %203 = vector.broadcast %cst_60 : f32 to vector<8x32xf32>
    %204 = arith.divf %203, %202 : vector<8x32xf32>
    %205 = vector.extract_strided_slice %196 {offsets = [0, 32], sizes = [8, 32], strides = [1, 1]} : vector<8x128xf32> to vector<8x32xf32>
    %cst_61 = arith.constant 0.000000e+00 : f32
    %206 = vector.broadcast %cst_61 : f32 to vector<8x32xf32>
    %207 = arith.subf %206, %205 : vector<8x32xf32>
    %208 = math.exp %207 : vector<8x32xf32>
    %cst_62 = arith.constant 1.000000e+00 : f32
    %209 = vector.broadcast %cst_62 : f32 to vector<8x32xf32>
    %210 = arith.addf %209, %208 : vector<8x32xf32>
    %cst_63 = arith.constant 1.000000e+00 : f32
    %211 = vector.broadcast %cst_63 : f32 to vector<8x32xf32>
    %212 = arith.divf %211, %210 : vector<8x32xf32>
    %213 = vector.extract_strided_slice %196 {offsets = [0, 64], sizes = [8, 32], strides = [1, 1]} : vector<8x128xf32> to vector<8x32xf32>
    %214 = math.tanh %213 : vector<8x32xf32>
    %215 = vector.extract_strided_slice %196 {offsets = [0, 96], sizes = [8, 32], strides = [1, 1]} : vector<8x128xf32> to vector<8x32xf32>
    %cst_64 = arith.constant 0.000000e+00 : f32
    %216 = vector.broadcast %cst_64 : f32 to vector<8x32xf32>
    %217 = arith.subf %216, %215 : vector<8x32xf32>
    %218 = math.exp %217 : vector<8x32xf32>
    %cst_65 = arith.constant 1.000000e+00 : f32
    %219 = vector.broadcast %cst_65 : f32 to vector<8x32xf32>
    %220 = arith.addf %219, %218 : vector<8x32xf32>
    %cst_66 = arith.constant 1.000000e+00 : f32
    %221 = vector.broadcast %cst_66 : f32 to vector<8x32xf32>
    %222 = arith.divf %221, %220 : vector<8x32xf32>
    %223 = arith.mulf %212, %193 : vector<8x32xf32>
    %224 = arith.mulf %204, %214 : vector<8x32xf32>
    %225 = arith.addf %223, %224 : vector<8x32xf32>
    %226 = math.tanh %225 : vector<8x32xf32>
    %227 = arith.mulf %222, %226 : vector<8x32xf32>
    %c4_i32 = arith.constant 4 : i32
    %228 = vector.broadcast %c4_i32 : i32 to vector<8x1xi32>
    %229 = arith.cmpi sgt, %7, %228 : vector<8x1xi32>
    %cst_67 = arith.constant 0.000000e+00 : f32
    %230 = vector.shape_cast %229 : vector<8x1xi1> to vector<8x1xi1>
    %231 = vector.broadcast %230 : vector<8x1xi1> to vector<8x32xi1>
    %232 = vector.broadcast %cst_67 : f32 to vector<8x32xf32>
    %233 = arith.select %231, %227, %232 : vector<8x32xi1>, vector<8x32xf32>
    %234 = vector.shape_cast %229 : vector<8x1xi1> to vector<8x1xi1>
    %235 = vector.broadcast %234 : vector<8x1xi1> to vector<8x32xi1>
    %236 = arith.select %235, %227, %190 : vector<8x32xi1>, vector<8x32xf32>
    %237 = vector.shape_cast %229 : vector<8x1xi1> to vector<8x1xi1>
    %238 = vector.broadcast %237 : vector<8x1xi1> to vector<8x32xi1>
    %239 = arith.select %238, %225, %193 : vector<8x32xi1>, vector<8x32xf32>
    %240 = vector.extract_strided_slice %5 {offsets = [40, 0], sizes = [8, 128], strides = [1, 1]} : vector<64x128xf32> to vector<8x128xf32>
    %cst_68 = arith.constant dense<0.000000e+00> : vector<8x128xf32>
    %241 = tpu.matmul %236, %6, %cst_68 {dimension_numbers = #tpu.dot_dimension_numbers<[1], [0], [0], [1], [0, 0, 1, 1], [], []>, precision = #tpu.contract_precision<fp32>} : vector<8x32xf32>, vector<32x128xf32>, vector<8x128xf32> -> vector<8x128xf32>
    %242 = arith.addf %240, %241 : vector<8x128xf32>
    %243 = vector.extract_strided_slice %242 {offsets = [0, 0], sizes = [8, 32], strides = [1, 1]} : vector<8x128xf32> to vector<8x32xf32>
    %cst_69 = arith.constant 0.000000e+00 : f32
    %244 = vector.broadcast %cst_69 : f32 to vector<8x32xf32>
    %245 = arith.subf %244, %243 : vector<8x32xf32>
    %246 = math.exp %245 : vector<8x32xf32>
    %cst_70 = arith.constant 1.000000e+00 : f32
    %247 = vector.broadcast %cst_70 : f32 to vector<8x32xf32>
    %248 = arith.addf %247, %246 : vector<8x32xf32>
    %cst_71 = arith.constant 1.000000e+00 : f32
    %249 = vector.broadcast %cst_71 : f32 to vector<8x32xf32>
    %250 = arith.divf %249, %248 : vector<8x32xf32>
    %251 = vector.extract_strided_slice %242 {offsets = [0, 32], sizes = [8, 32], strides = [1, 1]} : vector<8x128xf32> to vector<8x32xf32>
    %cst_72 = arith.constant 0.000000e+00 : f32
    %252 = vector.broadcast %cst_72 : f32 to vector<8x32xf32>
    %253 = arith.subf %252, %251 : vector<8x32xf32>
    %254 = math.exp %253 : vector<8x32xf32>
    %cst_73 = arith.constant 1.000000e+00 : f32
    %255 = vector.broadcast %cst_73 : f32 to vector<8x32xf32>
    %256 = arith.addf %255, %254 : vector<8x32xf32>
    %cst_74 = arith.constant 1.000000e+00 : f32
    %257 = vector.broadcast %cst_74 : f32 to vector<8x32xf32>
    %258 = arith.divf %257, %256 : vector<8x32xf32>
    %259 = vector.extract_strided_slice %242 {offsets = [0, 64], sizes = [8, 32], strides = [1, 1]} : vector<8x128xf32> to vector<8x32xf32>
    %260 = math.tanh %259 : vector<8x32xf32>
    %261 = vector.extract_strided_slice %242 {offsets = [0, 96], sizes = [8, 32], strides = [1, 1]} : vector<8x128xf32> to vector<8x32xf32>
    %cst_75 = arith.constant 0.000000e+00 : f32
    %262 = vector.broadcast %cst_75 : f32 to vector<8x32xf32>
    %263 = arith.subf %262, %261 : vector<8x32xf32>
    %264 = math.exp %263 : vector<8x32xf32>
    %cst_76 = arith.constant 1.000000e+00 : f32
    %265 = vector.broadcast %cst_76 : f32 to vector<8x32xf32>
    %266 = arith.addf %265, %264 : vector<8x32xf32>
    %cst_77 = arith.constant 1.000000e+00 : f32
    %267 = vector.broadcast %cst_77 : f32 to vector<8x32xf32>
    %268 = arith.divf %267, %266 : vector<8x32xf32>
    %269 = arith.mulf %258, %239 : vector<8x32xf32>
    %270 = arith.mulf %250, %260 : vector<8x32xf32>
    %271 = arith.addf %269, %270 : vector<8x32xf32>
    %272 = math.tanh %271 : vector<8x32xf32>
    %273 = arith.mulf %268, %272 : vector<8x32xf32>
    %c5_i32 = arith.constant 5 : i32
    %274 = vector.broadcast %c5_i32 : i32 to vector<8x1xi32>
    %275 = arith.cmpi sgt, %7, %274 : vector<8x1xi32>
    %cst_78 = arith.constant 0.000000e+00 : f32
    %276 = vector.shape_cast %275 : vector<8x1xi1> to vector<8x1xi1>
    %277 = vector.broadcast %276 : vector<8x1xi1> to vector<8x32xi1>
    %278 = vector.broadcast %cst_78 : f32 to vector<8x32xf32>
    %279 = arith.select %277, %273, %278 : vector<8x32xi1>, vector<8x32xf32>
    %280 = vector.shape_cast %275 : vector<8x1xi1> to vector<8x1xi1>
    %281 = vector.broadcast %280 : vector<8x1xi1> to vector<8x32xi1>
    %282 = arith.select %281, %273, %236 : vector<8x32xi1>, vector<8x32xf32>
    %283 = vector.shape_cast %275 : vector<8x1xi1> to vector<8x1xi1>
    %284 = vector.broadcast %283 : vector<8x1xi1> to vector<8x32xi1>
    %285 = arith.select %284, %271, %239 : vector<8x32xi1>, vector<8x32xf32>
    %286 = vector.extract_strided_slice %5 {offsets = [48, 0], sizes = [8, 128], strides = [1, 1]} : vector<64x128xf32> to vector<8x128xf32>
    %cst_79 = arith.constant dense<0.000000e+00> : vector<8x128xf32>
    %287 = tpu.matmul %282, %6, %cst_79 {dimension_numbers = #tpu.dot_dimension_numbers<[1], [0], [0], [1], [0, 0, 1, 1], [], []>, precision = #tpu.contract_precision<fp32>} : vector<8x32xf32>, vector<32x128xf32>, vector<8x128xf32> -> vector<8x128xf32>
    %288 = arith.addf %286, %287 : vector<8x128xf32>
    %289 = vector.extract_strided_slice %288 {offsets = [0, 0], sizes = [8, 32], strides = [1, 1]} : vector<8x128xf32> to vector<8x32xf32>
    %cst_80 = arith.constant 0.000000e+00 : f32
    %290 = vector.broadcast %cst_80 : f32 to vector<8x32xf32>
    %291 = arith.subf %290, %289 : vector<8x32xf32>
    %292 = math.exp %291 : vector<8x32xf32>
    %cst_81 = arith.constant 1.000000e+00 : f32
    %293 = vector.broadcast %cst_81 : f32 to vector<8x32xf32>
    %294 = arith.addf %293, %292 : vector<8x32xf32>
    %cst_82 = arith.constant 1.000000e+00 : f32
    %295 = vector.broadcast %cst_82 : f32 to vector<8x32xf32>
    %296 = arith.divf %295, %294 : vector<8x32xf32>
    %297 = vector.extract_strided_slice %288 {offsets = [0, 32], sizes = [8, 32], strides = [1, 1]} : vector<8x128xf32> to vector<8x32xf32>
    %cst_83 = arith.constant 0.000000e+00 : f32
    %298 = vector.broadcast %cst_83 : f32 to vector<8x32xf32>
    %299 = arith.subf %298, %297 : vector<8x32xf32>
    %300 = math.exp %299 : vector<8x32xf32>
    %cst_84 = arith.constant 1.000000e+00 : f32
    %301 = vector.broadcast %cst_84 : f32 to vector<8x32xf32>
    %302 = arith.addf %301, %300 : vector<8x32xf32>
    %cst_85 = arith.constant 1.000000e+00 : f32
    %303 = vector.broadcast %cst_85 : f32 to vector<8x32xf32>
    %304 = arith.divf %303, %302 : vector<8x32xf32>
    %305 = vector.extract_strided_slice %288 {offsets = [0, 64], sizes = [8, 32], strides = [1, 1]} : vector<8x128xf32> to vector<8x32xf32>
    %306 = math.tanh %305 : vector<8x32xf32>
    %307 = vector.extract_strided_slice %288 {offsets = [0, 96], sizes = [8, 32], strides = [1, 1]} : vector<8x128xf32> to vector<8x32xf32>
    %cst_86 = arith.constant 0.000000e+00 : f32
    %308 = vector.broadcast %cst_86 : f32 to vector<8x32xf32>
    %309 = arith.subf %308, %307 : vector<8x32xf32>
    %310 = math.exp %309 : vector<8x32xf32>
    %cst_87 = arith.constant 1.000000e+00 : f32
    %311 = vector.broadcast %cst_87 : f32 to vector<8x32xf32>
    %312 = arith.addf %311, %310 : vector<8x32xf32>
    %cst_88 = arith.constant 1.000000e+00 : f32
    %313 = vector.broadcast %cst_88 : f32 to vector<8x32xf32>
    %314 = arith.divf %313, %312 : vector<8x32xf32>
    %315 = arith.mulf %304, %285 : vector<8x32xf32>
    %316 = arith.mulf %296, %306 : vector<8x32xf32>
    %317 = arith.addf %315, %316 : vector<8x32xf32>
    %318 = math.tanh %317 : vector<8x32xf32>
    %319 = arith.mulf %314, %318 : vector<8x32xf32>
    %c6_i32 = arith.constant 6 : i32
    %320 = vector.broadcast %c6_i32 : i32 to vector<8x1xi32>
    %321 = arith.cmpi sgt, %7, %320 : vector<8x1xi32>
    %cst_89 = arith.constant 0.000000e+00 : f32
    %322 = vector.shape_cast %321 : vector<8x1xi1> to vector<8x1xi1>
    %323 = vector.broadcast %322 : vector<8x1xi1> to vector<8x32xi1>
    %324 = vector.broadcast %cst_89 : f32 to vector<8x32xf32>
    %325 = arith.select %323, %319, %324 : vector<8x32xi1>, vector<8x32xf32>
    %326 = vector.shape_cast %321 : vector<8x1xi1> to vector<8x1xi1>
    %327 = vector.broadcast %326 : vector<8x1xi1> to vector<8x32xi1>
    %328 = arith.select %327, %319, %282 : vector<8x32xi1>, vector<8x32xf32>
    %329 = vector.shape_cast %321 : vector<8x1xi1> to vector<8x1xi1>
    %330 = vector.broadcast %329 : vector<8x1xi1> to vector<8x32xi1>
    %331 = arith.select %330, %317, %285 : vector<8x32xi1>, vector<8x32xf32>
    %332 = vector.extract_strided_slice %5 {offsets = [56, 0], sizes = [8, 128], strides = [1, 1]} : vector<64x128xf32> to vector<8x128xf32>
    %cst_90 = arith.constant dense<0.000000e+00> : vector<8x128xf32>
    %333 = tpu.matmul %328, %6, %cst_90 {dimension_numbers = #tpu.dot_dimension_numbers<[1], [0], [0], [1], [0, 0, 1, 1], [], []>, precision = #tpu.contract_precision<fp32>} : vector<8x32xf32>, vector<32x128xf32>, vector<8x128xf32> -> vector<8x128xf32>
    %334 = arith.addf %332, %333 : vector<8x128xf32>
    %335 = vector.extract_strided_slice %334 {offsets = [0, 0], sizes = [8, 32], strides = [1, 1]} : vector<8x128xf32> to vector<8x32xf32>
    %cst_91 = arith.constant 0.000000e+00 : f32
    %336 = vector.broadcast %cst_91 : f32 to vector<8x32xf32>
    %337 = arith.subf %336, %335 : vector<8x32xf32>
    %338 = math.exp %337 : vector<8x32xf32>
    %cst_92 = arith.constant 1.000000e+00 : f32
    %339 = vector.broadcast %cst_92 : f32 to vector<8x32xf32>
    %340 = arith.addf %339, %338 : vector<8x32xf32>
    %cst_93 = arith.constant 1.000000e+00 : f32
    %341 = vector.broadcast %cst_93 : f32 to vector<8x32xf32>
    %342 = arith.divf %341, %340 : vector<8x32xf32>
    %343 = vector.extract_strided_slice %334 {offsets = [0, 32], sizes = [8, 32], strides = [1, 1]} : vector<8x128xf32> to vector<8x32xf32>
    %cst_94 = arith.constant 0.000000e+00 : f32
    %344 = vector.broadcast %cst_94 : f32 to vector<8x32xf32>
    %345 = arith.subf %344, %343 : vector<8x32xf32>
    %346 = math.exp %345 : vector<8x32xf32>
    %cst_95 = arith.constant 1.000000e+00 : f32
    %347 = vector.broadcast %cst_95 : f32 to vector<8x32xf32>
    %348 = arith.addf %347, %346 : vector<8x32xf32>
    %cst_96 = arith.constant 1.000000e+00 : f32
    %349 = vector.broadcast %cst_96 : f32 to vector<8x32xf32>
    %350 = arith.divf %349, %348 : vector<8x32xf32>
    %351 = vector.extract_strided_slice %334 {offsets = [0, 64], sizes = [8, 32], strides = [1, 1]} : vector<8x128xf32> to vector<8x32xf32>
    %352 = math.tanh %351 : vector<8x32xf32>
    %353 = vector.extract_strided_slice %334 {offsets = [0, 96], sizes = [8, 32], strides = [1, 1]} : vector<8x128xf32> to vector<8x32xf32>
    %cst_97 = arith.constant 0.000000e+00 : f32
    %354 = vector.broadcast %cst_97 : f32 to vector<8x32xf32>
    %355 = arith.subf %354, %353 : vector<8x32xf32>
    %356 = math.exp %355 : vector<8x32xf32>
    %cst_98 = arith.constant 1.000000e+00 : f32
    %357 = vector.broadcast %cst_98 : f32 to vector<8x32xf32>
    %358 = arith.addf %357, %356 : vector<8x32xf32>
    %cst_99 = arith.constant 1.000000e+00 : f32
    %359 = vector.broadcast %cst_99 : f32 to vector<8x32xf32>
    %360 = arith.divf %359, %358 : vector<8x32xf32>
    %361 = arith.mulf %350, %331 : vector<8x32xf32>
    %362 = arith.mulf %342, %352 : vector<8x32xf32>
    %363 = arith.addf %361, %362 : vector<8x32xf32>
    %364 = math.tanh %363 : vector<8x32xf32>
    %365 = arith.mulf %360, %364 : vector<8x32xf32>
    %c7_i32 = arith.constant 7 : i32
    %366 = vector.broadcast %c7_i32 : i32 to vector<8x1xi32>
    %367 = arith.cmpi sgt, %7, %366 : vector<8x1xi32>
    %cst_100 = arith.constant 0.000000e+00 : f32
    %368 = vector.shape_cast %367 : vector<8x1xi1> to vector<8x1xi1>
    %369 = vector.broadcast %368 : vector<8x1xi1> to vector<8x32xi1>
    %370 = vector.broadcast %cst_100 : f32 to vector<8x32xf32>
    %371 = arith.select %369, %365, %370 : vector<8x32xi1>, vector<8x32xf32>
    %372 = vector.shape_cast %367 : vector<8x1xi1> to vector<8x1xi1>
    %373 = vector.broadcast %372 : vector<8x1xi1> to vector<8x32xi1>
    %374 = arith.select %373, %365, %328 : vector<8x32xi1>, vector<8x32xf32>
    %375 = vector.shape_cast %367 : vector<8x1xi1> to vector<8x1xi1>
    %376 = vector.broadcast %375 : vector<8x1xi1> to vector<8x32xi1>
    %377 = arith.select %376, %363, %331 : vector<8x32xi1>, vector<8x32xf32>
    %c0_101 = arith.constant 0 : index
    %c0_102 = arith.constant 0 : index
    %378 = vector.load %arg12[%c0_101, %c0_102] : memref<8x32xf32, #tpu.memory_space<vmem>>, vector<8x32xf32>
    tpu.vector_store %arg12[%c0_101, %c0_102], %374 {strides = array<i32>} : memref<8x32xf32, #tpu.memory_space<vmem>>, vector<8x32xf32>,
    %c0_103 = arith.constant 0 : index
    %c0_104 = arith.constant 0 : index
    %379 = vector.load %arg13[%c0_103, %c0_104] : memref<8x32xf32, #tpu.memory_space<vmem>>, vector<8x32xf32>
    tpu.vector_store %arg13[%c0_103, %c0_104], %377 {strides = array<i32>} : memref<8x32xf32, #tpu.memory_space<vmem>>, vector<8x32xf32>,
    %380 = tpu.concatenate %49, %95, %141, %187, %233, %279, %325, %371 in 0 : vector<8x32xf32>, vector<8x32xf32>, vector<8x32xf32>, vector<8x32xf32>, vector<8x32xf32>, vector<8x32xf32>, vector<8x32xf32>, vector<8x32xf32> -> vector<64x32xf32>
    %c0_105 = arith.constant 0 : index
    %c0_106 = arith.constant 0 : index
    %381 = vector.load %arg4[%c0_105, %c0_106] : memref<20x32xf32, #tpu.memory_space<vmem>>, vector<20x32xf32>
    %cst_107 = arith.constant dense<0.000000e+00> : vector<64x20xf32>
    %382 = tpu.matmul %380, %381, %cst_107 {dimension_numbers = #tpu.dot_dimension_numbers<[1], [1], [0], [0], [0, 0, 1, 0], [], []>, precision = #tpu.contract_precision<fp32>} : vector<64x32xf32>, vector<20x32xf32>, vector<64x20xf32> -> vector<64x20xf32>
    %c0_108 = arith.constant 0 : index
    %c0_109 = arith.constant 0 : index
    %383 = vector.load %arg5[%c0_108, %c0_109] : memref<64x20xf32, #tpu.memory_space<vmem>>, vector<64x20xf32>
    %cst_110 = arith.constant 1.000000e+00 : f32
    %384 = vector.broadcast %cst_110 : f32 to vector<64x20xf32>
    %385 = arith.subf %383, %384 : vector<64x20xf32>
    %cst_111 = arith.constant 1.000000e+09 : f32
    %386 = vector.broadcast %cst_111 : f32 to vector<64x20xf32>
    %387 = arith.mulf %385, %386 : vector<64x20xf32>
    %388 = arith.addf %382, %387 : vector<64x20xf32>
    %cst_112 = arith.constant dense<0xFF800000> : vector<64xf32>
    %389 = vector.multi_reduction <maximumf>, %388, %cst_112 [1] : vector<64x20xf32> to vector<64xf32>
    %390 = vector.shape_cast %389 : vector<64xf32> to vector<64x1xf32>
    %391 = vector.broadcast %390 : vector<64x1xf32> to vector<64x20xf32>
    %392 = arith.subf %388, %391 : vector<64x20xf32>
    %393 = math.exp %392 : vector<64x20xf32>
    %394 = arith.mulf %393, %383 : vector<64x20xf32>
    %cst_113 = arith.constant dense<0.000000e+00> : vector<64xf32>
    %395 = vector.multi_reduction <add>, %394, %cst_113 [1] : vector<64x20xf32> to vector<64xf32>
    %396 = vector.shape_cast %395 : vector<64xf32> to vector<64x1xf32>
    %397 = vector.broadcast %396 : vector<64x1xf32> to vector<64x20xf32>
    %398 = arith.divf %394, %397 : vector<64x20xf32>
    %cst_114 = arith.constant dense<0.000000e+00> : vector<64x32xf32>
    %399 = tpu.matmul %398, %381, %cst_114 {dimension_numbers = #tpu.dot_dimension_numbers<[1], [0], [0], [1], [0, 0, 1, 1], [], []>, precision = #tpu.contract_precision<fp32>} : vector<64x20xf32>, vector<20x32xf32>, vector<64x32xf32> -> vector<64x32xf32>
    %c0_115 = arith.constant 0 : index
    %c0_116 = arith.constant 0 : index
    %400 = vector.load %arg9[%c0_115, %c0_116] : memref<64x8xf32, #tpu.memory_space<vmem>>, vector<32x8xf32>
    %cst_117 = arith.constant dense<0.000000e+00> : vector<64x8xf32>
    %401 = tpu.matmul %380, %400, %cst_117 {dimension_numbers = #tpu.dot_dimension_numbers<[1], [0], [0], [1], [0, 0, 1, 1], [], []>, precision = #tpu.contract_precision<fp32>} : vector<64x32xf32>, vector<32x8xf32>, vector<64x8xf32> -> vector<64x8xf32>
    %c32 = arith.constant 32 : index
    %c0_118 = arith.constant 0 : index
    %402 = vector.load %arg9[%c32, %c0_118] : memref<64x8xf32, #tpu.memory_space<vmem>>, vector<32x8xf32>
    %cst_119 = arith.constant dense<0.000000e+00> : vector<64x8xf32>
    %403 = tpu.matmul %399, %402, %cst_119 {dimension_numbers = #tpu.dot_dimension_numbers<[1], [0], [0], [1], [0, 0, 1, 1], [], []>, precision = #tpu.contract_precision<fp32>} : vector<64x32xf32>, vector<32x8xf32>, vector<64x8xf32> -> vector<64x8xf32>
    %404 = arith.addf %401, %403 : vector<64x8xf32>
    %c0_120 = arith.constant 0 : index
    %c0_121 = arith.constant 0 : index
    %405 = vector.load %arg10[%c0_120, %c0_121] : memref<1x8xf32, #tpu.memory_space<vmem>>, vector<1x8xf32>
    %406 = vector.broadcast %405 : vector<1x8xf32> to vector<64x8xf32>
    %407 = arith.addf %404, %406 : vector<64x8xf32>
    %c0_122 = arith.constant 0 : index
    %c0_123 = arith.constant 0 : index
    %408 = vector.load %arg11[%c0_122, %c0_123] : memref<64x8xf32, #tpu.memory_space<vmem>>, vector<64x8xf32>
    tpu.vector_store %arg11[%c0_122, %c0_123], %407 {strides = array<i32>} : memref<64x8xf32, #tpu.memory_space<vmem>>, vector<64x8xf32>,
    return
  }
}

</mosaic_0001>

<llo_original>
// kernel: tpu_custom_call.1
$region0: #{tpu_custom_call.1}
  #allocation0 [shape = 'u32[]', space=smem, size = 0x4, offset = 0x4, fixed_abs, tag = 'smem constant byte address 0x4 - core index']
  #allocation1 [shape = 'u32[72,128]{1,0:T(1,128)}', space=vmem, size = 0x9000, scoped, tag = 'internal scratch']
  %s0 = inlined_call_operand.vmem [shape: f32[64,16], index: 0, kind: input, shape index: {}]
  %s1 = inlined_call_operand.vmem [shape: f32[8,32], index: 1, kind: input, shape index: {}]
  %s2 = inlined_call_operand.vmem [shape: f32[8,32], index: 2, kind: input, shape index: {}]
  %s3 = inlined_call_operand.vmem [shape: s32[8,1], index: 3, kind: input, shape index: {}]
  %s4 = inlined_call_operand.vmem [shape: f32[20,32], index: 4, kind: input, shape index: {}]
  %s5 = inlined_call_operand.vmem [shape: f32[64,20], index: 5, kind: input, shape index: {}]
  %s6 = inlined_call_operand.vmem [shape: f32[16,128], index: 6, kind: input, shape index: {}]
  %s7 = inlined_call_operand.vmem [shape: f32[32,128], index: 7, kind: input, shape index: {}]
  %s8 = inlined_call_operand.vmem [shape: f32[1,128], index: 8, kind: input, shape index: {}]
  %s9 = inlined_call_operand.vmem [shape: f32[64,8], index: 9, kind: input, shape index: {}]
  %s10 = inlined_call_operand.vmem [shape: f32[1,8], index: 10, kind: input, shape index: {}]
  %s11 = inlined_call_operand.vmem [shape: f32[64,8], index: 11, kind: output, shape index: {0}]
  %s12 = inlined_call_operand.hbm [shape: f32[8,32], index: 12, kind: output, shape index: {1}]
  %s13 = inlined_call_operand.hbm [shape: f32[8,32], index: 13, kind: output, shape index: {2}]
  %14 = xla_tuple %s11, %s12, %s13
  %s15 = sld [smem:[#allocation0]]
  $region70: #{tpu_custom_call.1} parent=0
    _
  %s17 = ssub.s32 1, %s15
  %s18 = scalar_select 0, %s17, %s15
  $region1: #{tpu_custom_call.1} parent=0
    #allocation2 [shape = 'u8[4096]{0}', space=vmem, size = 0x1000, scoped, tag = 'output window, operand 1, single buffered']
    #allocation3 [shape = 's32[1]{0}', space=sflag, size = 0x4, scoped, tag = 'scoped memory for tpu_custom_call.1']
    #allocation4 [shape = 'u8[4096]{0}', space=vmem, size = 0x1000, scoped, tag = 'output window, operand 2, single buffered']
    #allocation5 [shape = 's32[1]{0}', space=sflag, size = 0x4, scoped, tag = 'scoped memory for tpu_custom_call.1']
    %19 = vsyncpa [#allocation3], 0
    %20 = vsyncpa [#allocation5], 0
    // Predicated region
    $region2: #{tpu_custom_call.1} parent=1 // pred_check
      _
    $region3: #{tpu_custom_call.1} parent=1 // pred_check_branch
      %22 = sbr.rel (0) target = $region5
    $region4: #{tpu_custom_call.1} parent=1 // pred_region
      _
    $region5: #{tpu_custom_call.1} parent=1 // pred_fallthru
      _
    // Predicated region
    $region6: #{tpu_custom_call.1} parent=1 // pred_check
      _
    $region7: #{tpu_custom_call.1} parent=1 // pred_check_branch
      %24 = sbr.rel (0) target = $region9
    $region8: #{tpu_custom_call.1} parent=1 // pred_region
      _
    $region9: #{tpu_custom_call.1} parent=1 // pred_fallthru
      _
    // Predicated region
    $region10: #{tpu_custom_call.1} parent=1 // pred_check
      _
    $region11: #{tpu_custom_call.1} parent=1 // pred_check_branch
      %26 = sbr.rel (0) target = $region13
    $region12: #{tpu_custom_call.1} parent=1 // pred_region
      _
    $region13: #{tpu_custom_call.1} parent=1 // pred_fallthru
      _
    // Predicated region
    $region14: #{tpu_custom_call.1} parent=1 // pred_check
      _
    $region15: #{tpu_custom_call.1} parent=1 // pred_check_branch
      %28 = sbr.rel (0) target = $region17
    $region16: #{tpu_custom_call.1} parent=1 // pred_region
      _
    $region17: #{tpu_custom_call.1} parent=1 // pred_fallthru
      _
    // Predicated region
    $region18: #{tpu_custom_call.1} parent=1 // pred_check
      _
    $region19: #{tpu_custom_call.1} parent=1 // pred_check_branch
      %30 = sbr.rel (0) target = $region21
    $region20: #{tpu_custom_call.1} parent=1 // pred_region
      _
    $region21: #{tpu_custom_call.1} parent=1 // pred_fallthru
      _
    // Predicated region
    $region22: #{tpu_custom_call.1} parent=1 // pred_check
      _
    $region23: #{tpu_custom_call.1} parent=1 // pred_check_branch
      %32 = sbr.rel (0) target = $region25
    $region24: #{tpu_custom_call.1} parent=1 // pred_region
      _
    $region25: #{tpu_custom_call.1} parent=1 // pred_fallthru
      _
    // Predicated region
    $region26: #{tpu_custom_call.1} parent=1 // pred_check
      _
    $region27: #{tpu_custom_call.1} parent=1 // pred_check_branch
      %34 = sbr.rel (0) target = $region29
    $region28: #{tpu_custom_call.1} parent=1 // pred_region
      _
    $region29: #{tpu_custom_call.1} parent=1 // pred_fallthru
      _
    // Predicated region
    $region30: #{tpu_custom_call.1} parent=1 // pred_check
      _
    $region31: #{tpu_custom_call.1} parent=1 // pred_check_branch
      %36 = sbr.rel (0) target = $region33
    $region32: #{tpu_custom_call.1} parent=1 // pred_region
      _
    $region33: #{tpu_custom_call.1} parent=1 // pred_fallthru
      _
    // Predicated region
    $region34: #{tpu_custom_call.1} parent=1 // pred_check
      _
    $region35: #{tpu_custom_call.1} parent=1 // pred_check_branch
      %38 = sbr.rel (0) target = $region37
    $region36: #{tpu_custom_call.1} parent=1 // pred_region
      _
    $region37: #{tpu_custom_call.1} parent=1 // pred_fallthru
      _
    // Predicated region
    $region38: #{tpu_custom_call.1} parent=1 // pred_check
      _
    $region39: #{tpu_custom_call.1} parent=1 // pred_check_branch
      %40 = sbr.rel (0) target = $region41
    $region40: #{tpu_custom_call.1} parent=1 // pred_region
      _
    $region41: #{tpu_custom_call.1} parent=1 // pred_fallthru
      _
    // Predicated region
    $region42: #{tpu_custom_call.1} parent=1 // pred_check
      _
    $region43: #{tpu_custom_call.1} parent=1 // pred_check_branch
      %42 = sbr.rel (0) target = $region45
    $region44: #{tpu_custom_call.1} parent=1 // pred_region
      _
    $region45: #{tpu_custom_call.1} parent=1 // pred_fallthru
      _
    %v43 = vld [vmem:[%s0] sm:$0xff]
    %v44 = vld [vmem:[%s0 + $0x8] sm:$0xff]
    %v45 = vld [vmem:[%s0 + $0x10] sm:$0xff]
    %v46 = vld [vmem:[%s0 + $0x18] sm:$0xff]
    %v47 = vld [vmem:[%s0 + $0x20] sm:$0xff]
    %v48 = vld [vmem:[%s0 + $0x28] sm:$0xff]
    %v49 = vld [vmem:[%s0 + $0x30] sm:$0xff]
    %v50 = vld [vmem:[%s0 + $0x38] sm:$0xff]
    %v51 = vld [vmem:[%s6] sm:$0xff]
    %v52 = vld [vmem:[%s6 + $0x8] sm:$0xff]
    %v53 = vld [vmem:[%s8] sm:$0x1]
    %v55 = vperm.slane %v53, 0
    %vm57 = vcmask 130048
    %v59 = vsel %vm57, %v43, 0
    %v62 = vsel %vm57, %v44, 0
    %v65 = vsel %vm57, %v45, 0
    %v68 = vsel %vm57, %v46, 0
    %v71 = vsel %vm57, %v47, 0
    %v74 = vsel %vm57, %v48, 0
    %v77 = vsel %vm57, %v49, 0
    %v80 = vsel %vm57, %v50, 0
    %82 = vmatpush.msra.mxu0 0.0
    %83 = vmatpush.msra.mxu0 0.0
    %84 = vmatpush.msra.mxu0 0.0
    %85 = vmatpush.msra.mxu0 0.0
    %86 = vmatpush.msra.mxu0 0.0
    %87 = vmatpush.msra.mxu0 0.0
    %88 = vmatpush.msra.mxu0 0.0
    %89 = vmatpush.msra.mxu0 0.0
    %90 = vmatpush.msra.mxu0 0.0
    %91 = vmatpush.msra.mxu0 0.0
    %92 = vmatpush.msra.mxu0 0.0
    %93 = vmatpush.msra.mxu0 0.0
    %94 = vmatpush.msra.mxu0 0.0
    %95 = vmatpush.msra.mxu0 0.0
    %v96 = vand.u32 %v52, 4294901760
    %97 = vmatpush.msra.mxu0 %v96
    %v98 = vand.u32 %v51, 4294901760
    %99 = vmatpush.msra.mxu0 %v98
    %v100 = vand.u32 %v59, 4294901760
    %v101 = vsub.f32 %v59, %v100
    %v102 = vand.u32 %v101, 4294901760
    %v103 = vsub.f32 %v101, %v102
    %v104 = vand.u32 %v103, 4294901760
    %105 = vmatmul.f32.gmra.mxu0 %v104
    %v106 = vpop.f32.mrf.mxu0
    %v107 = vadd.f32 %v55, %v106
    %v108 = vand.u32 %v62, 4294901760
    %v109 = vsub.f32 %v62, %v108
    %v110 = vand.u32 %v109, 4294901760
    %v111 = vsub.f32 %v109, %v110
    %v112 = vand.u32 %v111, 4294901760
    %113 = vmatmul.f32.gmra.mxu0 %v112
    %v114 = vpop.f32.mrf.mxu0
    %v115 = vadd.f32 %v55, %v114
    %v116 = vand.u32 %v65, 4294901760
    %v117 = vsub.f32 %v65, %v116
    %v118 = vand.u32 %v117, 4294901760
    %v119 = vsub.f32 %v117, %v118
    %v120 = vand.u32 %v119, 4294901760
    %121 = vmatmul.f32.gmra.mxu0 %v120
    %v122 = vpop.f32.mrf.mxu0
    %v123 = vadd.f32 %v55, %v122
    %v124 = vand.u32 %v68, 4294901760
    %v125 = vsub.f32 %v68, %v124
    %v126 = vand.u32 %v125, 4294901760
    %v127 = vsub.f32 %v125, %v126
    %v128 = vand.u32 %v127, 4294901760
    %129 = vmatmul.f32.gmra.mxu0 %v128
    %v130 = vpop.f32.mrf.mxu0
    %v131 = vadd.f32 %v55, %v130
    %v132 = vand.u32 %v71, 4294901760
    %v133 = vsub.f32 %v71, %v132
    %v134 = vand.u32 %v133, 4294901760
    %v135 = vsub.f32 %v133, %v134
    %v136 = vand.u32 %v135, 4294901760
    %137 = vmatmul.f32.gmra.mxu0 %v136
    %v138 = vpop.f32.mrf.mxu0
    %v139 = vadd.f32 %v55, %v138
    %v140 = vand.u32 %v74, 4294901760
    %v141 = vsub.f32 %v74, %v140
    %v142 = vand.u32 %v141, 4294901760
    %v143 = vsub.f32 %v141, %v142
    %v144 = vand.u32 %v143, 4294901760
    %145 = vmatmul.f32.gmra.mxu0 %v144
    %v146 = vpop.f32.mrf.mxu0
    %v147 = vadd.f32 %v55, %v146
    %v148 = vand.u32 %v77, 4294901760
    %v149 = vsub.f32 %v77, %v148
    %v150 = vand.u32 %v149, 4294901760
    %v151 = vsub.f32 %v149, %v150
    %v152 = vand.u32 %v151, 4294901760
    %153 = vmatmul.f32.gmra.mxu0 %v152
    %v154 = vpop.f32.mrf.mxu0
    %v155 = vadd.f32 %v55, %v154
    %v156 = vand.u32 %v80, 4294901760
    %v157 = vsub.f32 %v80, %v156
    %v158 = vand.u32 %v157, 4294901760
    %v159 = vsub.f32 %v157, %v158
    %v160 = vand.u32 %v159, 4294901760
    %161 = vmatmul.f32.gmra.mxu0 %v160
    %v162 = vpop.f32.mrf.mxu0
    %v163 = vadd.f32 %v55, %v162
    %164 = vdwg.mxu0
    %165 = vmatpush.msra.mxu0 0.0
    %166 = vmatpush.msra.mxu0 0.0
    %167 = vmatpush.msra.mxu0 0.0
    %168 = vmatpush.msra.mxu0 0.0
    %169 = vmatpush.msra.mxu0 0.0
    %170 = vmatpush.msra.mxu0 0.0
    %171 = vmatpush.msra.mxu0 0.0
    %172 = vmatpush.msra.mxu0 0.0
    %173 = vmatpush.msra.mxu0 0.0
    %174 = vmatpush.msra.mxu0 0.0
    %175 = vmatpush.msra.mxu0 0.0
    %176 = vmatpush.msra.mxu0 0.0
    %177 = vmatpush.msra.mxu0 0.0
    %178 = vmatpush.msra.mxu0 0.0
    %v179 = vand.u32 %v52, 4294901760
    %v180 = vsub.f32 %v52, %v179
    %v181 = vand.u32 %v180, 4294901760
    %v182 = vsub.f32 %v180, %v181
    %v183 = vand.u32 %v182, 4294901760
    %184 = vmatpush.msra.mxu0 %v183
    %v185 = vand.u32 %v51, 4294901760
    %v186 = vsub.f32 %v51, %v185
    %v187 = vand.u32 %v186, 4294901760
    %v188 = vsub.f32 %v186, %v187
    %v189 = vand.u32 %v188, 4294901760
    %190 = vmatpush.msra.mxu0 %v189
    %v191 = vand.u32 %v59, 4294901760
    %192 = vmatmul.f32.gmra.mxu0 %v191
    %v193 = vpop.f32.mrf.mxu0
    %v194 = vadd.f32 %v107, %v193
    %v195 = vand.u32 %v62, 4294901760
    %196 = vmatmul.f32.gmra.mxu0 %v195
    %v197 = vpop.f32.mrf.mxu0
    %v198 = vadd.f32 %v115, %v197
    %v199 = vand.u32 %v65, 4294901760
    %200 = vmatmul.f32.gmra.mxu0 %v199
    %v201 = vpop.f32.mrf.mxu0
    %v202 = vadd.f32 %v123, %v201
    %v203 = vand.u32 %v68, 4294901760
    %204 = vmatmul.f32.gmra.mxu0 %v203
    %v205 = vpop.f32.mrf.mxu0
    %v206 = vadd.f32 %v131, %v205
    %v207 = vand.u32 %v71, 4294901760
    %208 = vmatmul.f32.gmra.mxu0 %v207
    %v209 = vpop.f32.mrf.mxu0
    %v210 = vadd.f32 %v139, %v209
    %v211 = vand.u32 %v74, 4294901760
    %212 = vmatmul.f32.gmra.mxu0 %v211
    %v213 = vpop.f32.mrf.mxu0
    %v214 = vadd.f32 %v147, %v213
    %v215 = vand.u32 %v77, 4294901760
    %216 = vmatmul.f32.gmra.mxu0 %v215
    %v217 = vpop.f32.mrf.mxu0
    %v218 = vadd.f32 %v155, %v217
    %v219 = vand.u32 %v80, 4294901760
    %220 = vmatmul.f32.gmra.mxu0 %v219
    %v221 = vpop.f32.mrf.mxu0
    %v222 = vadd.f32 %v163, %v221
    %223 = vdwg.mxu0
    %224 = vmatpush.msra.mxu0 0.0
    %225 = vmatpush.msra.mxu0 0.0
    %226 = vmatpush.msra.mxu0 0.0
    %227 = vmatpush.msra.mxu0 0.0
    %228 = vmatpush.msra.mxu0 0.0
    %229 = vmatpush.msra.mxu0 0.0
    %230 = vmatpush.msra.mxu0 0.0
    %231 = vmatpush.msra.mxu0 0.0
    %232 = vmatpush.msra.mxu0 0.0
    %233 = vmatpush.msra.mxu0 0.0
    %234 = vmatpush.msra.mxu0 0.0
    %235 = vmatpush.msra.mxu0 0.0
    %236 = vmatpush.msra.mxu0 0.0
    %237 = vmatpush.msra.mxu0 0.0
    %v238 = vand.u32 %v52, 4294901760
    %v239 = vsub.f32 %v52, %v238
    %240 = vmatpush.msra.mxu0 %v239
    %v241 = vand.u32 %v51, 4294901760
    %v242 = vsub.f32 %v51, %v241
    %243 = vmatpush.msra.mxu0 %v242
    %v244 = vand.u32 %v59, 4294901760
    %v245 = vsub.f32 %v59, %v244
    %246 = vmatmul.f32.gmra.mxu0 %v245
    %v247 = vpop.f32.mrf.mxu0
    %v248 = vadd.f32 %v194, %v247
    %v249 = vand.u32 %v62, 4294901760
    %v250 = vsub.f32 %v62, %v249
    %251 = vmatmul.f32.gmra.mxu0 %v250
    %v252 = vpop.f32.mrf.mxu0
    %v253 = vadd.f32 %v198, %v252
    %v254 = vand.u32 %v65, 4294901760
    %v255 = vsub.f32 %v65, %v254
    %256 = vmatmul.f32.gmra.mxu0 %v255
    %v257 = vpop.f32.mrf.mxu0
    %v258 = vadd.f32 %v202, %v257
    %v259 = vand.u32 %v68, 4294901760
    %v260 = vsub.f32 %v68, %v259
    %261 = vmatmul.f32.gmra.mxu0 %v260
    %v262 = vpop.f32.mrf.mxu0
    %v263 = vadd.f32 %v206, %v262
    %v264 = vand.u32 %v71, 4294901760
    %v265 = vsub.f32 %v71, %v264
    %266 = vmatmul.f32.gmra.mxu0 %v265
    %v267 = vpop.f32.mrf.mxu0
    %v268 = vadd.f32 %v210, %v267
    %v269 = vand.u32 %v74, 4294901760
    %v270 = vsub.f32 %v74, %v269
    %271 = vmatmul.f32.gmra.mxu0 %v270
    %v272 = vpop.f32.mrf.mxu0
    %v273 = vadd.f32 %v214, %v272
    %v274 = vand.u32 %v77, 4294901760
    %v275 = vsub.f32 %v77, %v274
    %276 = vmatmul.f32.gmra.mxu0 %v275
    %v277 = vpop.f32.mrf.mxu0
    %v278 = vadd.f32 %v218, %v277
    %v279 = vand.u32 %v80, 4294901760
    %v280 = vsub.f32 %v80, %v279
    %281 = vmatmul.f32.gmra.mxu0 %v280
    %v282 = vpop.f32.mrf.mxu0
    %v283 = vadd.f32 %v222, %v282
    %284 = vdwg.mxu0
    %285 = vmatpush.msra.mxu0 0.0
    %286 = vmatpush.msra.mxu0 0.0
    %287 = vmatpush.msra.mxu0 0.0
    %288 = vmatpush.msra.mxu0 0.0
    %289 = vmatpush.msra.mxu0 0.0
    %290 = vmatpush.msra.mxu0 0.0
    %291 = vmatpush.msra.mxu0 0.0
    %292 = vmatpush.msra.mxu0 0.0
    %293 = vmatpush.msra.mxu0 0.0
    %294 = vmatpush.msra.mxu0 0.0
    %295 = vmatpush.msra.mxu0 0.0
    %296 = vmatpush.msra.mxu0 0.0
    %297 = vmatpush.msra.mxu0 0.0
    %298 = vmatpush.msra.mxu0 0.0
    %v299 = vand.u32 %v52, 4294901760
    %300 = vmatpush.msra.mxu0 %v299
    %v301 = vand.u32 %v51, 4294901760
    %302 = vmatpush.msra.mxu0 %v301
    %v303 = vand.u32 %v59, 4294901760
    %v304 = vsub.f32 %v59, %v303
    %v305 = vand.u32 %v304, 4294901760
    %306 = vmatmul.f32.gmra.mxu0 %v305
    %v307 = vpop.f32.mrf.mxu0
    %v308 = vadd.f32 %v248, %v307
    %v309 = vand.u32 %v62, 4294901760
    %v310 = vsub.f32 %v62, %v309
    %v311 = vand.u32 %v310, 4294901760
    %312 = vmatmul.f32.gmra.mxu0 %v311
    %v313 = vpop.f32.mrf.mxu0
    %v314 = vadd.f32 %v253, %v313
    %v315 = vand.u32 %v65, 4294901760
    %v316 = vsub.f32 %v65, %v315
    %v317 = vand.u32 %v316, 4294901760
    %318 = vmatmul.f32.gmra.mxu0 %v317
    %v319 = vpop.f32.mrf.mxu0
    %v320 = vadd.f32 %v258, %v319
    %v321 = vand.u32 %v68, 4294901760
    %v322 = vsub.f32 %v68, %v321
    %v323 = vand.u32 %v322, 4294901760
    %324 = vmatmul.f32.gmra.mxu0 %v323
    %v325 = vpop.f32.mrf.mxu0
    %v326 = vadd.f32 %v263, %v325
    %v327 = vand.u32 %v71, 4294901760
    %v328 = vsub.f32 %v71, %v327
    %v329 = vand.u32 %v328, 4294901760
    %330 = vmatmul.f32.gmra.mxu0 %v329
    %v331 = vpop.f32.mrf.mxu0
    %v332 = vadd.f32 %v268, %v331
    %v333 = vand.u32 %v74, 4294901760
    %v334 = vsub.f32 %v74, %v333
    %v335 = vand.u32 %v334, 4294901760
    %336 = vmatmul.f32.gmra.mxu0 %v335
    %v337 = vpop.f32.mrf.mxu0
    %v338 = vadd.f32 %v273, %v337
    %v339 = vand.u32 %v77, 4294901760
    %v340 = vsub.f32 %v77, %v339
    %v341 = vand.u32 %v340, 4294901760
    %342 = vmatmul.f32.gmra.mxu0 %v341
    %v343 = vpop.f32.mrf.mxu0
    %v344 = vadd.f32 %v278, %v343
    %v345 = vand.u32 %v80, 4294901760
    %v346 = vsub.f32 %v80, %v345
    %v347 = vand.u32 %v346, 4294901760
    %348 = vmatmul.f32.gmra.mxu0 %v347
    %v349 = vpop.f32.mrf.mxu0
    %v350 = vadd.f32 %v283, %v349
    %351 = vdwg.mxu0
    %352 = vmatpush.msra.mxu0 0.0
    %353 = vmatpush.msra.mxu0 0.0
    %354 = vmatpush.msra.mxu0 0.0
    %355 = vmatpush.msra.mxu0 0.0
    %356 = vmatpush.msra.mxu0 0.0
    %357 = vmatpush.msra.mxu0 0.0
    %358 = vmatpush.msra.mxu0 0.0
    %359 = vmatpush.msra.mxu0 0.0
    %360 = vmatpush.msra.mxu0 0.0
    %361 = vmatpush.msra.mxu0 0.0
    %362 = vmatpush.msra.mxu0 0.0
    %363 = vmatpush.msra.mxu0 0.0
    %364 = vmatpush.msra.mxu0 0.0
    %365 = vmatpush.msra.mxu0 0.0
    %v366 = vand.u32 %v52, 4294901760
    %v367 = vsub.f32 %v52, %v366
    %v368 = vand.u32 %v367, 4294901760
    %369 = vmatpush.msra.mxu0 %v368
    %v370 = vand.u32 %v51, 4294901760
    %v371 = vsub.f32 %v51, %v370
    %v372 = vand.u32 %v371, 4294901760
    %373 = vmatpush.msra.mxu0 %v372
    %v374 = vand.u32 %v59, 4294901760
    %375 = vmatmul.f32.gmra.mxu0 %v374
    %v376 = vpop.f32.mrf.mxu0
    %v377 = vadd.f32 %v308, %v376
    %v378 = vand.u32 %v62, 4294901760
    %379 = vmatmul.f32.gmra.mxu0 %v378
    %v380 = vpop.f32.mrf.mxu0
    %v381 = vadd.f32 %v314, %v380
    %v382 = vand.u32 %v65, 4294901760
    %383 = vmatmul.f32.gmra.mxu0 %v382
    %v384 = vpop.f32.mrf.mxu0
    %v385 = vadd.f32 %v320, %v384
    %v386 = vand.u32 %v68, 4294901760
    %387 = vmatmul.f32.gmra.mxu0 %v386
    %v388 = vpop.f32.mrf.mxu0
    %v389 = vadd.f32 %v326, %v388
    %v390 = vand.u32 %v71, 4294901760
    %391 = vmatmul.f32.gmra.mxu0 %v390
    %v392 = vpop.f32.mrf.mxu0
    %v393 = vadd.f32 %v332, %v392
    %v394 = vand.u32 %v74, 4294901760
    %395 = vmatmul.f32.gmra.mxu0 %v394
    %v396 = vpop.f32.mrf.mxu0
    %v397 = vadd.f32 %v338, %v396
    %v398 = vand.u32 %v77, 4294901760
    %399 = vmatmul.f32.gmra.mxu0 %v398
    %v400 = vpop.f32.mrf.mxu0
    %v401 = vadd.f32 %v344, %v400
    %v402 = vand.u32 %v80, 4294901760
    %403 = vmatmul.f32.gmra.mxu0 %v402
    %v404 = vpop.f32.mrf.mxu0
    %v405 = vadd.f32 %v350, %v404
    %406 = vdwg.mxu0
    %407 = vmatpush.msra.mxu0 0.0
    %408 = vmatpush.msra.mxu0 0.0
    %409 = vmatpush.msra.mxu0 0.0
    %410 = vmatpush.msra.mxu0 0.0
    %411 = vmatpush.msra.mxu0 0.0
    %412 = vmatpush.msra.mxu0 0.0
    %413 = vmatpush.msra.mxu0 0.0
    %414 = vmatpush.msra.mxu0 0.0
    %415 = vmatpush.msra.mxu0 0.0
    %416 = vmatpush.msra.mxu0 0.0
    %417 = vmatpush.msra.mxu0 0.0
    %418 = vmatpush.msra.mxu0 0.0
    %419 = vmatpush.msra.mxu0 0.0
    %420 = vmatpush.msra.mxu0 0.0
    %v421 = vand.u32 %v52, 4294901760
    %422 = vmatpush.msra.mxu0 %v421
    %v423 = vand.u32 %v51, 4294901760
    %424 = vmatpush.msra.mxu0 %v423
    %v425 = vand.u32 %v59, 4294901760
    %426 = vmatmul.f32.gmra.mxu0 %v425
    %v427 = vpop.f32.mrf.mxu0
    %v428 = vadd.f32 %v377, %v427
    %v429 = vand.u32 %v62, 4294901760
    %430 = vmatmul.f32.gmra.mxu0 %v429
    %v431 = vpop.f32.mrf.mxu0
    %v432 = vadd.f32 %v381, %v431
    %v433 = vand.u32 %v65, 4294901760
    %434 = vmatmul.f32.gmra.mxu0 %v433
    %v435 = vpop.f32.mrf.mxu0
    %v436 = vadd.f32 %v385, %v435
    %v437 = vand.u32 %v68, 4294901760
    %438 = vmatmul.f32.gmra.mxu0 %v437
    %v439 = vpop.f32.mrf.mxu0
    %v440 = vadd.f32 %v389, %v439
    %v441 = vand.u32 %v71, 4294901760
    %442 = vmatmul.f32.gmra.mxu0 %v441
    %v443 = vpop.f32.mrf.mxu0
    %v444 = vadd.f32 %v393, %v443
    %v445 = vand.u32 %v74, 4294901760
    %446 = vmatmul.f32.gmra.mxu0 %v445
    %v447 = vpop.f32.mrf.mxu0
    %v448 = vadd.f32 %v397, %v447
    %v449 = vand.u32 %v77, 4294901760
    %450 = vmatmul.f32.gmra.mxu0 %v449
    %v451 = vpop.f32.mrf.mxu0
    %v452 = vadd.f32 %v401, %v451
    %v453 = vand.u32 %v80, 4294901760
    %454 = vmatmul.f32.gmra.mxu0 %v453
    %v455 = vpop.f32.mrf.mxu0
    %v456 = vadd.f32 %v405, %v455
    %457 = vdwg.mxu0
    %v458 = vld [vmem:[%s7] sm:$0xff]
    %v459 = vld [vmem:[%s7 + $0x8] sm:$0xff]
    %v460 = vld [vmem:[%s7 + $0x10] sm:$0xff]
    %v461 = vld [vmem:[%s7 + $0x18] sm:$0xff]
    %v462 = vld [vmem:[%s3] sm:$0xff]
    %v463 = vld [vmem:[%s1] sm:$0xff]
    %v464 = vld [vmem:[%s2] sm:$0xff]
    %vm465 = vcmask 261120
    %v467 = vsel %vm465, %v463, 0
    %469 = vmatpush.msra.mxu0 0.0
    %470 = vmatpush.msra.mxu0 0.0
    %471 = vmatpush.msra.mxu0 0.0
    %472 = vmatpush.msra.mxu0 0.0
    %473 = vmatpush.msra.mxu0 0.0
    %474 = vmatpush.msra.mxu0 0.0
    %475 = vmatpush.msra.mxu0 0.0
    %476 = vmatpush.msra.mxu0 0.0
    %477 = vmatpush.msra.mxu0 0.0
    %478 = vmatpush.msra.mxu0 0.0
    %479 = vmatpush.msra.mxu0 0.0
    %480 = vmatpush.msra.mxu0 0.0
    %v481 = vand.u32 %v461, 4294901760
    %482 = vmatpush.msra.mxu0 %v481
    %v483 = vand.u32 %v460, 4294901760
    %484 = vmatpush.msra.mxu0 %v483
    %v485 = vand.u32 %v459, 4294901760
    %486 = vmatpush.msra.mxu0 %v485
    %v487 = vand.u32 %v458, 4294901760
    %488 = vmatpush.msra.mxu0 %v487
    %v489 = vand.u32 %v467, 4294901760
    %v490 = vsub.f32 %v467, %v489
    %v491 = vand.u32 %v490, 4294901760
    %v492 = vsub.f32 %v490, %v491
    %v493 = vand.u32 %v492, 4294901760
    %494 = vmatmul.f32.gmra.mxu0 %v493
    %v495 = vpop.f32.mrf.mxu0
    %v496 = vadd.f32 0.0, %v495
    %497 = vdwg.mxu0
    %498 = vmatpush.msra.mxu0 0.0
    %499 = vmatpush.msra.mxu0 0.0
    %500 = vmatpush.msra.mxu0 0.0
    %501 = vmatpush.msra.mxu0 0.0
    %502 = vmatpush.msra.mxu0 0.0
    %503 = vmatpush.msra.mxu0 0.0
    %504 = vmatpush.msra.mxu0 0.0
    %505 = vmatpush.msra.mxu0 0.0
    %506 = vmatpush.msra.mxu0 0.0
    %507 = vmatpush.msra.mxu0 0.0
    %508 = vmatpush.msra.mxu0 0.0
    %509 = vmatpush.msra.mxu0 0.0
    %v510 = vand.u32 %v461, 4294901760
    %v511 = vsub.f32 %v461, %v510
    %v512 = vand.u32 %v511, 4294901760
    %v513 = vsub.f32 %v511, %v512
    %v514 = vand.u32 %v513, 4294901760
    %515 = vmatpush.msra.mxu0 %v514
    %v516 = vand.u32 %v460, 4294901760
    %v517 = vsub.f32 %v460, %v516
    %v518 = vand.u32 %v517, 4294901760
    %v519 = vsub.f32 %v517, %v518
    %v520 = vand.u32 %v519, 4294901760
    %521 = vmatpush.msra.mxu0 %v520
    %v522 = vand.u32 %v459, 4294901760
    %v523 = vsub.f32 %v459, %v522
    %v524 = vand.u32 %v523, 4294901760
    %v525 = vsub.f32 %v523, %v524
    %v526 = vand.u32 %v525, 4294901760
    %527 = vmatpush.msra.mxu0 %v526
    %v528 = vand.u32 %v458, 4294901760
    %v529 = vsub.f32 %v458, %v528
    %v530 = vand.u32 %v529, 4294901760
    %v531 = vsub.f32 %v529, %v530
    %v532 = vand.u32 %v531, 4294901760
    %533 = vmatpush.msra.mxu0 %v532
    %v534 = vand.u32 %v467, 4294901760
    %535 = vmatmul.f32.gmra.mxu0 %v534
    %v536 = vpop.f32.mrf.mxu0
    %v537 = vadd.f32 %v496, %v536
    %538 = vdwg.mxu0
    %539 = vmatpush.msra.mxu0 0.0
    %540 = vmatpush.msra.mxu0 0.0
    %541 = vmatpush.msra.mxu0 0.0
    %542 = vmatpush.msra.mxu0 0.0
    %543 = vmatpush.msra.mxu0 0.0
    %544 = vmatpush.msra.mxu0 0.0
    %545 = vmatpush.msra.mxu0 0.0
    %546 = vmatpush.msra.mxu0 0.0
    %547 = vmatpush.msra.mxu0 0.0
    %548 = vmatpush.msra.mxu0 0.0
    %549 = vmatpush.msra.mxu0 0.0
    %550 = vmatpush.msra.mxu0 0.0
    %v551 = vand.u32 %v461, 4294901760
    %v552 = vsub.f32 %v461, %v551
    %553 = vmatpush.msra.mxu0 %v552
    %v554 = vand.u32 %v460, 4294901760
    %v555 = vsub.f32 %v460, %v554
    %556 = vmatpush.msra.mxu0 %v555
    %v557 = vand.u32 %v459, 4294901760
    %v558 = vsub.f32 %v459, %v557
    %559 = vmatpush.msra.mxu0 %v558
    %v560 = vand.u32 %v458, 4294901760
    %v561 = vsub.f32 %v458, %v560
    %562 = vmatpush.msra.mxu0 %v561
    %v563 = vand.u32 %v467, 4294901760
    %v564 = vsub.f32 %v467, %v563
    %565 = vmatmul.f32.gmra.mxu0 %v564
    %v566 = vpop.f32.mrf.mxu0
    %v567 = vadd.f32 %v537, %v566
    %568 = vdwg.mxu0
    %569 = vmatpush.msra.mxu0 0.0
    %570 = vmatpush.msra.mxu0 0.0
    %571 = vmatpush.msra.mxu0 0.0
    %572 = vmatpush.msra.mxu0 0.0
    %573 = vmatpush.msra.mxu0 0.0
    %574 = vmatpush.msra.mxu0 0.0
    %575 = vmatpush.msra.mxu0 0.0
    %576 = vmatpush.msra.mxu0 0.0
    %577 = vmatpush.msra.mxu0 0.0
    %578 = vmatpush.msra.mxu0 0.0
    %579 = vmatpush.msra.mxu0 0.0
    %580 = vmatpush.msra.mxu0 0.0
    %v581 = vand.u32 %v461, 4294901760
    %582 = vmatpush.msra.mxu0 %v581
    %v583 = vand.u32 %v460, 4294901760
    %584 = vmatpush.msra.mxu0 %v583
    %v585 = vand.u32 %v459, 4294901760
    %586 = vmatpush.msra.mxu0 %v585
    %v587 = vand.u32 %v458, 4294901760
    %588 = vmatpush.msra.mxu0 %v587
    %v589 = vand.u32 %v467, 4294901760
    %v590 = vsub.f32 %v467, %v589
    %v591 = vand.u32 %v590, 4294901760
    %592 = vmatmul.f32.gmra.mxu0 %v591
    %v593 = vpop.f32.mrf.mxu0
    %v594 = vadd.f32 %v567, %v593
    %595 = vdwg.mxu0
    %596 = vmatpush.msra.mxu0 0.0
    %597 = vmatpush.msra.mxu0 0.0
    %598 = vmatpush.msra.mxu0 0.0
    %599 = vmatpush.msra.mxu0 0.0
    %600 = vmatpush.msra.mxu0 0.0
    %601 = vmatpush.msra.mxu0 0.0
    %602 = vmatpush.msra.mxu0 0.0
    %603 = vmatpush.msra.mxu0 0.0
    %604 = vmatpush.msra.mxu0 0.0
    %605 = vmatpush.msra.mxu0 0.0
    %606 = vmatpush.msra.mxu0 0.0
    %607 = vmatpush.msra.mxu0 0.0
    %v608 = vand.u32 %v461, 4294901760
    %v609 = vsub.f32 %v461, %v608
    %v610 = vand.u32 %v609, 4294901760
    %611 = vmatpush.msra.mxu0 %v610
    %v612 = vand.u32 %v460, 4294901760
    %v613 = vsub.f32 %v460, %v612
    %v614 = vand.u32 %v613, 4294901760
    %615 = vmatpush.msra.mxu0 %v614
    %v616 = vand.u32 %v459, 4294901760
    %v617 = vsub.f32 %v459, %v616
    %v618 = vand.u32 %v617, 4294901760
    %619 = vmatpush.msra.mxu0 %v618
    %v620 = vand.u32 %v458, 4294901760
    %v621 = vsub.f32 %v458, %v620
    %v622 = vand.u32 %v621, 4294901760
    %623 = vmatpush.msra.mxu0 %v622
    %v624 = vand.u32 %v467, 4294901760
    %625 = vmatmul.f32.gmra.mxu0 %v624
    %v626 = vpop.f32.mrf.mxu0
    %v627 = vadd.f32 %v594, %v626
    %628 = vdwg.mxu0
    %629 = vmatpush.msra.mxu0 0.0
    %630 = vmatpush.msra.mxu0 0.0
    %631 = vmatpush.msra.mxu0 0.0
    %632 = vmatpush.msra.mxu0 0.0
    %633 = vmatpush.msra.mxu0 0.0
    %634 = vmatpush.msra.mxu0 0.0
    %635 = vmatpush.msra.mxu0 0.0
    %636 = vmatpush.msra.mxu0 0.0
    %637 = vmatpush.msra.mxu0 0.0
    %638 = vmatpush.msra.mxu0 0.0
    %639 = vmatpush.msra.mxu0 0.0
    %640 = vmatpush.msra.mxu0 0.0
    %v641 = vand.u32 %v461, 4294901760
    %642 = vmatpush.msra.mxu0 %v641
    %v643 = vand.u32 %v460, 4294901760
    %644 = vmatpush.msra.mxu0 %v643
    %v645 = vand.u32 %v459, 4294901760
    %646 = vmatpush.msra.mxu0 %v645
    %v647 = vand.u32 %v458, 4294901760
    %648 = vmatpush.msra.mxu0 %v647
    %v649 = vand.u32 %v467, 4294901760
    %650 = vmatmul.f32.gmra.mxu0 %v649
    %v651 = vpop.f32.mrf.mxu0
    %v652 = vadd.f32 %v627, %v651
    %653 = vdwg.mxu0
    %v654 = vadd.f32 %v428, %v652
    %v655 = vsub.f32 0.0, %v654
    %v656 = vmul.f32 %v655, 1.442695
    %v657 = vpow.pop %v656
    %v658 = vadd.f32 %v657, 1.0
    %v659 = vrcp.pop %v658
    %v660 = vmul.f32 %v658, %v659
    %v661 = vsub.f32 1.0, %v660
    %v662 = vmul.f32 %v659, %v661
    %v663 = vadd.f32 %v659, %v662
    %vm664 = vweird.f32 %v658
    %vm665 = vweird.f32 %v659
    %vm666 = vmor %vm664, %vm665
    %v667 = vsel %vm666, %v659, %v663
    %v668 = vand.u32 2147483647, %v658
    %vm669 = vcmp.eq.f32.partialorder %v668, 8.507059e+37
    %v670 = vand.u32 %v658, 2147483648
    %v671 = vor.u32 1.1754944e-38, %v670
    %v672 = vsel %vm669, %v671, %v667
    %v673 = vmul.f32 1.0, %v672
    %v674 = vtanh.pop %v654
    %676 = vrot.lane.b32.xlu0 %v464, 32
    %v677 = vpop.permute.xlu0 %676
    %v679 = vmul.f32 %v673, %v677
    %681 = vrot.lane.b32.xlu0 %v674, 64
    %v682 = vpop.permute.xlu0 %681
    %v684 = vmul.f32 %v673, %v682
    %686 = vrot.lane.b32.xlu0 %v684, 32
    %v687 = vpop.permute.xlu0 %686
    %v689 = vadd.f32 %v679, %v687
    %v690 = vtanh.pop %v689
    %692 = vrot.lane.b32.xlu0 %v690, 64
    %v693 = vpop.permute.xlu0 %692
    %v695 = vmul.f32 %v673, %v693
    %vm696 = vcmp.gt.s32.totalorder %v462, 0
    %v697 = vsel %vm696, 1, 0
    %698 = vset.pattern.permute.xlu0 0
    %699 = vperm.xlu0 %698, %v697
    %v700 = vpop.permute.xlu0 %699
    %vm701 = vcmp.eq.s32.totalorder %v700, 1
    %v702 = vsel %vm701, %v695, 0.0
    %703 = vrot.lane.b32.xlu0 %v463, 96
    %v704 = vpop.permute.xlu0 %703
    %v706 = vsel %vm701, %v695, %v704
    %v707 = vsel %vm701, %v689, %v677
    %709 = vrot.lane.b32.xlu0 %v706, 32
    %v710 = vpop.permute.xlu0 %709
    %v711 = vsel %vm465, %v710, 0
    %713 = vmatpush.msra.mxu0 0.0
    %714 = vmatpush.msra.mxu0 0.0
    %715 = vmatpush.msra.mxu0 0.0
    %716 = vmatpush.msra.mxu0 0.0
    %717 = vmatpush.msra.mxu0 0.0
    %718 = vmatpush.msra.mxu0 0.0
    %719 = vmatpush.msra.mxu0 0.0
    %720 = vmatpush.msra.mxu0 0.0
    %721 = vmatpush.msra.mxu0 0.0
    %722 = vmatpush.msra.mxu0 0.0
    %723 = vmatpush.msra.mxu0 0.0
    %724 = vmatpush.msra.mxu0 0.0
    %v725 = vand.u32 %v461, 4294901760
    %726 = vmatpush.msra.mxu0 %v725
    %v727 = vand.u32 %v460, 4294901760
    %728 = vmatpush.msra.mxu0 %v727
    %v729 = vand.u32 %v459, 4294901760
    %730 = vmatpush.msra.mxu0 %v729
    %v731 = vand.u32 %v458, 4294901760
    %732 = vmatpush.msra.mxu0 %v731
    %v733 = vand.u32 %v711, 4294901760
    %v734 = vsub.f32 %v711, %v733
    %v735 = vand.u32 %v734, 4294901760
    %v736 = vsub.f32 %v734, %v735
    %v737 = vand.u32 %v736, 4294901760
    %738 = vmatmul.f32.gmra.mxu0 %v737
    %v739 = vpop.f32.mrf.mxu0
    %v740 = vadd.f32 0.0, %v739
    %741 = vdwg.mxu0
    %742 = vmatpush.msra.mxu0 0.0
    %743 = vmatpush.msra.mxu0 0.0
    %744 = vmatpush.msra.mxu0 0.0
    %745 = vmatpush.msra.mxu0 0.0
    %746 = vmatpush.msra.mxu0 0.0
    %747 = vmatpush.msra.mxu0 0.0
    %748 = vmatpush.msra.mxu0 0.0
    %749 = vmatpush.msra.mxu0 0.0
    %750 = vmatpush.msra.mxu0 0.0
    %751 = vmatpush.msra.mxu0 0.0
    %752 = vmatpush.msra.mxu0 0.0
    %753 = vmatpush.msra.mxu0 0.0
    %v754 = vand.u32 %v461, 4294901760
    %v755 = vsub.f32 %v461, %v754
    %v756 = vand.u32 %v755, 4294901760
    %v757 = vsub.f32 %v755, %v756
    %v758 = vand.u32 %v757, 4294901760
    %759 = vmatpush.msra.mxu0 %v758
    %v760 = vand.u32 %v460, 4294901760
    %v761 = vsub.f32 %v460, %v760
    %v762 = vand.u32 %v761, 4294901760
    %v763 = vsub.f32 %v761, %v762
    %v764 = vand.u32 %v763, 4294901760
    %765 = vmatpush.msra.mxu0 %v764
    %v766 = vand.u32 %v459, 4294901760
    %v767 = vsub.f32 %v459, %v766
    %v768 = vand.u32 %v767, 4294901760
    %v769 = vsub.f32 %v767, %v768
    %v770 = vand.u32 %v769, 4294901760
    %771 = vmatpush.msra.mxu0 %v770
    %v772 = vand.u32 %v458, 4294901760
    %v773 = vsub.f32 %v458, %v772
    %v774 = vand.u32 %v773, 4294901760
    %v775 = vsub.f32 %v773, %v774
    %v776 = vand.u32 %v775, 4294901760
    %777 = vmatpush.msra.mxu0 %v776
    %v778 = vand.u32 %v711, 4294901760
    %779 = vmatmul.f32.gmra.mxu0 %v778
    %v780 = vpop.f32.mrf.mxu0
    %v781 = vadd.f32 %v740, %v780
    %782 = vdwg.mxu0
    %783 = vmatpush.msra.mxu0 0.0
    %784 = vmatpush.msra.mxu0 0.0
    %785 = vmatpush.msra.mxu0 0.0
    %786 = vmatpush.msra.mxu0 0.0
    %787 = vmatpush.msra.mxu0 0.0
    %788 = vmatpush.msra.mxu0 0.0
    %789 = vmatpush.msra.mxu0 0.0
    %790 = vmatpush.msra.mxu0 0.0
    %791 = vmatpush.msra.mxu0 0.0
    %792 = vmatpush.msra.mxu0 0.0
    %793 = vmatpush.msra.mxu0 0.0
    %794 = vmatpush.msra.mxu0 0.0
    %v795 = vand.u32 %v461, 4294901760
    %v796 = vsub.f32 %v461, %v795
    %797 = vmatpush.msra.mxu0 %v796
    %v798 = vand.u32 %v460, 4294901760
    %v799 = vsub.f32 %v460, %v798
    %800 = vmatpush.msra.mxu0 %v799
    %v801 = vand.u32 %v459, 4294901760
    %v802 = vsub.f32 %v459, %v801
    %803 = vmatpush.msra.mxu0 %v802
    %v804 = vand.u32 %v458, 4294901760
    %v805 = vsub.f32 %v458, %v804
    %806 = vmatpush.msra.mxu0 %v805
    %v807 = vand.u32 %v711, 4294901760
    %v808 = vsub.f32 %v711, %v807
    %809 = vmatmul.f32.gmra.mxu0 %v808
    %v810 = vpop.f32.mrf.mxu0
    %v811 = vadd.f32 %v781, %v810
    %812 = vdwg.mxu0
    %813 = vmatpush.msra.mxu0 0.0
    %814 = vmatpush.msra.mxu0 0.0
    %815 = vmatpush.msra.mxu0 0.0
    %816 = vmatpush.msra.mxu0 0.0
    %817 = vmatpush.msra.mxu0 0.0
    %818 = vmatpush.msra.mxu0 0.0
    %819 = vmatpush.msra.mxu0 0.0
    %820 = vmatpush.msra.mxu0 0.0
    %821 = vmatpush.msra.mxu0 0.0
    %822 = vmatpush.msra.mxu0 0.0
    %823 = vmatpush.msra.mxu0 0.0
    %824 = vmatpush.msra.mxu0 0.0
    %v825 = vand.u32 %v461, 4294901760
    %826 = vmatpush.msra.mxu0 %v825
    %v827 = vand.u32 %v460, 4294901760
    %828 = vmatpush.msra.mxu0 %v827
    %v829 = vand.u32 %v459, 4294901760
    %830 = vmatpush.msra.mxu0 %v829
    %v831 = vand.u32 %v458, 4294901760
    %832 = vmatpush.msra.mxu0 %v831
    %v833 = vand.u32 %v711, 4294901760
    %v834 = vsub.f32 %v711, %v833
    %v835 = vand.u32 %v834, 4294901760
    %836 = vmatmul.f32.gmra.mxu0 %v835
    %v837 = vpop.f32.mrf.mxu0
    %v838 = vadd.f32 %v811, %v837
    %839 = vdwg.mxu0
    %840 = vmatpush.msra.mxu0 0.0
    %841 = vmatpush.msra.mxu0 0.0
    %842 = vmatpush.msra.mxu0 0.0
    %843 = vmatpush.msra.mxu0 0.0
    %844 = vmatpush.msra.mxu0 0.0
    %845 = vmatpush.msra.mxu0 0.0
    %846 = vmatpush.msra.mxu0 0.0
    %847 = vmatpush.msra.mxu0 0.0
    %848 = vmatpush.msra.mxu0 0.0
    %849 = vmatpush.msra.mxu0 0.0
    %850 = vmatpush.msra.mxu0 0.0
    %851 = vmatpush.msra.mxu0 0.0
    %v852 = vand.u32 %v461, 4294901760
    %v853 = vsub.f32 %v461, %v852
    %v854 = vand.u32 %v853, 4294901760
    %855 = vmatpush.msra.mxu0 %v854
    %v856 = vand.u32 %v460, 4294901760
    %v857 = vsub.f32 %v460, %v856
    %v858 = vand.u32 %v857, 4294901760
    %859 = vmatpush.msra.mxu0 %v858
    %v860 = vand.u32 %v459, 4294901760
    %v861 = vsub.f32 %v459, %v860
    %v862 = vand.u32 %v861, 4294901760
    %863 = vmatpush.msra.mxu0 %v862
    %v864 = vand.u32 %v458, 4294901760
    %v865 = vsub.f32 %v458, %v864
    %v866 = vand.u32 %v865, 4294901760
    %867 = vmatpush.msra.mxu0 %v866
    %v868 = vand.u32 %v711, 4294901760
    %869 = vmatmul.f32.gmra.mxu0 %v868
    %v870 = vpop.f32.mrf.mxu0
    %v871 = vadd.f32 %v838, %v870
    %872 = vdwg.mxu0
    %873 = vmatpush.msra.mxu0 0.0
    %874 = vmatpush.msra.mxu0 0.0
    %875 = vmatpush.msra.mxu0 0.0
    %876 = vmatpush.msra.mxu0 0.0
    %877 = vmatpush.msra.mxu0 0.0
    %878 = vmatpush.msra.mxu0 0.0
    %879 = vmatpush.msra.mxu0 0.0
    %880 = vmatpush.msra.mxu0 0.0
    %881 = vmatpush.msra.mxu0 0.0
    %882 = vmatpush.msra.mxu0 0.0
    %883 = vmatpush.msra.mxu0 0.0
    %884 = vmatpush.msra.mxu0 0.0
    %v885 = vand.u32 %v461, 4294901760
    %886 = vmatpush.msra.mxu0 %v885
    %v887 = vand.u32 %v460, 4294901760
    %888 = vmatpush.msra.mxu0 %v887
    %v889 = vand.u32 %v459, 4294901760
    %890 = vmatpush.msra.mxu0 %v889
    %v891 = vand.u32 %v458, 4294901760
    %892 = vmatpush.msra.mxu0 %v891
    %v893 = vand.u32 %v711, 4294901760
    %894 = vmatmul.f32.gmra.mxu0 %v893
    %v895 = vpop.f32.mrf.mxu0
    %v896 = vadd.f32 %v871, %v895
    %897 = vdwg.mxu0
    %v898 = vadd.f32 %v432, %v896
    %v899 = vsub.f32 0.0, %v898
    %v900 = vmul.f32 %v899, 1.442695
    %v901 = vpow.pop %v900
    %v902 = vadd.f32 %v901, 1.0
    %v903 = vrcp.pop %v902
    %v904 = vmul.f32 %v902, %v903
    %v905 = vsub.f32 1.0, %v904
    %v906 = vmul.f32 %v903, %v905
    %v907 = vadd.f32 %v903, %v906
    %vm908 = vweird.f32 %v902
    %vm909 = vweird.f32 %v903
    %vm910 = vmor %vm908, %vm909
    %v911 = vsel %vm910, %v903, %v907
    %v912 = vand.u32 2147483647, %v902
    %vm913 = vcmp.eq.f32.partialorder %v912, 8.507059e+37
    %v914 = vand.u32 %v902, 2147483648
    %v915 = vor.u32 1.1754944e-38, %v914
    %v916 = vsel %vm913, %v915, %v911
    %v917 = vmul.f32 1.0, %v916
    %v918 = vtanh.pop %v898
    %v919 = vmul.f32 %v917, %v707
    %921 = vrot.lane.b32.xlu0 %v918, 64
    %v922 = vpop.permute.xlu0 %921
    %v924 = vmul.f32 %v917, %v922
    %926 = vrot.lane.b32.xlu0 %v924, 32
    %v927 = vpop.permute.xlu0 %926
    %v929 = vadd.f32 %v919, %v927
    %v930 = vtanh.pop %v929
    %932 = vrot.lane.b32.xlu0 %v930, 64
    %v933 = vpop.permute.xlu0 %932
    %v935 = vmul.f32 %v917, %v933
    %vm936 = vcmp.gt.s32.totalorder %v462, 1
    %v937 = vsel %vm936, 1, 0
    %938 = vset.pattern.permute.xlu0 0
    %939 = vperm.xlu0 %938, %v937
    %v940 = vpop.permute.xlu0 %939
    %vm941 = vcmp.eq.s32.totalorder %v940, 1
    %v942 = vsel %vm941, %v935, 0.0
    %v943 = vsel %vm941, %v935, %v706
    %v944 = vsel %vm941, %v929, %v707
    %946 = vrot.lane.b32.xlu0 %v943, 32
    %v947 = vpop.permute.xlu0 %946
    %v948 = vsel %vm465, %v947, 0
    %950 = vmatpush.msra.mxu0 0.0
    %951 = vmatpush.msra.mxu0 0.0
    %952 = vmatpush.msra.mxu0 0.0
    %953 = vmatpush.msra.mxu0 0.0
    %954 = vmatpush.msra.mxu0 0.0
    %955 = vmatpush.msra.mxu0 0.0
    %956 = vmatpush.msra.mxu0 0.0
    %957 = vmatpush.msra.mxu0 0.0
    %958 = vmatpush.msra.mxu0 0.0
    %959 = vmatpush.msra.mxu0 0.0
    %960 = vmatpush.msra.mxu0 0.0
    %961 = vmatpush.msra.mxu0 0.0
    %v962 = vand.u32 %v461, 4294901760
    %963 = vmatpush.msra.mxu0 %v962
    %v964 = vand.u32 %v460, 4294901760
    %965 = vmatpush.msra.mxu0 %v964
    %v966 = vand.u32 %v459, 4294901760
    %967 = vmatpush.msra.mxu0 %v966
    %v968 = vand.u32 %v458, 4294901760
    %969 = vmatpush.msra.mxu0 %v968
    %v970 = vand.u32 %v948, 4294901760
    %v971 = vsub.f32 %v948, %v970
    %v972 = vand.u32 %v971, 4294901760
    %v973 = vsub.f32 %v971, %v972
    %v974 = vand.u32 %v973, 4294901760
    %975 = vmatmul.f32.gmra.mxu0 %v974
    %v976 = vpop.f32.mrf.mxu0
    %v977 = vadd.f32 0.0, %v976
    %978 = vdwg.mxu0
    %979 = vmatpush.msra.mxu0 0.0
    %980 = vmatpush.msra.mxu0 0.0
    %981 = vmatpush.msra.mxu0 0.0
    %982 = vmatpush.msra.mxu0 0.0
    %983 = vmatpush.msra.mxu0 0.0
    %984 = vmatpush.msra.mxu0 0.0
    %985 = vmatpush.msra.mxu0 0.0
    %986 = vmatpush.msra.mxu0 0.0
    %987 = vmatpush.msra.mxu0 0.0
    %988 = vmatpush.msra.mxu0 0.0
    %989 = vmatpush.msra.mxu0 0.0
    %990 = vmatpush.msra.mxu0 0.0
    %v991 = vand.u32 %v461, 4294901760
    %v992 = vsub.f32 %v461, %v991
    %v993 = vand.u32 %v992, 4294901760
    %v994 = vsub.f32 %v992, %v993
    %v995 = vand.u32 %v994, 4294901760
    %996 = vmatpush.msra.mxu0 %v995
    %v997 = vand.u32 %v460, 4294901760
    %v998 = vsub.f32 %v460, %v997
    %v999 = vand.u32 %v998, 4294901760
    %v1000 = vsub.f32 %v998, %v999
    %v1001 = vand.u32 %v1000, 4294901760
    %1002 = vmatpush.msra.mxu0 %v1001
    %v1003 = vand.u32 %v459, 4294901760
    %v1004 = vsub.f32 %v459, %v1003
    %v1005 = vand.u32 %v1004, 4294901760
    %v1006 = vsub.f32 %v1004, %v1005
    %v1007 = vand.u32 %v1006, 4294901760
    %1008 = vmatpush.msra.mxu0 %v1007
    %v1009 = vand.u32 %v458, 4294901760
    %v1010 = vsub.f32 %v458, %v1009
    %v1011 = vand.u32 %v1010, 4294901760
    %v1012 = vsub.f32 %v1010, %v1011
    %v1013 = vand.u32 %v1012, 4294901760
    %1014 = vmatpush.msra.mxu0 %v1013
    %v1015 = vand.u32 %v948, 4294901760
    %1016 = vmatmul.f32.gmra.mxu0 %v1015
    %v1017 = vpop.f32.mrf.mxu0
    %v1018 = vadd.f32 %v977, %v1017
    %1019 = vdwg.mxu0
    %1020 = vmatpush.msra.mxu0 0.0
    %1021 = vmatpush.msra.mxu0 0.0
    %1022 = vmatpush.msra.mxu0 0.0
    %1023 = vmatpush.msra.mxu0 0.0
    %1024 = vmatpush.msra.mxu0 0.0
    %1025 = vmatpush.msra.mxu0 0.0
    %1026 = vmatpush.msra.mxu0 0.0
    %1027 = vmatpush.msra.mxu0 0.0
    %1028 = vmatpush.msra.mxu0 0.0
    %1029 = vmatpush.msra.mxu0 0.0
    %1030 = vmatpush.msra.mxu0 0.0
    %1031 = vmatpush.msra.mxu0 0.0
    %v1032 = vand.u32 %v461, 4294901760
    %v1033 = vsub.f32 %v461, %v1032
    %1034 = vmatpush.msra.mxu0 %v1033
    %v1035 = vand.u32 %v460, 4294901760
    %v1036 = vsub.f32 %v460, %v1035
    %1037 = vmatpush.msra.mxu0 %v1036
    %v1038 = vand.u32 %v459, 4294901760
    %v1039 = vsub.f32 %v459, %v1038
    %1040 = vmatpush.msra.mxu0 %v1039
    %v1041 = vand.u32 %v458, 4294901760
    %v1042 = vsub.f32 %v458, %v1041
    %1043 = vmatpush.msra.mxu0 %v1042
    %v1044 = vand.u32 %v948, 4294901760
    %v1045 = vsub.f32 %v948, %v1044
    %1046 = vmatmul.f32.gmra.mxu0 %v1045
    %v1047 = vpop.f32.mrf.mxu0
    %v1048 = vadd.f32 %v1018, %v1047
    %1049 = vdwg.mxu0
    %1050 = vmatpush.msra.mxu0 0.0
    %1051 = vmatpush.msra.mxu0 0.0
    %1052 = vmatpush.msra.mxu0 0.0
    %1053 = vmatpush.msra.mxu0 0.0
    %1054 = vmatpush.msra.mxu0 0.0
    %1055 = vmatpush.msra.mxu0 0.0
    %1056 = vmatpush.msra.mxu0 0.0
    %1057 = vmatpush.msra.mxu0 0.0
    %1058 = vmatpush.msra.mxu0 0.0
    %1059 = vmatpush.msra.mxu0 0.0
    %1060 = vmatpush.msra.mxu0 0.0
    %1061 = vmatpush.msra.mxu0 0.0
    %v1062 = vand.u32 %v461, 4294901760
    %1063 = vmatpush.msra.mxu0 %v1062
    %v1064 = vand.u32 %v460, 4294901760
    %1065 = vmatpush.msra.mxu0 %v1064
    %v1066 = vand.u32 %v459, 4294901760
    %1067 = vmatpush.msra.mxu0 %v1066
    %v1068 = vand.u32 %v458, 4294901760
    %1069 = vmatpush.msra.mxu0 %v1068
    %v1070 = vand.u32 %v948, 4294901760
    %v1071 = vsub.f32 %v948, %v1070
    %v1072 = vand.u32 %v1071, 4294901760
    %1073 = vmatmul.f32.gmra.mxu0 %v1072
    %v1074 = vpop.f32.mrf.mxu0
    %v1075 = vadd.f32 %v1048, %v1074
    %1076 = vdwg.mxu0
    %1077 = vmatpush.msra.mxu0 0.0
    %1078 = vmatpush.msra.mxu0 0.0
    %1079 = vmatpush.msra.mxu0 0.0
    %1080 = vmatpush.msra.mxu0 0.0
    %1081 = vmatpush.msra.mxu0 0.0
    %1082 = vmatpush.msra.mxu0 0.0
    %1083 = vmatpush.msra.mxu0 0.0
    %1084 = vmatpush.msra.mxu0 0.0
    %1085 = vmatpush.msra.mxu0 0.0
    %1086 = vmatpush.msra.mxu0 0.0
    %1087 = vmatpush.msra.mxu0 0.0
    %1088 = vmatpush.msra.mxu0 0.0
    %v1089 = vand.u32 %v461, 4294901760
    %v1090 = vsub.f32 %v461, %v1089
    %v1091 = vand.u32 %v1090, 4294901760
    %1092 = vmatpush.msra.mxu0 %v1091
    %v1093 = vand.u32 %v460, 4294901760
    %v1094 = vsub.f32 %v460, %v1093
    %v1095 = vand.u32 %v1094, 4294901760
    %1096 = vmatpush.msra.mxu0 %v1095
    %v1097 = vand.u32 %v459, 4294901760
    %v1098 = vsub.f32 %v459, %v1097
    %v1099 = vand.u32 %v1098, 4294901760
    %1100 = vmatpush.msra.mxu0 %v1099
    %v1101 = vand.u32 %v458, 4294901760
    %v1102 = vsub.f32 %v458, %v1101
    %v1103 = vand.u32 %v1102, 4294901760
    %1104 = vmatpush.msra.mxu0 %v1103
    %v1105 = vand.u32 %v948, 4294901760
    %1106 = vmatmul.f32.gmra.mxu0 %v1105
    %v1107 = vpop.f32.mrf.mxu0
    %v1108 = vadd.f32 %v1075, %v1107
    %1109 = vdwg.mxu0
    %1110 = vmatpush.msra.mxu0 0.0
    %1111 = vmatpush.msra.mxu0 0.0
    %1112 = vmatpush.msra.mxu0 0.0
    %1113 = vmatpush.msra.mxu0 0.0
    %1114 = vmatpush.msra.mxu0 0.0
    %1115 = vmatpush.msra.mxu0 0.0
    %1116 = vmatpush.msra.mxu0 0.0
    %1117 = vmatpush.msra.mxu0 0.0
    %1118 = vmatpush.msra.mxu0 0.0
    %1119 = vmatpush.msra.mxu0 0.0
    %1120 = vmatpush.msra.mxu0 0.0
    %1121 = vmatpush.msra.mxu0 0.0
    %v1122 = vand.u32 %v461, 4294901760
    %1123 = vmatpush.msra.mxu0 %v1122
    %v1124 = vand.u32 %v460, 4294901760
    %1125 = vmatpush.msra.mxu0 %v1124
    %v1126 = vand.u32 %v459, 4294901760
    %1127 = vmatpush.msra.mxu0 %v1126
    %v1128 = vand.u32 %v458, 4294901760
    %1129 = vmatpush.msra.mxu0 %v1128
    %v1130 = vand.u32 %v948, 4294901760
    %1131 = vmatmul.f32.gmra.mxu0 %v1130
    %v1132 = vpop.f32.mrf.mxu0
    %v1133 = vadd.f32 %v1108, %v1132
    %1134 = vdwg.mxu0
    %v1135 = vadd.f32 %v436, %v1133
    %v1136 = vsub.f32 0.0, %v1135
    %v1137 = vmul.f32 %v1136, 1.442695
    %v1138 = vpow.pop %v1137
    %v1139 = vadd.f32 %v1138, 1.0
    %v1140 = vrcp.pop %v1139
    %v1141 = vmul.f32 %v1139, %v1140
    %v1142 = vsub.f32 1.0, %v1141
    %v1143 = vmul.f32 %v1140, %v1142
    %v1144 = vadd.f32 %v1140, %v1143
    %vm1145 = vweird.f32 %v1139
    %vm1146 = vweird.f32 %v1140
    %vm1147 = vmor %vm1145, %vm1146
    %v1148 = vsel %vm1147, %v1140, %v1144
    %v1149 = vand.u32 2147483647, %v1139
    %vm1150 = vcmp.eq.f32.partialorder %v1149, 8.507059e+37
    %v1151 = vand.u32 %v1139, 2147483648
    %v1152 = vor.u32 1.1754944e-38, %v1151
    %v1153 = vsel %vm1150, %v1152, %v1148
    %v1154 = vmul.f32 1.0, %v1153
    %v1155 = vtanh.pop %v1135
    %v1156 = vmul.f32 %v1154, %v944
    %1158 = vrot.lane.b32.xlu0 %v1155, 64
    %v1159 = vpop.permute.xlu0 %1158
    %v1161 = vmul.f32 %v1154, %v1159
    %1163 = vrot.lane.b32.xlu0 %v1161, 32
    %v1164 = vpop.permute.xlu0 %1163
    %v1166 = vadd.f32 %v1156, %v1164
    %v1167 = vtanh.pop %v1166
    %1169 = vrot.lane.b32.xlu0 %v1167, 64
    %v1170 = vpop.permute.xlu0 %1169
    %v1172 = vmul.f32 %v1154, %v1170
    %vm1173 = vcmp.gt.s32.totalorder %v462, 2
    %v1174 = vsel %vm1173, 1, 0
    %1175 = vset.pattern.permute.xlu0 0
    %1176 = vperm.xlu0 %1175, %v1174
    %v1177 = vpop.permute.xlu0 %1176
    %vm1178 = vcmp.eq.s32.totalorder %v1177, 1
    %v1179 = vsel %vm1178, %v1172, 0.0
    %v1180 = vsel %vm1178, %v1172, %v943
    %v1181 = vsel %vm1178, %v1166, %v944
    %1183 = vrot.lane.b32.xlu0 %v1180, 32
    %v1184 = vpop.permute.xlu0 %1183
    %v1185 = vsel %vm465, %v1184, 0
    %1187 = vmatpush.msra.mxu0 0.0
    %1188 = vmatpush.msra.mxu0 0.0
    %1189 = vmatpush.msra.mxu0 0.0
    %1190 = vmatpush.msra.mxu0 0.0
    %1191 = vmatpush.msra.mxu0 0.0
    %1192 = vmatpush.msra.mxu0 0.0
    %1193 = vmatpush.msra.mxu0 0.0
    %1194 = vmatpush.msra.mxu0 0.0
    %1195 = vmatpush.msra.mxu0 0.0
    %1196 = vmatpush.msra.mxu0 0.0
    %1197 = vmatpush.msra.mxu0 0.0
    %1198 = vmatpush.msra.mxu0 0.0
    %v1199 = vand.u32 %v461, 4294901760
    %1200 = vmatpush.msra.mxu0 %v1199
    %v1201 = vand.u32 %v460, 4294901760
    %1202 = vmatpush.msra.mxu0 %v1201
    %v1203 = vand.u32 %v459, 4294901760
    %1204 = vmatpush.msra.mxu0 %v1203
    %v1205 = vand.u32 %v458, 4294901760
    %1206 = vmatpush.msra.mxu0 %v1205
    %v1207 = vand.u32 %v1185, 4294901760
    %v1208 = vsub.f32 %v1185, %v1207
    %v1209 = vand.u32 %v1208, 4294901760
    %v1210 = vsub.f32 %v1208, %v1209
    %v1211 = vand.u32 %v1210, 4294901760
    %1212 = vmatmul.f32.gmra.mxu0 %v1211
    %v1213 = vpop.f32.mrf.mxu0
    %v1214 = vadd.f32 0.0, %v1213
    %1215 = vdwg.mxu0
    %1216 = vmatpush.msra.mxu0 0.0
    %1217 = vmatpush.msra.mxu0 0.0
    %1218 = vmatpush.msra.mxu0 0.0
    %1219 = vmatpush.msra.mxu0 0.0
    %1220 = vmatpush.msra.mxu0 0.0
    %1221 = vmatpush.msra.mxu0 0.0
    %1222 = vmatpush.msra.mxu0 0.0
    %1223 = vmatpush.msra.mxu0 0.0
    %1224 = vmatpush.msra.mxu0 0.0
    %1225 = vmatpush.msra.mxu0 0.0
    %1226 = vmatpush.msra.mxu0 0.0
    %1227 = vmatpush.msra.mxu0 0.0
    %v1228 = vand.u32 %v461, 4294901760
    %v1229 = vsub.f32 %v461, %v1228
    %v1230 = vand.u32 %v1229, 4294901760
    %v1231 = vsub.f32 %v1229, %v1230
    %v1232 = vand.u32 %v1231, 4294901760
    %1233 = vmatpush.msra.mxu0 %v1232
    %v1234 = vand.u32 %v460, 4294901760
    %v1235 = vsub.f32 %v460, %v1234
    %v1236 = vand.u32 %v1235, 4294901760
    %v1237 = vsub.f32 %v1235, %v1236
    %v1238 = vand.u32 %v1237, 4294901760
    %1239 = vmatpush.msra.mxu0 %v1238
    %v1240 = vand.u32 %v459, 4294901760
    %v1241 = vsub.f32 %v459, %v1240
    %v1242 = vand.u32 %v1241, 4294901760
    %v1243 = vsub.f32 %v1241, %v1242
    %v1244 = vand.u32 %v1243, 4294901760
    %1245 = vmatpush.msra.mxu0 %v1244
    %v1246 = vand.u32 %v458, 4294901760
    %v1247 = vsub.f32 %v458, %v1246
    %v1248 = vand.u32 %v1247, 4294901760
    %v1249 = vsub.f32 %v1247, %v1248
    %v1250 = vand.u32 %v1249, 4294901760
    %1251 = vmatpush.msra.mxu0 %v1250
    %v1252 = vand.u32 %v1185, 4294901760
    %1253 = vmatmul.f32.gmra.mxu0 %v1252
    %v1254 = vpop.f32.mrf.mxu0
    %v1255 = vadd.f32 %v1214, %v1254
    %1256 = vdwg.mxu0
    %1257 = vmatpush.msra.mxu0 0.0
    %1258 = vmatpush.msra.mxu0 0.0
    %1259 = vmatpush.msra.mxu0 0.0
    %1260 = vmatpush.msra.mxu0 0.0
    %1261 = vmatpush.msra.mxu0 0.0
    %1262 = vmatpush.msra.mxu0 0.0
    %1263 = vmatpush.msra.mxu0 0.0
    %1264 = vmatpush.msra.mxu0 0.0
    %1265 = vmatpush.msra.mxu0 0.0
    %1266 = vmatpush.msra.mxu0 0.0
    %1267 = vmatpush.msra.mxu0 0.0
    %1268 = vmatpush.msra.mxu0 0.0
    %v1269 = vand.u32 %v461, 4294901760
    %v1270 = vsub.f32 %v461, %v1269
    %1271 = vmatpush.msra.mxu0 %v1270
    %v1272 = vand.u32 %v460, 4294901760
    %v1273 = vsub.f32 %v460, %v1272
    %1274 = vmatpush.msra.mxu0 %v1273
    %v1275 = vand.u32 %v459, 4294901760
    %v1276 = vsub.f32 %v459, %v1275
    %1277 = vmatpush.msra.mxu0 %v1276
    %v1278 = vand.u32 %v458, 4294901760
    %v1279 = vsub.f32 %v458, %v1278
    %1280 = vmatpush.msra.mxu0 %v1279
    %v1281 = vand.u32 %v1185, 4294901760
    %v1282 = vsub.f32 %v1185, %v1281
    %1283 = vmatmul.f32.gmra.mxu0 %v1282
    %v1284 = vpop.f32.mrf.mxu0
    %v1285 = vadd.f32 %v1255, %v1284
    %1286 = vdwg.mxu0
    %1287 = vmatpush.msra.mxu0 0.0
    %1288 = vmatpush.msra.mxu0 0.0
    %1289 = vmatpush.msra.mxu0 0.0
    %1290 = vmatpush.msra.mxu0 0.0
    %1291 = vmatpush.msra.mxu0 0.0
    %1292 = vmatpush.msra.mxu0 0.0
    %1293 = vmatpush.msra.mxu0 0.0
    %1294 = vmatpush.msra.mxu0 0.0
    %1295 = vmatpush.msra.mxu0 0.0
    %1296 = vmatpush.msra.mxu0 0.0
    %1297 = vmatpush.msra.mxu0 0.0
    %1298 = vmatpush.msra.mxu0 0.0
    %v1299 = vand.u32 %v461, 4294901760
    %1300 = vmatpush.msra.mxu0 %v1299
    %v1301 = vand.u32 %v460, 4294901760
    %1302 = vmatpush.msra.mxu0 %v1301
    %v1303 = vand.u32 %v459, 4294901760
    %1304 = vmatpush.msra.mxu0 %v1303
    %v1305 = vand.u32 %v458, 4294901760
    %1306 = vmatpush.msra.mxu0 %v1305
    %v1307 = vand.u32 %v1185, 4294901760
    %v1308 = vsub.f32 %v1185, %v1307
    %v1309 = vand.u32 %v1308, 4294901760
    %1310 = vmatmul.f32.gmra.mxu0 %v1309
    %v1311 = vpop.f32.mrf.mxu0
    %v1312 = vadd.f32 %v1285, %v1311
    %1313 = vdwg.mxu0
    %1314 = vmatpush.msra.mxu0 0.0
    %1315 = vmatpush.msra.mxu0 0.0
    %1316 = vmatpush.msra.mxu0 0.0
    %1317 = vmatpush.msra.mxu0 0.0
    %1318 = vmatpush.msra.mxu0 0.0
    %1319 = vmatpush.msra.mxu0 0.0
    %1320 = vmatpush.msra.mxu0 0.0
    %1321 = vmatpush.msra.mxu0 0.0
    %1322 = vmatpush.msra.mxu0 0.0
    %1323 = vmatpush.msra.mxu0 0.0
    %1324 = vmatpush.msra.mxu0 0.0
    %1325 = vmatpush.msra.mxu0 0.0
    %v1326 = vand.u32 %v461, 4294901760
    %v1327 = vsub.f32 %v461, %v1326
    %v1328 = vand.u32 %v1327, 4294901760
    %1329 = vmatpush.msra.mxu0 %v1328
    %v1330 = vand.u32 %v460, 4294901760
    %v1331 = vsub.f32 %v460, %v1330
    %v1332 = vand.u32 %v1331, 4294901760
    %1333 = vmatpush.msra.mxu0 %v1332
    %v1334 = vand.u32 %v459, 4294901760
    %v1335 = vsub.f32 %v459, %v1334
    %v1336 = vand.u32 %v1335, 4294901760
    %1337 = vmatpush.msra.mxu0 %v1336
    %v1338 = vand.u32 %v458, 4294901760
    %v1339 = vsub.f32 %v458, %v1338
    %v1340 = vand.u32 %v1339, 4294901760
    %1341 = vmatpush.msra.mxu0 %v1340
    %v1342 = vand.u32 %v1185, 4294901760
    %1343 = vmatmul.f32.gmra.mxu0 %v1342
    %v1344 = vpop.f32.mrf.mxu0
    %v1345 = vadd.f32 %v1312, %v1344
    %1346 = vdwg.mxu0
    %1347 = vmatpush.msra.mxu0 0.0
    %1348 = vmatpush.msra.mxu0 0.0
    %1349 = vmatpush.msra.mxu0 0.0
    %1350 = vmatpush.msra.mxu0 0.0
    %1351 = vmatpush.msra.mxu0 0.0
    %1352 = vmatpush.msra.mxu0 0.0
    %1353 = vmatpush.msra.mxu0 0.0
    %1354 = vmatpush.msra.mxu0 0.0
    %1355 = vmatpush.msra.mxu0 0.0
    %1356 = vmatpush.msra.mxu0 0.0
    %1357 = vmatpush.msra.mxu0 0.0
    %1358 = vmatpush.msra.mxu0 0.0
    %v1359 = vand.u32 %v461, 4294901760
    %1360 = vmatpush.msra.mxu0 %v1359
    %v1361 = vand.u32 %v460, 4294901760
    %1362 = vmatpush.msra.mxu0 %v1361
    %v1363 = vand.u32 %v459, 4294901760
    %1364 = vmatpush.msra.mxu0 %v1363
    %v1365 = vand.u32 %v458, 4294901760
    %1366 = vmatpush.msra.mxu0 %v1365
    %v1367 = vand.u32 %v1185, 4294901760
    %1368 = vmatmul.f32.gmra.mxu0 %v1367
    %v1369 = vpop.f32.mrf.mxu0
    %v1370 = vadd.f32 %v1345, %v1369
    %1371 = vdwg.mxu0
    %v1372 = vadd.f32 %v440, %v1370
    %v1373 = vsub.f32 0.0, %v1372
    %v1374 = vmul.f32 %v1373, 1.442695
    %v1375 = vpow.pop %v1374
    %v1376 = vadd.f32 %v1375, 1.0
    %v1377 = vrcp.pop %v1376
    %v1378 = vmul.f32 %v1376, %v1377
    %v1379 = vsub.f32 1.0, %v1378
    %v1380 = vmul.f32 %v1377, %v1379
    %v1381 = vadd.f32 %v1377, %v1380
    %vm1382 = vweird.f32 %v1376
    %vm1383 = vweird.f32 %v1377
    %vm1384 = vmor %vm1382, %vm1383
    %v1385 = vsel %vm1384, %v1377, %v1381
    %v1386 = vand.u32 2147483647, %v1376
    %vm1387 = vcmp.eq.f32.partialorder %v1386, 8.507059e+37
    %v1388 = vand.u32 %v1376, 2147483648
    %v1389 = vor.u32 1.1754944e-38, %v1388
    %v1390 = vsel %vm1387, %v1389, %v1385
    %v1391 = vmul.f32 1.0, %v1390
    %v1392 = vtanh.pop %v1372
    %v1393 = vmul.f32 %v1391, %v1181
    %1395 = vrot.lane.b32.xlu0 %v1392, 64
    %v1396 = vpop.permute.xlu0 %1395
    %v1398 = vmul.f32 %v1391, %v1396
    %1400 = vrot.lane.b32.xlu0 %v1398, 32
    %v1401 = vpop.permute.xlu0 %1400
    %v1403 = vadd.f32 %v1393, %v1401
    %v1404 = vtanh.pop %v1403
    %1406 = vrot.lane.b32.xlu0 %v1404, 64
    %v1407 = vpop.permute.xlu0 %1406
    %v1409 = vmul.f32 %v1391, %v1407
    %vm1410 = vcmp.gt.s32.totalorder %v462, 3
    %v1411 = vsel %vm1410, 1, 0
    %1412 = vset.pattern.permute.xlu0 0
    %1413 = vperm.xlu0 %1412, %v1411
    %v1414 = vpop.permute.xlu0 %1413
    %vm1415 = vcmp.eq.s32.totalorder %v1414, 1
    %v1416 = vsel %vm1415, %v1409, 0.0
    %v1417 = vsel %vm1415, %v1409, %v1180
    %v1418 = vsel %vm1415, %v1403, %v1181
    %1420 = vrot.lane.b32.xlu0 %v1417, 32
    %v1421 = vpop.permute.xlu0 %1420
    %v1422 = vsel %vm465, %v1421, 0
    %1424 = vmatpush.msra.mxu0 0.0
    %1425 = vmatpush.msra.mxu0 0.0
    %1426 = vmatpush.msra.mxu0 0.0
    %1427 = vmatpush.msra.mxu0 0.0
    %1428 = vmatpush.msra.mxu0 0.0
    %1429 = vmatpush.msra.mxu0 0.0
    %1430 = vmatpush.msra.mxu0 0.0
    %1431 = vmatpush.msra.mxu0 0.0
    %1432 = vmatpush.msra.mxu0 0.0
    %1433 = vmatpush.msra.mxu0 0.0
    %1434 = vmatpush.msra.mxu0 0.0
    %1435 = vmatpush.msra.mxu0 0.0
    %v1436 = vand.u32 %v461, 4294901760
    %1437 = vmatpush.msra.mxu0 %v1436
    %v1438 = vand.u32 %v460, 4294901760
    %1439 = vmatpush.msra.mxu0 %v1438
    %v1440 = vand.u32 %v459, 4294901760
    %1441 = vmatpush.msra.mxu0 %v1440
    %v1442 = vand.u32 %v458, 4294901760
    %1443 = vmatpush.msra.mxu0 %v1442
    %v1444 = vand.u32 %v1422, 4294901760
    %v1445 = vsub.f32 %v1422, %v1444
    %v1446 = vand.u32 %v1445, 4294901760
    %v1447 = vsub.f32 %v1445, %v1446
    %v1448 = vand.u32 %v1447, 4294901760
    %1449 = vmatmul.f32.gmra.mxu0 %v1448
    %v1450 = vpop.f32.mrf.mxu0
    %v1451 = vadd.f32 0.0, %v1450
    %1452 = vdwg.mxu0
    %1453 = vmatpush.msra.mxu0 0.0
    %1454 = vmatpush.msra.mxu0 0.0
    %1455 = vmatpush.msra.mxu0 0.0
    %1456 = vmatpush.msra.mxu0 0.0
    %1457 = vmatpush.msra.mxu0 0.0
    %1458 = vmatpush.msra.mxu0 0.0
    %1459 = vmatpush.msra.mxu0 0.0
    %1460 = vmatpush.msra.mxu0 0.0
    %1461 = vmatpush.msra.mxu0 0.0
    %1462 = vmatpush.msra.mxu0 0.0
    %1463 = vmatpush.msra.mxu0 0.0
    %1464 = vmatpush.msra.mxu0 0.0
    %v1465 = vand.u32 %v461, 4294901760
    %v1466 = vsub.f32 %v461, %v1465
    %v1467 = vand.u32 %v1466, 4294901760
    %v1468 = vsub.f32 %v1466, %v1467
    %v1469 = vand.u32 %v1468, 4294901760
    %1470 = vmatpush.msra.mxu0 %v1469
    %v1471 = vand.u32 %v460, 4294901760
    %v1472 = vsub.f32 %v460, %v1471
    %v1473 = vand.u32 %v1472, 4294901760
    %v1474 = vsub.f32 %v1472, %v1473
    %v1475 = vand.u32 %v1474, 4294901760
    %1476 = vmatpush.msra.mxu0 %v1475
    %v1477 = vand.u32 %v459, 4294901760
    %v1478 = vsub.f32 %v459, %v1477
    %v1479 = vand.u32 %v1478, 4294901760
    %v1480 = vsub.f32 %v1478, %v1479
    %v1481 = vand.u32 %v1480, 4294901760
    %1482 = vmatpush.msra.mxu0 %v1481
    %v1483 = vand.u32 %v458, 4294901760
    %v1484 = vsub.f32 %v458, %v1483
    %v1485 = vand.u32 %v1484, 4294901760
    %v1486 = vsub.f32 %v1484, %v1485
    %v1487 = vand.u32 %v1486, 4294901760
    %1488 = vmatpush.msra.mxu0 %v1487
    %v1489 = vand.u32 %v1422, 4294901760
    %1490 = vmatmul.f32.gmra.mxu0 %v1489
    %v1491 = vpop.f32.mrf.mxu0
    %v1492 = vadd.f32 %v1451, %v1491
    %1493 = vdwg.mxu0
    %1494 = vmatpush.msra.mxu0 0.0
    %1495 = vmatpush.msra.mxu0 0.0
    %1496 = vmatpush.msra.mxu0 0.0
    %1497 = vmatpush.msra.mxu0 0.0
    %1498 = vmatpush.msra.mxu0 0.0
    %1499 = vmatpush.msra.mxu0 0.0
    %1500 = vmatpush.msra.mxu0 0.0
    %1501 = vmatpush.msra.mxu0 0.0
    %1502 = vmatpush.msra.mxu0 0.0
    %1503 = vmatpush.msra.mxu0 0.0
    %1504 = vmatpush.msra.mxu0 0.0
    %1505 = vmatpush.msra.mxu0 0.0
    %v1506 = vand.u32 %v461, 4294901760
    %v1507 = vsub.f32 %v461, %v1506
    %1508 = vmatpush.msra.mxu0 %v1507
    %v1509 = vand.u32 %v460, 4294901760
    %v1510 = vsub.f32 %v460, %v1509
    %1511 = vmatpush.msra.mxu0 %v1510
    %v1512 = vand.u32 %v459, 4294901760
    %v1513 = vsub.f32 %v459, %v1512
    %1514 = vmatpush.msra.mxu0 %v1513
    %v1515 = vand.u32 %v458, 4294901760
    %v1516 = vsub.f32 %v458, %v1515
    %1517 = vmatpush.msra.mxu0 %v1516
    %v1518 = vand.u32 %v1422, 4294901760
    %v1519 = vsub.f32 %v1422, %v1518
    %1520 = vmatmul.f32.gmra.mxu0 %v1519
    %v1521 = vpop.f32.mrf.mxu0
    %v1522 = vadd.f32 %v1492, %v1521
    %1523 = vdwg.mxu0
    %1524 = vmatpush.msra.mxu0 0.0
    %1525 = vmatpush.msra.mxu0 0.0
    %1526 = vmatpush.msra.mxu0 0.0
    %1527 = vmatpush.msra.mxu0 0.0
    %1528 = vmatpush.msra.mxu0 0.0
    %1529 = vmatpush.msra.mxu0 0.0
    %1530 = vmatpush.msra.mxu0 0.0
    %1531 = vmatpush.msra.mxu0 0.0
    %1532 = vmatpush.msra.mxu0 0.0
    %1533 = vmatpush.msra.mxu0 0.0
    %1534 = vmatpush.msra.mxu0 0.0
    %1535 = vmatpush.msra.mxu0 0.0
    %v1536 = vand.u32 %v461, 4294901760
    %1537 = vmatpush.msra.mxu0 %v1536
    %v1538 = vand.u32 %v460, 4294901760
    %1539 = vmatpush.msra.mxu0 %v1538
    %v1540 = vand.u32 %v459, 4294901760
    %1541 = vmatpush.msra.mxu0 %v1540
    %v1542 = vand.u32 %v458, 4294901760
    %1543 = vmatpush.msra.mxu0 %v1542
    %v1544 = vand.u32 %v1422, 4294901760
    %v1545 = vsub.f32 %v1422, %v1544
    %v1546 = vand.u32 %v1545, 4294901760
    %1547 = vmatmul.f32.gmra.mxu0 %v1546
    %v1548 = vpop.f32.mrf.mxu0
    %v1549 = vadd.f32 %v1522, %v1548
    %1550 = vdwg.mxu0
    %1551 = vmatpush.msra.mxu0 0.0
    %1552 = vmatpush.msra.mxu0 0.0
    %1553 = vmatpush.msra.mxu0 0.0
    %1554 = vmatpush.msra.mxu0 0.0
    %1555 = vmatpush.msra.mxu0 0.0
    %1556 = vmatpush.msra.mxu0 0.0
    %1557 = vmatpush.msra.mxu0 0.0
    %1558 = vmatpush.msra.mxu0 0.0
    %1559 = vmatpush.msra.mxu0 0.0
    %1560 = vmatpush.msra.mxu0 0.0
    %1561 = vmatpush.msra.mxu0 0.0
    %1562 = vmatpush.msra.mxu0 0.0
    %v1563 = vand.u32 %v461, 4294901760
    %v1564 = vsub.f32 %v461, %v1563
    %v1565 = vand.u32 %v1564, 4294901760
    %1566 = vmatpush.msra.mxu0 %v1565
    %v1567 = vand.u32 %v460, 4294901760
    %v1568 = vsub.f32 %v460, %v1567
    %v1569 = vand.u32 %v1568, 4294901760
    %1570 = vmatpush.msra.mxu0 %v1569
    %v1571 = vand.u32 %v459, 4294901760
    %v1572 = vsub.f32 %v459, %v1571
    %v1573 = vand.u32 %v1572, 4294901760
    %1574 = vmatpush.msra.mxu0 %v1573
    %v1575 = vand.u32 %v458, 4294901760
    %v1576 = vsub.f32 %v458, %v1575
    %v1577 = vand.u32 %v1576, 4294901760
    %1578 = vmatpush.msra.mxu0 %v1577
    %v1579 = vand.u32 %v1422, 4294901760
    %1580 = vmatmul.f32.gmra.mxu0 %v1579
    %v1581 = vpop.f32.mrf.mxu0
    %v1582 = vadd.f32 %v1549, %v1581
    %1583 = vdwg.mxu0
    %1584 = vmatpush.msra.mxu0 0.0
    %1585 = vmatpush.msra.mxu0 0.0
    %1586 = vmatpush.msra.mxu0 0.0
    %1587 = vmatpush.msra.mxu0 0.0
    %1588 = vmatpush.msra.mxu0 0.0
    %1589 = vmatpush.msra.mxu0 0.0
    %1590 = vmatpush.msra.mxu0 0.0
    %1591 = vmatpush.msra.mxu0 0.0
    %1592 = vmatpush.msra.mxu0 0.0
    %1593 = vmatpush.msra.mxu0 0.0
    %1594 = vmatpush.msra.mxu0 0.0
    %1595 = vmatpush.msra.mxu0 0.0
    %v1596 = vand.u32 %v461, 4294901760
    %1597 = vmatpush.msra.mxu0 %v1596
    %v1598 = vand.u32 %v460, 4294901760
    %1599 = vmatpush.msra.mxu0 %v1598
    %v1600 = vand.u32 %v459, 4294901760
    %1601 = vmatpush.msra.mxu0 %v1600
    %v1602 = vand.u32 %v458, 4294901760
    %1603 = vmatpush.msra.mxu0 %v1602
    %v1604 = vand.u32 %v1422, 4294901760
    %1605 = vmatmul.f32.gmra.mxu0 %v1604
    %v1606 = vpop.f32.mrf.mxu0
    %v1607 = vadd.f32 %v1582, %v1606
    %1608 = vdwg.mxu0
    %v1609 = vadd.f32 %v444, %v1607
    %v1610 = vsub.f32 0.0, %v1609
    %v1611 = vmul.f32 %v1610, 1.442695
    %v1612 = vpow.pop %v1611
    %v1613 = vadd.f32 %v1612, 1.0
    %v1614 = vrcp.pop %v1613
    %v1615 = vmul.f32 %v1613, %v1614
    %v1616 = vsub.f32 1.0, %v1615
    %v1617 = vmul.f32 %v1614, %v1616
    %v1618 = vadd.f32 %v1614, %v1617
    %vm1619 = vweird.f32 %v1613
    %vm1620 = vweird.f32 %v1614
    %vm1621 = vmor %vm1619, %vm1620
    %v1622 = vsel %vm1621, %v1614, %v1618
    %v1623 = vand.u32 2147483647, %v1613
    %vm1624 = vcmp.eq.f32.partialorder %v1623, 8.507059e+37
    %v1625 = vand.u32 %v1613, 2147483648
    %v1626 = vor.u32 1.1754944e-38, %v1625
    %v1627 = vsel %vm1624, %v1626, %v1622
    %v1628 = vmul.f32 1.0, %v1627
    %v1629 = vtanh.pop %v1609
    %v1630 = vmul.f32 %v1628, %v1418
    %1632 = vrot.lane.b32.xlu0 %v1629, 64
    %v1633 = vpop.permute.xlu0 %1632
    %v1635 = vmul.f32 %v1628, %v1633
    %1637 = vrot.lane.b32.xlu0 %v1635, 32
    %v1638 = vpop.permute.xlu0 %1637
    %v1640 = vadd.f32 %v1630, %v1638
    %v1641 = vtanh.pop %v1640
    %1643 = vrot.lane.b32.xlu0 %v1641, 64
    %v1644 = vpop.permute.xlu0 %1643
    %v1646 = vmul.f32 %v1628, %v1644
    %vm1647 = vcmp.gt.s32.totalorder %v462, 4
    %v1648 = vsel %vm1647, 1, 0
    %1649 = vset.pattern.permute.xlu0 0
    %1650 = vperm.xlu0 %1649, %v1648
    %v1651 = vpop.permute.xlu0 %1650
    %vm1652 = vcmp.eq.s32.totalorder %v1651, 1
    %v1653 = vsel %vm1652, %v1646, 0.0
    %v1654 = vsel %vm1652, %v1646, %v1417
    %v1655 = vsel %vm1652, %v1640, %v1418
    %1657 = vrot.lane.b32.xlu0 %v1654, 32
    %v1658 = vpop.permute.xlu0 %1657
    %v1659 = vsel %vm465, %v1658, 0
    %1661 = vmatpush.msra.mxu0 0.0
    %1662 = vmatpush.msra.mxu0 0.0
    %1663 = vmatpush.msra.mxu0 0.0
    %1664 = vmatpush.msra.mxu0 0.0
    %1665 = vmatpush.msra.mxu0 0.0
    %1666 = vmatpush.msra.mxu0 0.0
    %1667 = vmatpush.msra.mxu0 0.0
    %1668 = vmatpush.msra.mxu0 0.0
    %1669 = vmatpush.msra.mxu0 0.0
    %1670 = vmatpush.msra.mxu0 0.0
    %1671 = vmatpush.msra.mxu0 0.0
    %1672 = vmatpush.msra.mxu0 0.0
    %v1673 = vand.u32 %v461, 4294901760
    %1674 = vmatpush.msra.mxu0 %v1673
    %v1675 = vand.u32 %v460, 4294901760
    %1676 = vmatpush.msra.mxu0 %v1675
    %v1677 = vand.u32 %v459, 4294901760
    %1678 = vmatpush.msra.mxu0 %v1677
    %v1679 = vand.u32 %v458, 4294901760
    %1680 = vmatpush.msra.mxu0 %v1679
    %v1681 = vand.u32 %v1659, 4294901760
    %v1682 = vsub.f32 %v1659, %v1681
    %v1683 = vand.u32 %v1682, 4294901760
    %v1684 = vsub.f32 %v1682, %v1683
    %v1685 = vand.u32 %v1684, 4294901760
    %1686 = vmatmul.f32.gmra.mxu0 %v1685
    %v1687 = vpop.f32.mrf.mxu0
    %v1688 = vadd.f32 0.0, %v1687
    %1689 = vdwg.mxu0
    %1690 = vmatpush.msra.mxu0 0.0
    %1691 = vmatpush.msra.mxu0 0.0
    %1692 = vmatpush.msra.mxu0 0.0
    %1693 = vmatpush.msra.mxu0 0.0
    %1694 = vmatpush.msra.mxu0 0.0
    %1695 = vmatpush.msra.mxu0 0.0
    %1696 = vmatpush.msra.mxu0 0.0
    %1697 = vmatpush.msra.mxu0 0.0
    %1698 = vmatpush.msra.mxu0 0.0
    %1699 = vmatpush.msra.mxu0 0.0
    %1700 = vmatpush.msra.mxu0 0.0
    %1701 = vmatpush.msra.mxu0 0.0
    %v1702 = vand.u32 %v461, 4294901760
    %v1703 = vsub.f32 %v461, %v1702
    %v1704 = vand.u32 %v1703, 4294901760
    %v1705 = vsub.f32 %v1703, %v1704
    %v1706 = vand.u32 %v1705, 4294901760
    %1707 = vmatpush.msra.mxu0 %v1706
    %v1708 = vand.u32 %v460, 4294901760
    %v1709 = vsub.f32 %v460, %v1708
    %v1710 = vand.u32 %v1709, 4294901760
    %v1711 = vsub.f32 %v1709, %v1710
    %v1712 = vand.u32 %v1711, 4294901760
    %1713 = vmatpush.msra.mxu0 %v1712
    %v1714 = vand.u32 %v459, 4294901760
    %v1715 = vsub.f32 %v459, %v1714
    %v1716 = vand.u32 %v1715, 4294901760
    %v1717 = vsub.f32 %v1715, %v1716
    %v1718 = vand.u32 %v1717, 4294901760
    %1719 = vmatpush.msra.mxu0 %v1718
    %v1720 = vand.u32 %v458, 4294901760
    %v1721 = vsub.f32 %v458, %v1720
    %v1722 = vand.u32 %v1721, 4294901760
    %v1723 = vsub.f32 %v1721, %v1722
    %v1724 = vand.u32 %v1723, 4294901760
    %1725 = vmatpush.msra.mxu0 %v1724
    %v1726 = vand.u32 %v1659, 4294901760
    %1727 = vmatmul.f32.gmra.mxu0 %v1726
    %v1728 = vpop.f32.mrf.mxu0
    %v1729 = vadd.f32 %v1688, %v1728
    %1730 = vdwg.mxu0
    %1731 = vmatpush.msra.mxu0 0.0
    %1732 = vmatpush.msra.mxu0 0.0
    %1733 = vmatpush.msra.mxu0 0.0
    %1734 = vmatpush.msra.mxu0 0.0
    %1735 = vmatpush.msra.mxu0 0.0
    %1736 = vmatpush.msra.mxu0 0.0
    %1737 = vmatpush.msra.mxu0 0.0
    %1738 = vmatpush.msra.mxu0 0.0
    %1739 = vmatpush.msra.mxu0 0.0
    %1740 = vmatpush.msra.mxu0 0.0
    %1741 = vmatpush.msra.mxu0 0.0
    %1742 = vmatpush.msra.mxu0 0.0
    %v1743 = vand.u32 %v461, 4294901760
    %v1744 = vsub.f32 %v461, %v1743
    %1745 = vmatpush.msra.mxu0 %v1744
    %v1746 = vand.u32 %v460, 4294901760
    %v1747 = vsub.f32 %v460, %v1746
    %1748 = vmatpush.msra.mxu0 %v1747
    %v1749 = vand.u32 %v459, 4294901760
    %v1750 = vsub.f32 %v459, %v1749
    %1751 = vmatpush.msra.mxu0 %v1750
    %v1752 = vand.u32 %v458, 4294901760
    %v1753 = vsub.f32 %v458, %v1752
    %1754 = vmatpush.msra.mxu0 %v1753
    %v1755 = vand.u32 %v1659, 4294901760
    %v1756 = vsub.f32 %v1659, %v1755
    %1757 = vmatmul.f32.gmra.mxu0 %v1756
    %v1758 = vpop.f32.mrf.mxu0
    %v1759 = vadd.f32 %v1729, %v1758
    %1760 = vdwg.mxu0
    %1761 = vmatpush.msra.mxu0 0.0
    %1762 = vmatpush.msra.mxu0 0.0
    %1763 = vmatpush.msra.mxu0 0.0
    %1764 = vmatpush.msra.mxu0 0.0
    %1765 = vmatpush.msra.mxu0 0.0
    %1766 = vmatpush.msra.mxu0 0.0
    %1767 = vmatpush.msra.mxu0 0.0
    %1768 = vmatpush.msra.mxu0 0.0
    %1769 = vmatpush.msra.mxu0 0.0
    %1770 = vmatpush.msra.mxu0 0.0
    %1771 = vmatpush.msra.mxu0 0.0
    %1772 = vmatpush.msra.mxu0 0.0
    %v1773 = vand.u32 %v461, 4294901760
    %1774 = vmatpush.msra.mxu0 %v1773
    %v1775 = vand.u32 %v460, 4294901760
    %1776 = vmatpush.msra.mxu0 %v1775
    %v1777 = vand.u32 %v459, 4294901760
    %1778 = vmatpush.msra.mxu0 %v1777
    %v1779 = vand.u32 %v458, 4294901760
    %1780 = vmatpush.msra.mxu0 %v1779
    %v1781 = vand.u32 %v1659, 4294901760
    %v1782 = vsub.f32 %v1659, %v1781
    %v1783 = vand.u32 %v1782, 4294901760
    %1784 = vmatmul.f32.gmra.mxu0 %v1783
    %v1785 = vpop.f32.mrf.mxu0
    %v1786 = vadd.f32 %v1759, %v1785
    %1787 = vdwg.mxu0
    %1788 = vmatpush.msra.mxu0 0.0
    %1789 = vmatpush.msra.mxu0 0.0
    %1790 = vmatpush.msra.mxu0 0.0
    %1791 = vmatpush.msra.mxu0 0.0
    %1792 = vmatpush.msra.mxu0 0.0
    %1793 = vmatpush.msra.mxu0 0.0
    %1794 = vmatpush.msra.mxu0 0.0
    %1795 = vmatpush.msra.mxu0 0.0
    %1796 = vmatpush.msra.mxu0 0.0
    %1797 = vmatpush.msra.mxu0 0.0
    %1798 = vmatpush.msra.mxu0 0.0
    %1799 = vmatpush.msra.mxu0 0.0
    %v1800 = vand.u32 %v461, 4294901760
    %v1801 = vsub.f32 %v461, %v1800
    %v1802 = vand.u32 %v1801, 4294901760
    %1803 = vmatpush.msra.mxu0 %v1802
    %v1804 = vand.u32 %v460, 4294901760
    %v1805 = vsub.f32 %v460, %v1804
    %v1806 = vand.u32 %v1805, 4294901760
    %1807 = vmatpush.msra.mxu0 %v1806
    %v1808 = vand.u32 %v459, 4294901760
    %v1809 = vsub.f32 %v459, %v1808
    %v1810 = vand.u32 %v1809, 4294901760
    %1811 = vmatpush.msra.mxu0 %v1810
    %v1812 = vand.u32 %v458, 4294901760
    %v1813 = vsub.f32 %v458, %v1812
    %v1814 = vand.u32 %v1813, 4294901760
    %1815 = vmatpush.msra.mxu0 %v1814
    %v1816 = vand.u32 %v1659, 4294901760
    %1817 = vmatmul.f32.gmra.mxu0 %v1816
    %v1818 = vpop.f32.mrf.mxu0
    %v1819 = vadd.f32 %v1786, %v1818
    %1820 = vdwg.mxu0
    %1821 = vmatpush.msra.mxu0 0.0
    %1822 = vmatpush.msra.mxu0 0.0
    %1823 = vmatpush.msra.mxu0 0.0
    %1824 = vmatpush.msra.mxu0 0.0
    %1825 = vmatpush.msra.mxu0 0.0
    %1826 = vmatpush.msra.mxu0 0.0
    %1827 = vmatpush.msra.mxu0 0.0
    %1828 = vmatpush.msra.mxu0 0.0
    %1829 = vmatpush.msra.mxu0 0.0
    %1830 = vmatpush.msra.mxu0 0.0
    %1831 = vmatpush.msra.mxu0 0.0
    %1832 = vmatpush.msra.mxu0 0.0
    %v1833 = vand.u32 %v461, 4294901760
    %1834 = vmatpush.msra.mxu0 %v1833
    %v1835 = vand.u32 %v460, 4294901760
    %1836 = vmatpush.msra.mxu0 %v1835
    %v1837 = vand.u32 %v459, 4294901760
    %1838 = vmatpush.msra.mxu0 %v1837
    %v1839 = vand.u32 %v458, 4294901760
    %1840 = vmatpush.msra.mxu0 %v1839
    %v1841 = vand.u32 %v1659, 4294901760
    %1842 = vmatmul.f32.gmra.mxu0 %v1841
    %v1843 = vpop.f32.mrf.mxu0
    %v1844 = vadd.f32 %v1819, %v1843
    %1845 = vdwg.mxu0
    %v1846 = vadd.f32 %v448, %v1844
    %v1847 = vsub.f32 0.0, %v1846
    %v1848 = vmul.f32 %v1847, 1.442695
    %v1849 = vpow.pop %v1848
    %v1850 = vadd.f32 %v1849, 1.0
    %v1851 = vrcp.pop %v1850
    %v1852 = vmul.f32 %v1850, %v1851
    %v1853 = vsub.f32 1.0, %v1852
    %v1854 = vmul.f32 %v1851, %v1853
    %v1855 = vadd.f32 %v1851, %v1854
    %vm1856 = vweird.f32 %v1850
    %vm1857 = vweird.f32 %v1851
    %vm1858 = vmor %vm1856, %vm1857
    %v1859 = vsel %vm1858, %v1851, %v1855
    %v1860 = vand.u32 2147483647, %v1850
    %vm1861 = vcmp.eq.f32.partialorder %v1860, 8.507059e+37
    %v1862 = vand.u32 %v1850, 2147483648
    %v1863 = vor.u32 1.1754944e-38, %v1862
    %v1864 = vsel %vm1861, %v1863, %v1859
    %v1865 = vmul.f32 1.0, %v1864
    %v1866 = vtanh.pop %v1846
    %v1867 = vmul.f32 %v1865, %v1655
    %1869 = vrot.lane.b32.xlu0 %v1866, 64
    %v1870 = vpop.permute.xlu0 %1869
    %v1872 = vmul.f32 %v1865, %v1870
    %1874 = vrot.lane.b32.xlu0 %v1872, 32
    %v1875 = vpop.permute.xlu0 %1874
    %v1877 = vadd.f32 %v1867, %v1875
    %v1878 = vtanh.pop %v1877
    %1880 = vrot.lane.b32.xlu0 %v1878, 64
    %v1881 = vpop.permute.xlu0 %1880
    %v1883 = vmul.f32 %v1865, %v1881
    %vm1884 = vcmp.gt.s32.totalorder %v462, 5
    %v1885 = vsel %vm1884, 1, 0
    %1886 = vset.pattern.permute.xlu0 0
    %1887 = vperm.xlu0 %1886, %v1885
    %v1888 = vpop.permute.xlu0 %1887
    %vm1889 = vcmp.eq.s32.totalorder %v1888, 1
    %v1890 = vsel %vm1889, %v1883, 0.0
    %v1891 = vsel %vm1889, %v1883, %v1654
    %v1892 = vsel %vm1889, %v1877, %v1655
    %1894 = vrot.lane.b32.xlu0 %v1891, 32
    %v1895 = vpop.permute.xlu0 %1894
    %v1896 = vsel %vm465, %v1895, 0
    %1898 = vmatpush.msra.mxu0 0.0
    %1899 = vmatpush.msra.mxu0 0.0
    %1900 = vmatpush.msra.mxu0 0.0
    %1901 = vmatpush.msra.mxu0 0.0
    %1902 = vmatpush.msra.mxu0 0.0
    %1903 = vmatpush.msra.mxu0 0.0
    %1904 = vmatpush.msra.mxu0 0.0
    %1905 = vmatpush.msra.mxu0 0.0
    %1906 = vmatpush.msra.mxu0 0.0
    %1907 = vmatpush.msra.mxu0 0.0
    %1908 = vmatpush.msra.mxu0 0.0
    %1909 = vmatpush.msra.mxu0 0.0
    %v1910 = vand.u32 %v461, 4294901760
    %1911 = vmatpush.msra.mxu0 %v1910
    %v1912 = vand.u32 %v460, 4294901760
    %1913 = vmatpush.msra.mxu0 %v1912
    %v1914 = vand.u32 %v459, 4294901760
    %1915 = vmatpush.msra.mxu0 %v1914
    %v1916 = vand.u32 %v458, 4294901760
    %1917 = vmatpush.msra.mxu0 %v1916
    %v1918 = vand.u32 %v1896, 4294901760
    %v1919 = vsub.f32 %v1896, %v1918
    %v1920 = vand.u32 %v1919, 4294901760
    %v1921 = vsub.f32 %v1919, %v1920
    %v1922 = vand.u32 %v1921, 4294901760
    %1923 = vmatmul.f32.gmra.mxu0 %v1922
    %v1924 = vpop.f32.mrf.mxu0
    %v1925 = vadd.f32 0.0, %v1924
    %1926 = vdwg.mxu0
    %1927 = vmatpush.msra.mxu0 0.0
    %1928 = vmatpush.msra.mxu0 0.0
    %1929 = vmatpush.msra.mxu0 0.0
    %1930 = vmatpush.msra.mxu0 0.0
    %1931 = vmatpush.msra.mxu0 0.0
    %1932 = vmatpush.msra.mxu0 0.0
    %1933 = vmatpush.msra.mxu0 0.0
    %1934 = vmatpush.msra.mxu0 0.0
    %1935 = vmatpush.msra.mxu0 0.0
    %1936 = vmatpush.msra.mxu0 0.0
    %1937 = vmatpush.msra.mxu0 0.0
    %1938 = vmatpush.msra.mxu0 0.0
    %v1939 = vand.u32 %v461, 4294901760
    %v1940 = vsub.f32 %v461, %v1939
    %v1941 = vand.u32 %v1940, 4294901760
    %v1942 = vsub.f32 %v1940, %v1941
    %v1943 = vand.u32 %v1942, 4294901760
    %1944 = vmatpush.msra.mxu0 %v1943
    %v1945 = vand.u32 %v460, 4294901760
    %v1946 = vsub.f32 %v460, %v1945
    %v1947 = vand.u32 %v1946, 4294901760
    %v1948 = vsub.f32 %v1946, %v1947
    %v1949 = vand.u32 %v1948, 4294901760
    %1950 = vmatpush.msra.mxu0 %v1949
    %v1951 = vand.u32 %v459, 4294901760
    %v1952 = vsub.f32 %v459, %v1951
    %v1953 = vand.u32 %v1952, 4294901760
    %v1954 = vsub.f32 %v1952, %v1953
    %v1955 = vand.u32 %v1954, 4294901760
    %1956 = vmatpush.msra.mxu0 %v1955
    %v1957 = vand.u32 %v458, 4294901760
    %v1958 = vsub.f32 %v458, %v1957
    %v1959 = vand.u32 %v1958, 4294901760
    %v1960 = vsub.f32 %v1958, %v1959
    %v1961 = vand.u32 %v1960, 4294901760
    %1962 = vmatpush.msra.mxu0 %v1961
    %v1963 = vand.u32 %v1896, 4294901760
    %1964 = vmatmul.f32.gmra.mxu0 %v1963
    %v1965 = vpop.f32.mrf.mxu0
    %v1966 = vadd.f32 %v1925, %v1965
    %1967 = vdwg.mxu0
    %1968 = vmatpush.msra.mxu0 0.0
    %1969 = vmatpush.msra.mxu0 0.0
    %1970 = vmatpush.msra.mxu0 0.0
    %1971 = vmatpush.msra.mxu0 0.0
    %1972 = vmatpush.msra.mxu0 0.0
    %1973 = vmatpush.msra.mxu0 0.0
    %1974 = vmatpush.msra.mxu0 0.0
    %1975 = vmatpush.msra.mxu0 0.0
    %1976 = vmatpush.msra.mxu0 0.0
    %1977 = vmatpush.msra.mxu0 0.0
    %1978 = vmatpush.msra.mxu0 0.0
    %1979 = vmatpush.msra.mxu0 0.0
    %v1980 = vand.u32 %v461, 4294901760
    %v1981 = vsub.f32 %v461, %v1980
    %1982 = vmatpush.msra.mxu0 %v1981
    %v1983 = vand.u32 %v460, 4294901760
    %v1984 = vsub.f32 %v460, %v1983
    %1985 = vmatpush.msra.mxu0 %v1984
    %v1986 = vand.u32 %v459, 4294901760
    %v1987 = vsub.f32 %v459, %v1986
    %1988 = vmatpush.msra.mxu0 %v1987
    %v1989 = vand.u32 %v458, 4294901760
    %v1990 = vsub.f32 %v458, %v1989
    %1991 = vmatpush.msra.mxu0 %v1990
    %v1992 = vand.u32 %v1896, 4294901760
    %v1993 = vsub.f32 %v1896, %v1992
    %1994 = vmatmul.f32.gmra.mxu0 %v1993
    %v1995 = vpop.f32.mrf.mxu0
    %v1996 = vadd.f32 %v1966, %v1995
    %1997 = vdwg.mxu0
    %1998 = vmatpush.msra.mxu0 0.0
    %1999 = vmatpush.msra.mxu0 0.0
    %2000 = vmatpush.msra.mxu0 0.0
    %2001 = vmatpush.msra.mxu0 0.0
    %2002 = vmatpush.msra.mxu0 0.0
    %2003 = vmatpush.msra.mxu0 0.0
    %2004 = vmatpush.msra.mxu0 0.0
    %2005 = vmatpush.msra.mxu0 0.0
    %2006 = vmatpush.msra.mxu0 0.0
    %2007 = vmatpush.msra.mxu0 0.0
    %2008 = vmatpush.msra.mxu0 0.0
    %2009 = vmatpush.msra.mxu0 0.0
    %v2010 = vand.u32 %v461, 4294901760
    %2011 = vmatpush.msra.mxu0 %v2010
    %v2012 = vand.u32 %v460, 4294901760
    %2013 = vmatpush.msra.mxu0 %v2012
    %v2014 = vand.u32 %v459, 4294901760
    %2015 = vmatpush.msra.mxu0 %v2014
    %v2016 = vand.u32 %v458, 4294901760
    %2017 = vmatpush.msra.mxu0 %v2016
    %v2018 = vand.u32 %v1896, 4294901760
    %v2019 = vsub.f32 %v1896, %v2018
    %v2020 = vand.u32 %v2019, 4294901760
    %2021 = vmatmul.f32.gmra.mxu0 %v2020
    %v2022 = vpop.f32.mrf.mxu0
    %v2023 = vadd.f32 %v1996, %v2022
    %2024 = vdwg.mxu0
    %2025 = vmatpush.msra.mxu0 0.0
    %2026 = vmatpush.msra.mxu0 0.0
    %2027 = vmatpush.msra.mxu0 0.0
    %2028 = vmatpush.msra.mxu0 0.0
    %2029 = vmatpush.msra.mxu0 0.0
    %2030 = vmatpush.msra.mxu0 0.0
    %2031 = vmatpush.msra.mxu0 0.0
    %2032 = vmatpush.msra.mxu0 0.0
    %2033 = vmatpush.msra.mxu0 0.0
    %2034 = vmatpush.msra.mxu0 0.0
    %2035 = vmatpush.msra.mxu0 0.0
    %2036 = vmatpush.msra.mxu0 0.0
    %v2037 = vand.u32 %v461, 4294901760
    %v2038 = vsub.f32 %v461, %v2037
    %v2039 = vand.u32 %v2038, 4294901760
    %2040 = vmatpush.msra.mxu0 %v2039
    %v2041 = vand.u32 %v460, 4294901760
    %v2042 = vsub.f32 %v460, %v2041
    %v2043 = vand.u32 %v2042, 4294901760
    %2044 = vmatpush.msra.mxu0 %v2043
    %v2045 = vand.u32 %v459, 4294901760
    %v2046 = vsub.f32 %v459, %v2045
    %v2047 = vand.u32 %v2046, 4294901760
    %2048 = vmatpush.msra.mxu0 %v2047
    %v2049 = vand.u32 %v458, 4294901760
    %v2050 = vsub.f32 %v458, %v2049
    %v2051 = vand.u32 %v2050, 4294901760
    %2052 = vmatpush.msra.mxu0 %v2051
    %v2053 = vand.u32 %v1896, 4294901760
    %2054 = vmatmul.f32.gmra.mxu0 %v2053
    %v2055 = vpop.f32.mrf.mxu0
    %v2056 = vadd.f32 %v2023, %v2055
    %2057 = vdwg.mxu0
    %2058 = vmatpush.msra.mxu0 0.0
    %2059 = vmatpush.msra.mxu0 0.0
    %2060 = vmatpush.msra.mxu0 0.0
    %2061 = vmatpush.msra.mxu0 0.0
    %2062 = vmatpush.msra.mxu0 0.0
    %2063 = vmatpush.msra.mxu0 0.0
    %2064 = vmatpush.msra.mxu0 0.0
    %2065 = vmatpush.msra.mxu0 0.0
    %2066 = vmatpush.msra.mxu0 0.0
    %2067 = vmatpush.msra.mxu0 0.0
    %2068 = vmatpush.msra.mxu0 0.0
    %2069 = vmatpush.msra.mxu0 0.0
    %v2070 = vand.u32 %v461, 4294901760
    %2071 = vmatpush.msra.mxu0 %v2070
    %v2072 = vand.u32 %v460, 4294901760
    %2073 = vmatpush.msra.mxu0 %v2072
    %v2074 = vand.u32 %v459, 4294901760
    %2075 = vmatpush.msra.mxu0 %v2074
    %v2076 = vand.u32 %v458, 4294901760
    %2077 = vmatpush.msra.mxu0 %v2076
    %v2078 = vand.u32 %v1896, 4294901760
    %2079 = vmatmul.f32.gmra.mxu0 %v2078
    %v2080 = vpop.f32.mrf.mxu0
    %v2081 = vadd.f32 %v2056, %v2080
    %2082 = vdwg.mxu0
    %v2083 = vadd.f32 %v452, %v2081
    %v2084 = vsub.f32 0.0, %v2083
    %v2085 = vmul.f32 %v2084, 1.442695
    %v2086 = vpow.pop %v2085
    %v2087 = vadd.f32 %v2086, 1.0
    %v2088 = vrcp.pop %v2087
    %v2089 = vmul.f32 %v2087, %v2088
    %v2090 = vsub.f32 1.0, %v2089
    %v2091 = vmul.f32 %v2088, %v2090
    %v2092 = vadd.f32 %v2088, %v2091
    %vm2093 = vweird.f32 %v2087
    %vm2094 = vweird.f32 %v2088
    %vm2095 = vmor %vm2093, %vm2094
    %v2096 = vsel %vm2095, %v2088, %v2092
    %v2097 = vand.u32 2147483647, %v2087
    %vm2098 = vcmp.eq.f32.partialorder %v2097, 8.507059e+37
    %v2099 = vand.u32 %v2087, 2147483648
    %v2100 = vor.u32 1.1754944e-38, %v2099
    %v2101 = vsel %vm2098, %v2100, %v2096
    %v2102 = vmul.f32 1.0, %v2101
    %v2103 = vtanh.pop %v2083
    %v2104 = vmul.f32 %v2102, %v1892
    %2106 = vrot.lane.b32.xlu0 %v2103, 64
    %v2107 = vpop.permute.xlu0 %2106
    %v2109 = vmul.f32 %v2102, %v2107
    %2111 = vrot.lane.b32.xlu0 %v2109, 32
    %v2112 = vpop.permute.xlu0 %2111
    %v2114 = vadd.f32 %v2104, %v2112
    %v2115 = vtanh.pop %v2114
    %2117 = vrot.lane.b32.xlu0 %v2115, 64
    %v2118 = vpop.permute.xlu0 %2117
    %v2120 = vmul.f32 %v2102, %v2118
    %vm2121 = vcmp.gt.s32.totalorder %v462, 6
    %v2122 = vsel %vm2121, 1, 0
    %2123 = vset.pattern.permute.xlu0 0
    %2124 = vperm.xlu0 %2123, %v2122
    %v2125 = vpop.permute.xlu0 %2124
    %vm2126 = vcmp.eq.s32.totalorder %v2125, 1
    %v2127 = vsel %vm2126, %v2120, 0.0
    %v2128 = vsel %vm2126, %v2120, %v1891
    %v2129 = vsel %vm2126, %v2114, %v1892
    %2131 = vrot.lane.b32.xlu0 %v2128, 32
    %v2132 = vpop.permute.xlu0 %2131
    %v2133 = vsel %vm465, %v2132, 0
    %2135 = vmatpush.msra.mxu0 0.0
    %2136 = vmatpush.msra.mxu0 0.0
    %2137 = vmatpush.msra.mxu0 0.0
    %2138 = vmatpush.msra.mxu0 0.0
    %2139 = vmatpush.msra.mxu0 0.0
    %2140 = vmatpush.msra.mxu0 0.0
    %2141 = vmatpush.msra.mxu0 0.0
    %2142 = vmatpush.msra.mxu0 0.0
    %2143 = vmatpush.msra.mxu0 0.0
    %2144 = vmatpush.msra.mxu0 0.0
    %2145 = vmatpush.msra.mxu0 0.0
    %2146 = vmatpush.msra.mxu0 0.0
    %v2147 = vand.u32 %v461, 4294901760
    %2148 = vmatpush.msra.mxu0 %v2147
    %v2149 = vand.u32 %v460, 4294901760
    %2150 = vmatpush.msra.mxu0 %v2149
    %v2151 = vand.u32 %v459, 4294901760
    %2152 = vmatpush.msra.mxu0 %v2151
    %v2153 = vand.u32 %v458, 4294901760
    %2154 = vmatpush.msra.mxu0 %v2153
    %v2155 = vand.u32 %v2133, 4294901760
    %v2156 = vsub.f32 %v2133, %v2155
    %v2157 = vand.u32 %v2156, 4294901760
    %v2158 = vsub.f32 %v2156, %v2157
    %v2159 = vand.u32 %v2158, 4294901760
    %2160 = vmatmul.f32.gmra.mxu0 %v2159
    %v2161 = vpop.f32.mrf.mxu0
    %v2162 = vadd.f32 0.0, %v2161
    %2163 = vdwg.mxu0
    %2164 = vmatpush.msra.mxu0 0.0
    %2165 = vmatpush.msra.mxu0 0.0
    %2166 = vmatpush.msra.mxu0 0.0
    %2167 = vmatpush.msra.mxu0 0.0
    %2168 = vmatpush.msra.mxu0 0.0
    %2169 = vmatpush.msra.mxu0 0.0
    %2170 = vmatpush.msra.mxu0 0.0
    %2171 = vmatpush.msra.mxu0 0.0
    %2172 = vmatpush.msra.mxu0 0.0
    %2173 = vmatpush.msra.mxu0 0.0
    %2174 = vmatpush.msra.mxu0 0.0
    %2175 = vmatpush.msra.mxu0 0.0
    %v2176 = vand.u32 %v461, 4294901760
    %v2177 = vsub.f32 %v461, %v2176
    %v2178 = vand.u32 %v2177, 4294901760
    %v2179 = vsub.f32 %v2177, %v2178
    %v2180 = vand.u32 %v2179, 4294901760
    %2181 = vmatpush.msra.mxu0 %v2180
    %v2182 = vand.u32 %v460, 4294901760
    %v2183 = vsub.f32 %v460, %v2182
    %v2184 = vand.u32 %v2183, 4294901760
    %v2185 = vsub.f32 %v2183, %v2184
    %v2186 = vand.u32 %v2185, 4294901760
    %2187 = vmatpush.msra.mxu0 %v2186
    %v2188 = vand.u32 %v459, 4294901760
    %v2189 = vsub.f32 %v459, %v2188
    %v2190 = vand.u32 %v2189, 4294901760
    %v2191 = vsub.f32 %v2189, %v2190
    %v2192 = vand.u32 %v2191, 4294901760
    %2193 = vmatpush.msra.mxu0 %v2192
    %v2194 = vand.u32 %v458, 4294901760
    %v2195 = vsub.f32 %v458, %v2194
    %v2196 = vand.u32 %v2195, 4294901760
    %v2197 = vsub.f32 %v2195, %v2196
    %v2198 = vand.u32 %v2197, 4294901760
    %2199 = vmatpush.msra.mxu0 %v2198
    %v2200 = vand.u32 %v2133, 4294901760
    %2201 = vmatmul.f32.gmra.mxu0 %v2200
    %v2202 = vpop.f32.mrf.mxu0
    %v2203 = vadd.f32 %v2162, %v2202
    %2204 = vdwg.mxu0
    %2205 = vmatpush.msra.mxu0 0.0
    %2206 = vmatpush.msra.mxu0 0.0
    %2207 = vmatpush.msra.mxu0 0.0
    %2208 = vmatpush.msra.mxu0 0.0
    %2209 = vmatpush.msra.mxu0 0.0
    %2210 = vmatpush.msra.mxu0 0.0
    %2211 = vmatpush.msra.mxu0 0.0
    %2212 = vmatpush.msra.mxu0 0.0
    %2213 = vmatpush.msra.mxu0 0.0
    %2214 = vmatpush.msra.mxu0 0.0
    %2215 = vmatpush.msra.mxu0 0.0
    %2216 = vmatpush.msra.mxu0 0.0
    %v2217 = vand.u32 %v461, 4294901760
    %v2218 = vsub.f32 %v461, %v2217
    %2219 = vmatpush.msra.mxu0 %v2218
    %v2220 = vand.u32 %v460, 4294901760
    %v2221 = vsub.f32 %v460, %v2220
    %2222 = vmatpush.msra.mxu0 %v2221
    %v2223 = vand.u32 %v459, 4294901760
    %v2224 = vsub.f32 %v459, %v2223
    %2225 = vmatpush.msra.mxu0 %v2224
    %v2226 = vand.u32 %v458, 4294901760
    %v2227 = vsub.f32 %v458, %v2226
    %2228 = vmatpush.msra.mxu0 %v2227
    %v2229 = vand.u32 %v2133, 4294901760
    %v2230 = vsub.f32 %v2133, %v2229
    %2231 = vmatmul.f32.gmra.mxu0 %v2230
    %v2232 = vpop.f32.mrf.mxu0
    %v2233 = vadd.f32 %v2203, %v2232
    %2234 = vdwg.mxu0
    %2235 = vmatpush.msra.mxu0 0.0
    %2236 = vmatpush.msra.mxu0 0.0
    %2237 = vmatpush.msra.mxu0 0.0
    %2238 = vmatpush.msra.mxu0 0.0
    %2239 = vmatpush.msra.mxu0 0.0
    %2240 = vmatpush.msra.mxu0 0.0
    %2241 = vmatpush.msra.mxu0 0.0
    %2242 = vmatpush.msra.mxu0 0.0
    %2243 = vmatpush.msra.mxu0 0.0
    %2244 = vmatpush.msra.mxu0 0.0
    %2245 = vmatpush.msra.mxu0 0.0
    %2246 = vmatpush.msra.mxu0 0.0
    %v2247 = vand.u32 %v461, 4294901760
    %2248 = vmatpush.msra.mxu0 %v2247
    %v2249 = vand.u32 %v460, 4294901760
    %2250 = vmatpush.msra.mxu0 %v2249
    %v2251 = vand.u32 %v459, 4294901760
    %2252 = vmatpush.msra.mxu0 %v2251
    %v2253 = vand.u32 %v458, 4294901760
    %2254 = vmatpush.msra.mxu0 %v2253
    %v2255 = vand.u32 %v2133, 4294901760
    %v2256 = vsub.f32 %v2133, %v2255
    %v2257 = vand.u32 %v2256, 4294901760
    %2258 = vmatmul.f32.gmra.mxu0 %v2257
    %v2259 = vpop.f32.mrf.mxu0
    %v2260 = vadd.f32 %v2233, %v2259
    %2261 = vdwg.mxu0
    %2262 = vmatpush.msra.mxu0 0.0
    %2263 = vmatpush.msra.mxu0 0.0
    %2264 = vmatpush.msra.mxu0 0.0
    %2265 = vmatpush.msra.mxu0 0.0
    %2266 = vmatpush.msra.mxu0 0.0
    %2267 = vmatpush.msra.mxu0 0.0
    %2268 = vmatpush.msra.mxu0 0.0
    %2269 = vmatpush.msra.mxu0 0.0
    %2270 = vmatpush.msra.mxu0 0.0
    %2271 = vmatpush.msra.mxu0 0.0
    %2272 = vmatpush.msra.mxu0 0.0
    %2273 = vmatpush.msra.mxu0 0.0
    %v2274 = vand.u32 %v461, 4294901760
    %v2275 = vsub.f32 %v461, %v2274
    %v2276 = vand.u32 %v2275, 4294901760
    %2277 = vmatpush.msra.mxu0 %v2276
    %v2278 = vand.u32 %v460, 4294901760
    %v2279 = vsub.f32 %v460, %v2278
    %v2280 = vand.u32 %v2279, 4294901760
    %2281 = vmatpush.msra.mxu0 %v2280
    %v2282 = vand.u32 %v459, 4294901760
    %v2283 = vsub.f32 %v459, %v2282
    %v2284 = vand.u32 %v2283, 4294901760
    %2285 = vmatpush.msra.mxu0 %v2284
    %v2286 = vand.u32 %v458, 4294901760
    %v2287 = vsub.f32 %v458, %v2286
    %v2288 = vand.u32 %v2287, 4294901760
    %2289 = vmatpush.msra.mxu0 %v2288
    %v2290 = vand.u32 %v2133, 4294901760
    %2291 = vmatmul.f32.gmra.mxu0 %v2290
    %v2292 = vpop.f32.mrf.mxu0
    %v2293 = vadd.f32 %v2260, %v2292
    %2294 = vdwg.mxu0
    %2295 = vmatpush.msra.mxu0 0.0
    %2296 = vmatpush.msra.mxu0 0.0
    %2297 = vmatpush.msra.mxu0 0.0
    %2298 = vmatpush.msra.mxu0 0.0
    %2299 = vmatpush.msra.mxu0 0.0
    %2300 = vmatpush.msra.mxu0 0.0
    %2301 = vmatpush.msra.mxu0 0.0
    %2302 = vmatpush.msra.mxu0 0.0
    %2303 = vmatpush.msra.mxu0 0.0
    %2304 = vmatpush.msra.mxu0 0.0
    %2305 = vmatpush.msra.mxu0 0.0
    %2306 = vmatpush.msra.mxu0 0.0
    %v2307 = vand.u32 %v461, 4294901760
    %2308 = vmatpush.msra.mxu0 %v2307
    %v2309 = vand.u32 %v460, 4294901760
    %2310 = vmatpush.msra.mxu0 %v2309
    %v2311 = vand.u32 %v459, 4294901760
    %2312 = vmatpush.msra.mxu0 %v2311
    %v2313 = vand.u32 %v458, 4294901760
    %2314 = vmatpush.msra.mxu0 %v2313
    %v2315 = vand.u32 %v2133, 4294901760
    %2316 = vmatmul.f32.gmra.mxu0 %v2315
    %v2317 = vpop.f32.mrf.mxu0
    %v2318 = vadd.f32 %v2293, %v2317
    %2319 = vdwg.mxu0
    %v2320 = vadd.f32 %v456, %v2318
    %v2321 = vsub.f32 0.0, %v2320
    %v2322 = vmul.f32 %v2321, 1.442695
    %v2323 = vpow.pop %v2322
    %v2324 = vadd.f32 %v2323, 1.0
    %v2325 = vrcp.pop %v2324
    %v2326 = vmul.f32 %v2324, %v2325
    %v2327 = vsub.f32 1.0, %v2326
    %v2328 = vmul.f32 %v2325, %v2327
    %v2329 = vadd.f32 %v2325, %v2328
    %vm2330 = vweird.f32 %v2324
    %vm2331 = vweird.f32 %v2325
    %vm2332 = vmor %vm2330, %vm2331
    %v2333 = vsel %vm2332, %v2325, %v2329
    %v2334 = vand.u32 2147483647, %v2324
    %vm2335 = vcmp.eq.f32.partialorder %v2334, 8.507059e+37
    %v2336 = vand.u32 %v2324, 2147483648
    %v2337 = vor.u32 1.1754944e-38, %v2336
    %v2338 = vsel %vm2335, %v2337, %v2333
    %v2339 = vmul.f32 1.0, %v2338
    %v2340 = vtanh.pop %v2320
    %v2341 = vmul.f32 %v2339, %v2129
    %2343 = vrot.lane.b32.xlu0 %v2340, 64
    %v2344 = vpop.permute.xlu0 %2343
    %v2346 = vmul.f32 %v2339, %v2344
    %2348 = vrot.lane.b32.xlu0 %v2346, 32
    %v2349 = vpop.permute.xlu0 %2348
    %v2351 = vadd.f32 %v2341, %v2349
    %v2352 = vtanh.pop %v2351
    %2354 = vrot.lane.b32.xlu0 %v2352, 64
    %v2355 = vpop.permute.xlu0 %2354
    %v2357 = vmul.f32 %v2339, %v2355
    %vm2358 = vcmp.gt.s32.totalorder %v462, 7
    %v2359 = vsel %vm2358, 1, 0
    %2360 = vset.pattern.permute.xlu0 0
    %2361 = vperm.xlu0 %2360, %v2359
    %v2362 = vpop.permute.xlu0 %2361
    %vm2363 = vcmp.eq.s32.totalorder %v2362, 1
    %v2364 = vsel %vm2363, %v2357, 0.0
    %v2365 = vsel %vm2363, %v2357, %v2128
    %v2366 = vsel %vm2363, %v2351, %v2129
    %2368 = vrot.lane.b32.xlu0 %v2365, 32
    %v2369 = vpop.permute.xlu0 %2368
    %2371 = vst.msk [vmem:[#allocation2] sm:$0xff] %vm465, %v2369
    %2373 = vrot.lane.b32.xlu0 %v2366, 96
    %v2374 = vpop.permute.xlu0 %2373
    %2376 = vst.msk [vmem:[#allocation4] sm:$0xff] %vm465, %v2374
    %v2377 = vld [vmem:[%s4] sm:$0xff]
    %v2378 = vld [vmem:[%s4 + $0x8] sm:$0xff]
    %v2379 = vld [vmem:[%s4 + $0x10] sm:$0xf]
    %v2380 = vld [vmem:[%s5] sm:$0xff]
    %v2381 = vld [vmem:[%s5 + $0x8] sm:$0xff]
    %v2382 = vld [vmem:[%s5 + $0x10] sm:$0xff]
    %v2383 = vld [vmem:[%s5 + $0x18] sm:$0xff]
    %v2384 = vld [vmem:[%s5 + $0x20] sm:$0xff]
    %v2385 = vld [vmem:[%s5 + $0x28] sm:$0xff]
    %v2386 = vld [vmem:[%s5 + $0x30] sm:$0xff]
    %v2387 = vld [vmem:[%s5 + $0x38] sm:$0xff]
    %v2388 = vsub.f32 %v2380, 1.0
    %v2389 = vsub.f32 %v2381, 1.0
    %v2390 = vsub.f32 %v2382, 1.0
    %v2391 = vsub.f32 %v2383, 1.0
    %v2392 = vsub.f32 %v2384, 1.0
    %v2393 = vsub.f32 %v2385, 1.0
    %v2394 = vsub.f32 %v2386, 1.0
    %v2395 = vsub.f32 %v2387, 1.0
    %v2396 = vmul.f32 %v2388, 1e+09
    %v2397 = vmul.f32 %v2389, 1e+09
    %v2398 = vmul.f32 %v2390, 1e+09
    %v2399 = vmul.f32 %v2391, 1e+09
    %v2400 = vmul.f32 %v2392, 1e+09
    %v2401 = vmul.f32 %v2393, 1e+09
    %v2402 = vmul.f32 %v2394, 1e+09
    %v2403 = vmul.f32 %v2395, 1e+09
    %2412 = vrot.lane.b32.xlu0 %v702, 32
    %v2413 = vpop.permute.xlu0 %2412
    %2414 = vrot.lane.b32.xlu0 %v942, 32
    %v2415 = vpop.permute.xlu0 %2414
    %2416 = vrot.lane.b32.xlu0 %v1179, 32
    %v2417 = vpop.permute.xlu0 %2416
    %2418 = vrot.lane.b32.xlu0 %v1416, 32
    %v2419 = vpop.permute.xlu0 %2418
    %2420 = vrot.lane.b32.xlu0 %v1653, 32
    %v2421 = vpop.permute.xlu0 %2420
    %2422 = vrot.lane.b32.xlu0 %v1890, 32
    %v2423 = vpop.permute.xlu0 %2422
    %2424 = vrot.lane.b32.xlu0 %v2127, 32
    %v2425 = vpop.permute.xlu0 %2424
    %2426 = vrot.lane.b32.xlu0 %v2364, 32
    %v2427 = vpop.permute.xlu0 %2426
    %v2428 = vsel %vm465, %v2413, 0
    %v2430 = vsel %vm465, %v2415, 0
    %v2432 = vsel %vm465, %v2417, 0
    %v2434 = vsel %vm465, %v2419, 0
    %v2436 = vsel %vm465, %v2421, 0
    %v2438 = vsel %vm465, %v2423, 0
    %v2440 = vsel %vm465, %v2425, 0
    %v2442 = vsel %vm465, %v2427, 0
    %v2445 = vsel %vm465, %v2377, 0
    %v2448 = vsel %vm465, %v2378, 0
    %v2451 = vsel %vm465, %v2379, 0
    %2453 = vmatpush.xpose.msra.mxu0 0.0
    %2454 = vmatpush.xpose.msra.mxu0 0.0
    %2455 = vmatpush.xpose.msra.mxu0 0.0
    %2456 = vmatpush.xpose.msra.mxu0 0.0
    %2457 = vmatpush.xpose.msra.mxu0 0.0
    %2458 = vmatpush.xpose.msra.mxu0 0.0
    %2459 = vmatpush.xpose.msra.mxu0 0.0
    %2460 = vmatpush.xpose.msra.mxu0 0.0
    %2461 = vmatpush.xpose.msra.mxu0 0.0
    %2462 = vmatpush.xpose.msra.mxu0 0.0
    %2463 = vmatpush.xpose.msra.mxu0 0.0
    %2464 = vmatpush.xpose.msra.mxu0 0.0
    %2465 = vmatpush.xpose.msra.mxu0 0.0
    %v2466 = vand.u32 %v2451, 4294901760
    %2467 = vmatpush.xpose.msra.mxu0 %v2466
    %v2468 = vand.u32 %v2448, 4294901760
    %2469 = vmatpush.xpose.msra.mxu0 %v2468
    %v2470 = vand.u32 %v2445, 4294901760
    %2471 = vmatpush.xpose.msra.mxu0 %v2470
    %v2472 = vand.u32 %v2428, 4294901760
    %v2473 = vsub.f32 %v2428, %v2472
    %v2474 = vand.u32 %v2473, 4294901760
    %v2475 = vsub.f32 %v2473, %v2474
    %v2476 = vand.u32 %v2475, 4294901760
    %2477 = vmatmul.f32.gmra.mxu0 %v2476
    %v2478 = vpop.f32.mrf.mxu0
    %v2479 = vadd.f32 %v2396, %v2478
    %v2480 = vand.u32 %v2430, 4294901760
    %v2481 = vsub.f32 %v2430, %v2480
    %v2482 = vand.u32 %v2481, 4294901760
    %v2483 = vsub.f32 %v2481, %v2482
    %v2484 = vand.u32 %v2483, 4294901760
    %2485 = vmatmul.f32.gmra.mxu0 %v2484
    %v2486 = vpop.f32.mrf.mxu0
    %v2487 = vadd.f32 %v2397, %v2486
    %v2488 = vand.u32 %v2432, 4294901760
    %v2489 = vsub.f32 %v2432, %v2488
    %v2490 = vand.u32 %v2489, 4294901760
    %v2491 = vsub.f32 %v2489, %v2490
    %v2492 = vand.u32 %v2491, 4294901760
    %2493 = vmatmul.f32.gmra.mxu0 %v2492
    %v2494 = vpop.f32.mrf.mxu0
    %v2495 = vadd.f32 %v2398, %v2494
    %v2496 = vand.u32 %v2434, 4294901760
    %v2497 = vsub.f32 %v2434, %v2496
    %v2498 = vand.u32 %v2497, 4294901760
    %v2499 = vsub.f32 %v2497, %v2498
    %v2500 = vand.u32 %v2499, 4294901760
    %2501 = vmatmul.f32.gmra.mxu0 %v2500
    %v2502 = vpop.f32.mrf.mxu0
    %v2503 = vadd.f32 %v2399, %v2502
    %v2504 = vand.u32 %v2436, 4294901760
    %v2505 = vsub.f32 %v2436, %v2504
    %v2506 = vand.u32 %v2505, 4294901760
    %v2507 = vsub.f32 %v2505, %v2506
    %v2508 = vand.u32 %v2507, 4294901760
    %2509 = vmatmul.f32.gmra.mxu0 %v2508
    %v2510 = vpop.f32.mrf.mxu0
    %v2511 = vadd.f32 %v2400, %v2510
    %v2512 = vand.u32 %v2438, 4294901760
    %v2513 = vsub.f32 %v2438, %v2512
    %v2514 = vand.u32 %v2513, 4294901760
    %v2515 = vsub.f32 %v2513, %v2514
    %v2516 = vand.u32 %v2515, 4294901760
    %2517 = vmatmul.f32.gmra.mxu0 %v2516
    %v2518 = vpop.f32.mrf.mxu0
    %v2519 = vadd.f32 %v2401, %v2518
    %v2520 = vand.u32 %v2440, 4294901760
    %v2521 = vsub.f32 %v2440, %v2520
    %v2522 = vand.u32 %v2521, 4294901760
    %v2523 = vsub.f32 %v2521, %v2522
    %v2524 = vand.u32 %v2523, 4294901760
    %2525 = vmatmul.f32.gmra.mxu0 %v2524
    %v2526 = vpop.f32.mrf.mxu0
    %v2527 = vadd.f32 %v2402, %v2526
    %v2528 = vand.u32 %v2442, 4294901760
    %v2529 = vsub.f32 %v2442, %v2528
    %v2530 = vand.u32 %v2529, 4294901760
    %v2531 = vsub.f32 %v2529, %v2530
    %v2532 = vand.u32 %v2531, 4294901760
    %2533 = vmatmul.f32.gmra.mxu0 %v2532
    %v2534 = vpop.f32.mrf.mxu0
    %v2535 = vadd.f32 %v2403, %v2534
    %2536 = vdwg.mxu0
    %2537 = vmatpush.xpose.msra.mxu0 0.0
    %2538 = vmatpush.xpose.msra.mxu0 0.0
    %2539 = vmatpush.xpose.msra.mxu0 0.0
    %2540 = vmatpush.xpose.msra.mxu0 0.0
    %2541 = vmatpush.xpose.msra.mxu0 0.0
    %2542 = vmatpush.xpose.msra.mxu0 0.0
    %2543 = vmatpush.xpose.msra.mxu0 0.0
    %2544 = vmatpush.xpose.msra.mxu0 0.0
    %2545 = vmatpush.xpose.msra.mxu0 0.0
    %2546 = vmatpush.xpose.msra.mxu0 0.0
    %2547 = vmatpush.xpose.msra.mxu0 0.0
    %2548 = vmatpush.xpose.msra.mxu0 0.0
    %2549 = vmatpush.xpose.msra.mxu0 0.0
    %v2550 = vand.u32 %v2451, 4294901760
    %v2551 = vsub.f32 %v2451, %v2550
    %v2552 = vand.u32 %v2551, 4294901760
    %v2553 = vsub.f32 %v2551, %v2552
    %v2554 = vand.u32 %v2553, 4294901760
    %2555 = vmatpush.xpose.msra.mxu0 %v2554
    %v2556 = vand.u32 %v2448, 4294901760
    %v2557 = vsub.f32 %v2448, %v2556
    %v2558 = vand.u32 %v2557, 4294901760
    %v2559 = vsub.f32 %v2557, %v2558
    %v2560 = vand.u32 %v2559, 4294901760
    %2561 = vmatpush.xpose.msra.mxu0 %v2560
    %v2562 = vand.u32 %v2445, 4294901760
    %v2563 = vsub.f32 %v2445, %v2562
    %v2564 = vand.u32 %v2563, 4294901760
    %v2565 = vsub.f32 %v2563, %v2564
    %v2566 = vand.u32 %v2565, 4294901760
    %2567 = vmatpush.xpose.msra.mxu0 %v2566
    %v2568 = vand.u32 %v2428, 4294901760
    %2569 = vmatmul.f32.gmra.mxu0 %v2568
    %v2570 = vpop.f32.mrf.mxu0
    %v2571 = vadd.f32 %v2479, %v2570
    %v2572 = vand.u32 %v2430, 4294901760
    %2573 = vmatmul.f32.gmra.mxu0 %v2572
    %v2574 = vpop.f32.mrf.mxu0
    %v2575 = vadd.f32 %v2487, %v2574
    %v2576 = vand.u32 %v2432, 4294901760
    %2577 = vmatmul.f32.gmra.mxu0 %v2576
    %v2578 = vpop.f32.mrf.mxu0
    %v2579 = vadd.f32 %v2495, %v2578
    %v2580 = vand.u32 %v2434, 4294901760
    %2581 = vmatmul.f32.gmra.mxu0 %v2580
    %v2582 = vpop.f32.mrf.mxu0
    %v2583 = vadd.f32 %v2503, %v2582
    %v2584 = vand.u32 %v2436, 4294901760
    %2585 = vmatmul.f32.gmra.mxu0 %v2584
    %v2586 = vpop.f32.mrf.mxu0
    %v2587 = vadd.f32 %v2511, %v2586
    %v2588 = vand.u32 %v2438, 4294901760
    %2589 = vmatmul.f32.gmra.mxu0 %v2588
    %v2590 = vpop.f32.mrf.mxu0
    %v2591 = vadd.f32 %v2519, %v2590
    %v2592 = vand.u32 %v2440, 4294901760
    %2593 = vmatmul.f32.gmra.mxu0 %v2592
    %v2594 = vpop.f32.mrf.mxu0
    %v2595 = vadd.f32 %v2527, %v2594
    %v2596 = vand.u32 %v2442, 4294901760
    %2597 = vmatmul.f32.gmra.mxu0 %v2596
    %v2598 = vpop.f32.mrf.mxu0
    %v2599 = vadd.f32 %v2535, %v2598
    %2600 = vdwg.mxu0
    %2601 = vmatpush.xpose.msra.mxu0 0.0
    %2602 = vmatpush.xpose.msra.mxu0 0.0
    %2603 = vmatpush.xpose.msra.mxu0 0.0
    %2604 = vmatpush.xpose.msra.mxu0 0.0
    %2605 = vmatpush.xpose.msra.mxu0 0.0
    %2606 = vmatpush.xpose.msra.mxu0 0.0
    %2607 = vmatpush.xpose.msra.mxu0 0.0
    %2608 = vmatpush.xpose.msra.mxu0 0.0
    %2609 = vmatpush.xpose.msra.mxu0 0.0
    %2610 = vmatpush.xpose.msra.mxu0 0.0
    %2611 = vmatpush.xpose.msra.mxu0 0.0
    %2612 = vmatpush.xpose.msra.mxu0 0.0
    %2613 = vmatpush.xpose.msra.mxu0 0.0
    %v2614 = vand.u32 %v2451, 4294901760
    %v2615 = vsub.f32 %v2451, %v2614
    %2616 = vmatpush.xpose.msra.mxu0 %v2615
    %v2617 = vand.u32 %v2448, 4294901760
    %v2618 = vsub.f32 %v2448, %v2617
    %2619 = vmatpush.xpose.msra.mxu0 %v2618
    %v2620 = vand.u32 %v2445, 4294901760
    %v2621 = vsub.f32 %v2445, %v2620
    %2622 = vmatpush.xpose.msra.mxu0 %v2621
    %v2623 = vand.u32 %v2428, 4294901760
    %v2624 = vsub.f32 %v2428, %v2623
    %2625 = vmatmul.f32.gmra.mxu0 %v2624
    %v2626 = vpop.f32.mrf.mxu0
    %v2627 = vadd.f32 %v2571, %v2626
    %v2628 = vand.u32 %v2430, 4294901760
    %v2629 = vsub.f32 %v2430, %v2628
    %2630 = vmatmul.f32.gmra.mxu0 %v2629
    %v2631 = vpop.f32.mrf.mxu0
    %v2632 = vadd.f32 %v2575, %v2631
    %v2633 = vand.u32 %v2432, 4294901760
    %v2634 = vsub.f32 %v2432, %v2633
    %2635 = vmatmul.f32.gmra.mxu0 %v2634
    %v2636 = vpop.f32.mrf.mxu0
    %v2637 = vadd.f32 %v2579, %v2636
    %v2638 = vand.u32 %v2434, 4294901760
    %v2639 = vsub.f32 %v2434, %v2638
    %2640 = vmatmul.f32.gmra.mxu0 %v2639
    %v2641 = vpop.f32.mrf.mxu0
    %v2642 = vadd.f32 %v2583, %v2641
    %v2643 = vand.u32 %v2436, 4294901760
    %v2644 = vsub.f32 %v2436, %v2643
    %2645 = vmatmul.f32.gmra.mxu0 %v2644
    %v2646 = vpop.f32.mrf.mxu0
    %v2647 = vadd.f32 %v2587, %v2646
    %v2648 = vand.u32 %v2438, 4294901760
    %v2649 = vsub.f32 %v2438, %v2648
    %2650 = vmatmul.f32.gmra.mxu0 %v2649
    %v2651 = vpop.f32.mrf.mxu0
    %v2652 = vadd.f32 %v2591, %v2651
    %v2653 = vand.u32 %v2440, 4294901760
    %v2654 = vsub.f32 %v2440, %v2653
    %2655 = vmatmul.f32.gmra.mxu0 %v2654
    %v2656 = vpop.f32.mrf.mxu0
    %v2657 = vadd.f32 %v2595, %v2656
    %v2658 = vand.u32 %v2442, 4294901760
    %v2659 = vsub.f32 %v2442, %v2658
    %2660 = vmatmul.f32.gmra.mxu0 %v2659
    %v2661 = vpop.f32.mrf.mxu0
    %v2662 = vadd.f32 %v2599, %v2661
    %2663 = vdwg.mxu0
    %2664 = vmatpush.xpose.msra.mxu0 0.0
    %2665 = vmatpush.xpose.msra.mxu0 0.0
    %2666 = vmatpush.xpose.msra.mxu0 0.0
    %2667 = vmatpush.xpose.msra.mxu0 0.0
    %2668 = vmatpush.xpose.msra.mxu0 0.0
    %2669 = vmatpush.xpose.msra.mxu0 0.0
    %2670 = vmatpush.xpose.msra.mxu0 0.0
    %2671 = vmatpush.xpose.msra.mxu0 0.0
    %2672 = vmatpush.xpose.msra.mxu0 0.0
    %2673 = vmatpush.xpose.msra.mxu0 0.0
    %2674 = vmatpush.xpose.msra.mxu0 0.0
    %2675 = vmatpush.xpose.msra.mxu0 0.0
    %2676 = vmatpush.xpose.msra.mxu0 0.0
    %v2677 = vand.u32 %v2451, 4294901760
    %2678 = vmatpush.xpose.msra.mxu0 %v2677
    %v2679 = vand.u32 %v2448, 4294901760
    %2680 = vmatpush.xpose.msra.mxu0 %v2679
    %v2681 = vand.u32 %v2445, 4294901760
    %2682 = vmatpush.xpose.msra.mxu0 %v2681
    %v2683 = vand.u32 %v2428, 4294901760
    %v2684 = vsub.f32 %v2428, %v2683
    %v2685 = vand.u32 %v2684, 4294901760
    %2686 = vmatmul.f32.gmra.mxu0 %v2685
    %v2687 = vpop.f32.mrf.mxu0
    %v2688 = vadd.f32 %v2627, %v2687
    %v2689 = vand.u32 %v2430, 4294901760
    %v2690 = vsub.f32 %v2430, %v2689
    %v2691 = vand.u32 %v2690, 4294901760
    %2692 = vmatmul.f32.gmra.mxu0 %v2691
    %v2693 = vpop.f32.mrf.mxu0
    %v2694 = vadd.f32 %v2632, %v2693
    %v2695 = vand.u32 %v2432, 4294901760
    %v2696 = vsub.f32 %v2432, %v2695
    %v2697 = vand.u32 %v2696, 4294901760
    %2698 = vmatmul.f32.gmra.mxu0 %v2697
    %v2699 = vpop.f32.mrf.mxu0
    %v2700 = vadd.f32 %v2637, %v2699
    %v2701 = vand.u32 %v2434, 4294901760
    %v2702 = vsub.f32 %v2434, %v2701
    %v2703 = vand.u32 %v2702, 4294901760
    %2704 = vmatmul.f32.gmra.mxu0 %v2703
    %v2705 = vpop.f32.mrf.mxu0
    %v2706 = vadd.f32 %v2642, %v2705
    %v2707 = vand.u32 %v2436, 4294901760
    %v2708 = vsub.f32 %v2436, %v2707
    %v2709 = vand.u32 %v2708, 4294901760
    %2710 = vmatmul.f32.gmra.mxu0 %v2709
    %v2711 = vpop.f32.mrf.mxu0
    %v2712 = vadd.f32 %v2647, %v2711
    %v2713 = vand.u32 %v2438, 4294901760
    %v2714 = vsub.f32 %v2438, %v2713
    %v2715 = vand.u32 %v2714, 4294901760
    %2716 = vmatmul.f32.gmra.mxu0 %v2715
    %v2717 = vpop.f32.mrf.mxu0
    %v2718 = vadd.f32 %v2652, %v2717
    %v2719 = vand.u32 %v2440, 4294901760
    %v2720 = vsub.f32 %v2440, %v2719
    %v2721 = vand.u32 %v2720, 4294901760
    %2722 = vmatmul.f32.gmra.mxu0 %v2721
    %v2723 = vpop.f32.mrf.mxu0
    %v2724 = vadd.f32 %v2657, %v2723
    %v2725 = vand.u32 %v2442, 4294901760
    %v2726 = vsub.f32 %v2442, %v2725
    %v2727 = vand.u32 %v2726, 4294901760
    %2728 = vmatmul.f32.gmra.mxu0 %v2727
    %v2729 = vpop.f32.mrf.mxu0
    %v2730 = vadd.f32 %v2662, %v2729
    %2731 = vdwg.mxu0
    %2732 = vmatpush.xpose.msra.mxu0 0.0
    %2733 = vmatpush.xpose.msra.mxu0 0.0
    %2734 = vmatpush.xpose.msra.mxu0 0.0
    %2735 = vmatpush.xpose.msra.mxu0 0.0
    %2736 = vmatpush.xpose.msra.mxu0 0.0
    %2737 = vmatpush.xpose.msra.mxu0 0.0
    %2738 = vmatpush.xpose.msra.mxu0 0.0
    %2739 = vmatpush.xpose.msra.mxu0 0.0
    %2740 = vmatpush.xpose.msra.mxu0 0.0
    %2741 = vmatpush.xpose.msra.mxu0 0.0
    %2742 = vmatpush.xpose.msra.mxu0 0.0
    %2743 = vmatpush.xpose.msra.mxu0 0.0
    %2744 = vmatpush.xpose.msra.mxu0 0.0
    %v2745 = vand.u32 %v2451, 4294901760
    %v2746 = vsub.f32 %v2451, %v2745
    %v2747 = vand.u32 %v2746, 4294901760
    %2748 = vmatpush.xpose.msra.mxu0 %v2747
    %v2749 = vand.u32 %v2448, 4294901760
    %v2750 = vsub.f32 %v2448, %v2749
    %v2751 = vand.u32 %v2750, 4294901760
    %2752 = vmatpush.xpose.msra.mxu0 %v2751
    %v2753 = vand.u32 %v2445, 4294901760
    %v2754 = vsub.f32 %v2445, %v2753
    %v2755 = vand.u32 %v2754, 4294901760
    %2756 = vmatpush.xpose.msra.mxu0 %v2755
    %v2757 = vand.u32 %v2428, 4294901760
    %2758 = vmatmul.f32.gmra.mxu0 %v2757
    %v2759 = vpop.f32.mrf.mxu0
    %v2760 = vadd.f32 %v2688, %v2759
    %v2761 = vand.u32 %v2430, 4294901760
    %2762 = vmatmul.f32.gmra.mxu0 %v2761
    %v2763 = vpop.f32.mrf.mxu0
    %v2764 = vadd.f32 %v2694, %v2763
    %v2765 = vand.u32 %v2432, 4294901760
    %2766 = vmatmul.f32.gmra.mxu0 %v2765
    %v2767 = vpop.f32.mrf.mxu0
    %v2768 = vadd.f32 %v2700, %v2767
    %v2769 = vand.u32 %v2434, 4294901760
    %2770 = vmatmul.f32.gmra.mxu0 %v2769
    %v2771 = vpop.f32.mrf.mxu0
    %v2772 = vadd.f32 %v2706, %v2771
    %v2773 = vand.u32 %v2436, 4294901760
    %2774 = vmatmul.f32.gmra.mxu0 %v2773
    %v2775 = vpop.f32.mrf.mxu0
    %v2776 = vadd.f32 %v2712, %v2775
    %v2777 = vand.u32 %v2438, 4294901760
    %2778 = vmatmul.f32.gmra.mxu0 %v2777
    %v2779 = vpop.f32.mrf.mxu0
    %v2780 = vadd.f32 %v2718, %v2779
    %v2781 = vand.u32 %v2440, 4294901760
    %2782 = vmatmul.f32.gmra.mxu0 %v2781
    %v2783 = vpop.f32.mrf.mxu0
    %v2784 = vadd.f32 %v2724, %v2783
    %v2785 = vand.u32 %v2442, 4294901760
    %2786 = vmatmul.f32.gmra.mxu0 %v2785
    %v2787 = vpop.f32.mrf.mxu0
    %v2788 = vadd.f32 %v2730, %v2787
    %2789 = vdwg.mxu0
    %2790 = vmatpush.xpose.msra.mxu0 0.0
    %2791 = vmatpush.xpose.msra.mxu0 0.0
    %2792 = vmatpush.xpose.msra.mxu0 0.0
    %2793 = vmatpush.xpose.msra.mxu0 0.0
    %2794 = vmatpush.xpose.msra.mxu0 0.0
    %2795 = vmatpush.xpose.msra.mxu0 0.0
    %2796 = vmatpush.xpose.msra.mxu0 0.0
    %2797 = vmatpush.xpose.msra.mxu0 0.0
    %2798 = vmatpush.xpose.msra.mxu0 0.0
    %2799 = vmatpush.xpose.msra.mxu0 0.0
    %2800 = vmatpush.xpose.msra.mxu0 0.0
    %2801 = vmatpush.xpose.msra.mxu0 0.0
    %2802 = vmatpush.xpose.msra.mxu0 0.0
    %v2803 = vand.u32 %v2451, 4294901760
    %2804 = vmatpush.xpose.msra.mxu0 %v2803
    %v2805 = vand.u32 %v2448, 4294901760
    %2806 = vmatpush.xpose.msra.mxu0 %v2805
    %v2807 = vand.u32 %v2445, 4294901760
    %2808 = vmatpush.xpose.msra.mxu0 %v2807
    %v2809 = vand.u32 %v2428, 4294901760
    %2810 = vmatmul.f32.gmra.mxu0 %v2809
    %v2811 = vpop.f32.mrf.mxu0
    %v2812 = vadd.f32 %v2760, %v2811
    %v2813 = vand.u32 %v2430, 4294901760
    %2814 = vmatmul.f32.gmra.mxu0 %v2813
    %v2815 = vpop.f32.mrf.mxu0
    %v2816 = vadd.f32 %v2764, %v2815
    %v2817 = vand.u32 %v2432, 4294901760
    %2818 = vmatmul.f32.gmra.mxu0 %v2817
    %v2819 = vpop.f32.mrf.mxu0
    %v2820 = vadd.f32 %v2768, %v2819
    %v2821 = vand.u32 %v2434, 4294901760
    %2822 = vmatmul.f32.gmra.mxu0 %v2821
    %v2823 = vpop.f32.mrf.mxu0
    %v2824 = vadd.f32 %v2772, %v2823
    %v2825 = vand.u32 %v2436, 4294901760
    %2826 = vmatmul.f32.gmra.mxu0 %v2825
    %v2827 = vpop.f32.mrf.mxu0
    %v2828 = vadd.f32 %v2776, %v2827
    %v2829 = vand.u32 %v2438, 4294901760
    %2830 = vmatmul.f32.gmra.mxu0 %v2829
    %v2831 = vpop.f32.mrf.mxu0
    %v2832 = vadd.f32 %v2780, %v2831
    %v2833 = vand.u32 %v2440, 4294901760
    %2834 = vmatmul.f32.gmra.mxu0 %v2833
    %v2835 = vpop.f32.mrf.mxu0
    %v2836 = vadd.f32 %v2784, %v2835
    %v2837 = vand.u32 %v2442, 4294901760
    %2838 = vmatmul.f32.gmra.mxu0 %v2837
    %v2839 = vpop.f32.mrf.mxu0
    %v2840 = vadd.f32 %v2788, %v2839
    %2841 = vdwg.mxu0
    %vm2842 = vcmask 162816
    %v2843 = vsel %vm2842, %v2812, -inf
    %2844 = vmax.xlane.f32.xlu0 %v2843
    %v2845 = vpop.xlane.xlu0 %2844
    %v2846 = vsel %vm2842, %v2816, -inf
    %2847 = vmax.xlane.f32.xlu0 %v2846
    %v2848 = vpop.xlane.xlu0 %2847
    %v2849 = vsel %vm2842, %v2820, -inf
    %2850 = vmax.xlane.f32.xlu0 %v2849
    %v2851 = vpop.xlane.xlu0 %2850
    %v2852 = vsel %vm2842, %v2824, -inf
    %2853 = vmax.xlane.f32.xlu0 %v2852
    %v2854 = vpop.xlane.xlu0 %2853
    %v2855 = vsel %vm2842, %v2828, -inf
    %2856 = vmax.xlane.f32.xlu0 %v2855
    %v2857 = vpop.xlane.xlu0 %2856
    %v2858 = vsel %vm2842, %v2832, -inf
    %2859 = vmax.xlane.f32.xlu0 %v2858
    %v2860 = vpop.xlane.xlu0 %2859
    %v2861 = vsel %vm2842, %v2836, -inf
    %2862 = vmax.xlane.f32.xlu0 %v2861
    %v2863 = vpop.xlane.xlu0 %2862
    %v2864 = vsel %vm2842, %v2840, -inf
    %2865 = vmax.xlane.f32.xlu0 %v2864
    %v2866 = vpop.xlane.xlu0 %2865
    %v2867 = vsub.f32 %v2812, %v2845
    %v2868 = vsub.f32 %v2816, %v2848
    %v2869 = vsub.f32 %v2820, %v2851
    %v2870 = vsub.f32 %v2824, %v2854
    %v2871 = vsub.f32 %v2828, %v2857
    %v2872 = vsub.f32 %v2832, %v2860
    %v2873 = vsub.f32 %v2836, %v2863
    %v2874 = vsub.f32 %v2840, %v2866
    %v2875 = vmul.f32 %v2867, 1.442695
    %v2876 = vpow.pop %v2875
    %v2877 = vmul.f32 %v2868, 1.442695
    %v2878 = vpow.pop %v2877
    %v2879 = vmul.f32 %v2869, 1.442695
    %v2880 = vpow.pop %v2879
    %v2881 = vmul.f32 %v2870, 1.442695
    %v2882 = vpow.pop %v2881
    %v2883 = vmul.f32 %v2871, 1.442695
    %v2884 = vpow.pop %v2883
    %v2885 = vmul.f32 %v2872, 1.442695
    %v2886 = vpow.pop %v2885
    %v2887 = vmul.f32 %v2873, 1.442695
    %v2888 = vpow.pop %v2887
    %v2889 = vmul.f32 %v2874, 1.442695
    %v2890 = vpow.pop %v2889
    %v2891 = vmul.f32 %v2876, %v2380
    %v2892 = vmul.f32 %v2878, %v2381
    %v2893 = vmul.f32 %v2880, %v2382
    %v2894 = vmul.f32 %v2882, %v2383
    %v2895 = vmul.f32 %v2884, %v2384
    %v2896 = vmul.f32 %v2886, %v2385
    %v2897 = vmul.f32 %v2888, %v2386
    %v2898 = vmul.f32 %v2890, %v2387
    %v2899 = vsel %vm2842, %v2891, 0.0
    %2900 = vadd.xlane.f32.xlu0 %v2899
    %v2901 = vpop.xlane.xlu0 %2900
    %v2902 = vsel %vm2842, %v2892, 0.0
    %2903 = vadd.xlane.f32.xlu0 %v2902
    %v2904 = vpop.xlane.xlu0 %2903
    %v2905 = vsel %vm2842, %v2893, 0.0
    %2906 = vadd.xlane.f32.xlu0 %v2905
    %v2907 = vpop.xlane.xlu0 %2906
    %v2908 = vsel %vm2842, %v2894, 0.0
    %2909 = vadd.xlane.f32.xlu0 %v2908
    %v2910 = vpop.xlane.xlu0 %2909
    %v2911 = vsel %vm2842, %v2895, 0.0
    %2912 = vadd.xlane.f32.xlu0 %v2911
    %v2913 = vpop.xlane.xlu0 %2912
    %v2914 = vsel %vm2842, %v2896, 0.0
    %2915 = vadd.xlane.f32.xlu0 %v2914
    %v2916 = vpop.xlane.xlu0 %2915
    %v2917 = vsel %vm2842, %v2897, 0.0
    %2918 = vadd.xlane.f32.xlu0 %v2917
    %v2919 = vpop.xlane.xlu0 %2918
    %v2920 = vsel %vm2842, %v2898, 0.0
    %2921 = vadd.xlane.f32.xlu0 %v2920
    %v2922 = vpop.xlane.xlu0 %2921
    %v2923 = vrcp.pop %v2901
    %v2924 = vmul.f32 %v2901, %v2923
    %v2925 = vsub.f32 1.0, %v2924
    %v2926 = vmul.f32 %v2923, %v2925
    %v2927 = vadd.f32 %v2923, %v2926
    %vm2928 = vweird.f32 %v2901
    %vm2929 = vweird.f32 %v2923
    %vm2930 = vmor %vm2928, %vm2929
    %v2931 = vsel %vm2930, %v2923, %v2927
    %v2932 = vand.u32 2147483647, %v2901
    %vm2933 = vcmp.eq.f32.partialorder %v2932, 8.507059e+37
    %v2934 = vand.u32 %v2901, 2147483648
    %v2935 = vor.u32 1.1754944e-38, %v2934
    %v2936 = vsel %vm2933, %v2935, %v2931
    %v2937 = vmul.f32 %v2891, %v2936
    %v2938 = vrcp.pop %v2904
    %v2939 = vmul.f32 %v2904, %v2938
    %v2940 = vsub.f32 1.0, %v2939
    %v2941 = vmul.f32 %v2938, %v2940
    %v2942 = vadd.f32 %v2938, %v2941
    %vm2943 = vweird.f32 %v2904
    %vm2944 = vweird.f32 %v2938
    %vm2945 = vmor %vm2943, %vm2944
    %v2946 = vsel %vm2945, %v2938, %v2942
    %v2947 = vand.u32 2147483647, %v2904
    %vm2948 = vcmp.eq.f32.partialorder %v2947, 8.507059e+37
    %v2949 = vand.u32 %v2904, 2147483648
    %v2950 = vor.u32 1.1754944e-38, %v2949
    %v2951 = vsel %vm2948, %v2950, %v2946
    %v2952 = vmul.f32 %v2892, %v2951
    %v2953 = vrcp.pop %v2907
    %v2954 = vmul.f32 %v2907, %v2953
    %v2955 = vsub.f32 1.0, %v2954
    %v2956 = vmul.f32 %v2953, %v2955
    %v2957 = vadd.f32 %v2953, %v2956
    %vm2958 = vweird.f32 %v2907
    %vm2959 = vweird.f32 %v2953
    %vm2960 = vmor %vm2958, %vm2959
    %v2961 = vsel %vm2960, %v2953, %v2957
    %v2962 = vand.u32 2147483647, %v2907
    %vm2963 = vcmp.eq.f32.partialorder %v2962, 8.507059e+37
    %v2964 = vand.u32 %v2907, 2147483648
    %v2965 = vor.u32 1.1754944e-38, %v2964
    %v2966 = vsel %vm2963, %v2965, %v2961
    %v2967 = vmul.f32 %v2893, %v2966
    %v2968 = vrcp.pop %v2910
    %v2969 = vmul.f32 %v2910, %v2968
    %v2970 = vsub.f32 1.0, %v2969
    %v2971 = vmul.f32 %v2968, %v2970
    %v2972 = vadd.f32 %v2968, %v2971
    %vm2973 = vweird.f32 %v2910
    %vm2974 = vweird.f32 %v2968
    %vm2975 = vmor %vm2973, %vm2974
    %v2976 = vsel %vm2975, %v2968, %v2972
    %v2977 = vand.u32 2147483647, %v2910
    %vm2978 = vcmp.eq.f32.partialorder %v2977, 8.507059e+37
    %v2979 = vand.u32 %v2910, 2147483648
    %v2980 = vor.u32 1.1754944e-38, %v2979
    %v2981 = vsel %vm2978, %v2980, %v2976
    %v2982 = vmul.f32 %v2894, %v2981
    %v2983 = vrcp.pop %v2913
    %v2984 = vmul.f32 %v2913, %v2983
    %v2985 = vsub.f32 1.0, %v2984
    %v2986 = vmul.f32 %v2983, %v2985
    %v2987 = vadd.f32 %v2983, %v2986
    %vm2988 = vweird.f32 %v2913
    %vm2989 = vweird.f32 %v2983
    %vm2990 = vmor %vm2988, %vm2989
    %v2991 = vsel %vm2990, %v2983, %v2987
    %v2992 = vand.u32 2147483647, %v2913
    %vm2993 = vcmp.eq.f32.partialorder %v2992, 8.507059e+37
    %v2994 = vand.u32 %v2913, 2147483648
    %v2995 = vor.u32 1.1754944e-38, %v2994
    %v2996 = vsel %vm2993, %v2995, %v2991
    %v2997 = vmul.f32 %v2895, %v2996
    %v2998 = vrcp.pop %v2916
    %v2999 = vmul.f32 %v2916, %v2998
    %v3000 = vsub.f32 1.0, %v2999
    %v3001 = vmul.f32 %v2998, %v3000
    %v3002 = vadd.f32 %v2998, %v3001
    %vm3003 = vweird.f32 %v2916
    %vm3004 = vweird.f32 %v2998
    %vm3005 = vmor %vm3003, %vm3004
    %v3006 = vsel %vm3005, %v2998, %v3002
    %v3007 = vand.u32 2147483647, %v2916
    %vm3008 = vcmp.eq.f32.partialorder %v3007, 8.507059e+37
    %v3009 = vand.u32 %v2916, 2147483648
    %v3010 = vor.u32 1.1754944e-38, %v3009
    %v3011 = vsel %vm3008, %v3010, %v3006
    %v3012 = vmul.f32 %v2896, %v3011
    %v3013 = vrcp.pop %v2919
    %v3014 = vmul.f32 %v2919, %v3013
    %v3015 = vsub.f32 1.0, %v3014
    %v3016 = vmul.f32 %v3013, %v3015
    %v3017 = vadd.f32 %v3013, %v3016
    %vm3018 = vweird.f32 %v2919
    %vm3019 = vweird.f32 %v3013
    %vm3020 = vmor %vm3018, %vm3019
    %v3021 = vsel %vm3020, %v3013, %v3017
    %v3022 = vand.u32 2147483647, %v2919
    %vm3023 = vcmp.eq.f32.partialorder %v3022, 8.507059e+37
    %v3024 = vand.u32 %v2919, 2147483648
    %v3025 = vor.u32 1.1754944e-38, %v3024
    %v3026 = vsel %vm3023, %v3025, %v3021
    %v3027 = vmul.f32 %v2897, %v3026
    %v3028 = vrcp.pop %v2922
    %v3029 = vmul.f32 %v2922, %v3028
    %v3030 = vsub.f32 1.0, %v3029
    %v3031 = vmul.f32 %v3028, %v3030
    %v3032 = vadd.f32 %v3028, %v3031
    %vm3033 = vweird.f32 %v2922
    %vm3034 = vweird.f32 %v3028
    %vm3035 = vmor %vm3033, %vm3034
    %v3036 = vsel %vm3035, %v3028, %v3032
    %v3037 = vand.u32 2147483647, %v2922
    %vm3038 = vcmp.eq.f32.partialorder %v3037, 8.507059e+37
    %v3039 = vand.u32 %v2922, 2147483648
    %v3040 = vor.u32 1.1754944e-38, %v3039
    %v3041 = vsel %vm3038, %v3040, %v3036
    %v3042 = vmul.f32 %v2898, %v3041
    %v3044 = vsel %vm2842, %v2937, 0
    %v3047 = vsel %vm2842, %v2952, 0
    %v3050 = vsel %vm2842, %v2967, 0
    %v3053 = vsel %vm2842, %v2982, 0
    %v3056 = vsel %vm2842, %v2997, 0
    %v3059 = vsel %vm2842, %v3012, 0
    %v3062 = vsel %vm2842, %v3027, 0
    %v3065 = vsel %vm2842, %v3042, 0
    %vm3067 = vcmask 1043456
    %v3068 = vsel %vm3067, %v2379, 0
    %3070 = vmatpush.msra.mxu0 0.0
    %3071 = vmatpush.msra.mxu0 0.0
    %3072 = vmatpush.msra.mxu0 0.0
    %3073 = vmatpush.msra.mxu0 0.0
    %3074 = vmatpush.msra.mxu0 0.0
    %3075 = vmatpush.msra.mxu0 0.0
    %3076 = vmatpush.msra.mxu0 0.0
    %3077 = vmatpush.msra.mxu0 0.0
    %3078 = vmatpush.msra.mxu0 0.0
    %3079 = vmatpush.msra.mxu0 0.0
    %3080 = vmatpush.msra.mxu0 0.0
    %3081 = vmatpush.msra.mxu0 0.0
    %3082 = vmatpush.msra.mxu0 0.0
    %v3083 = vand.u32 %v3068, 4294901760
    %3084 = vmatpush.msra.mxu0 %v3083
    %v3085 = vand.u32 %v2378, 4294901760
    %3086 = vmatpush.msra.mxu0 %v3085
    %v3087 = vand.u32 %v2377, 4294901760
    %3088 = vmatpush.msra.mxu0 %v3087
    %v3089 = vand.u32 %v3044, 4294901760
    %v3090 = vsub.f32 %v3044, %v3089
    %v3091 = vand.u32 %v3090, 4294901760
    %v3092 = vsub.f32 %v3090, %v3091
    %v3093 = vand.u32 %v3092, 4294901760
    %3094 = vmatmul.f32.gmra.mxu0 %v3093
    %v3095 = vpop.f32.mrf.mxu0
    %v3096 = vadd.f32 0.0, %v3095
    %v3097 = vand.u32 %v3047, 4294901760
    %v3098 = vsub.f32 %v3047, %v3097
    %v3099 = vand.u32 %v3098, 4294901760
    %v3100 = vsub.f32 %v3098, %v3099
    %v3101 = vand.u32 %v3100, 4294901760
    %3102 = vmatmul.f32.gmra.mxu0 %v3101
    %v3103 = vpop.f32.mrf.mxu0
    %v3104 = vadd.f32 0.0, %v3103
    %v3105 = vand.u32 %v3050, 4294901760
    %v3106 = vsub.f32 %v3050, %v3105
    %v3107 = vand.u32 %v3106, 4294901760
    %v3108 = vsub.f32 %v3106, %v3107
    %v3109 = vand.u32 %v3108, 4294901760
    %3110 = vmatmul.f32.gmra.mxu0 %v3109
    %v3111 = vpop.f32.mrf.mxu0
    %v3112 = vadd.f32 0.0, %v3111
    %v3113 = vand.u32 %v3053, 4294901760
    %v3114 = vsub.f32 %v3053, %v3113
    %v3115 = vand.u32 %v3114, 4294901760
    %v3116 = vsub.f32 %v3114, %v3115
    %v3117 = vand.u32 %v3116, 4294901760
    %3118 = vmatmul.f32.gmra.mxu0 %v3117
    %v3119 = vpop.f32.mrf.mxu0
    %v3120 = vadd.f32 0.0, %v3119
    %v3121 = vand.u32 %v3056, 4294901760
    %v3122 = vsub.f32 %v3056, %v3121
    %v3123 = vand.u32 %v3122, 4294901760
    %v3124 = vsub.f32 %v3122, %v3123
    %v3125 = vand.u32 %v3124, 4294901760
    %3126 = vmatmul.f32.gmra.mxu0 %v3125
    %v3127 = vpop.f32.mrf.mxu0
    %v3128 = vadd.f32 0.0, %v3127
    %v3129 = vand.u32 %v3059, 4294901760
    %v3130 = vsub.f32 %v3059, %v3129
    %v3131 = vand.u32 %v3130, 4294901760
    %v3132 = vsub.f32 %v3130, %v3131
    %v3133 = vand.u32 %v3132, 4294901760
    %3134 = vmatmul.f32.gmra.mxu0 %v3133
    %v3135 = vpop.f32.mrf.mxu0
    %v3136 = vadd.f32 0.0, %v3135
    %v3137 = vand.u32 %v3062, 4294901760
    %v3138 = vsub.f32 %v3062, %v3137
    %v3139 = vand.u32 %v3138, 4294901760
    %v3140 = vsub.f32 %v3138, %v3139
    %v3141 = vand.u32 %v3140, 4294901760
    %3142 = vmatmul.f32.gmra.mxu0 %v3141
    %v3143 = vpop.f32.mrf.mxu0
    %v3144 = vadd.f32 0.0, %v3143
    %v3145 = vand.u32 %v3065, 4294901760
    %v3146 = vsub.f32 %v3065, %v3145
    %v3147 = vand.u32 %v3146, 4294901760
    %v3148 = vsub.f32 %v3146, %v3147
    %v3149 = vand.u32 %v3148, 4294901760
    %3150 = vmatmul.f32.gmra.mxu0 %v3149
    %v3151 = vpop.f32.mrf.mxu0
    %v3152 = vadd.f32 0.0, %v3151
    %3153 = vdwg.mxu0
    %3154 = vmatpush.msra.mxu0 0.0
    %3155 = vmatpush.msra.mxu0 0.0
    %3156 = vmatpush.msra.mxu0 0.0
    %3157 = vmatpush.msra.mxu0 0.0
    %3158 = vmatpush.msra.mxu0 0.0
    %3159 = vmatpush.msra.mxu0 0.0
    %3160 = vmatpush.msra.mxu0 0.0
    %3161 = vmatpush.msra.mxu0 0.0
    %3162 = vmatpush.msra.mxu0 0.0
    %3163 = vmatpush.msra.mxu0 0.0
    %3164 = vmatpush.msra.mxu0 0.0
    %3165 = vmatpush.msra.mxu0 0.0
    %3166 = vmatpush.msra.mxu0 0.0
    %v3167 = vand.u32 %v3068, 4294901760
    %v3168 = vsub.f32 %v3068, %v3167
    %v3169 = vand.u32 %v3168, 4294901760
    %v3170 = vsub.f32 %v3168, %v3169
    %v3171 = vand.u32 %v3170, 4294901760
    %3172 = vmatpush.msra.mxu0 %v3171
    %v3173 = vand.u32 %v2378, 4294901760
    %v3174 = vsub.f32 %v2378, %v3173
    %v3175 = vand.u32 %v3174, 4294901760
    %v3176 = vsub.f32 %v3174, %v3175
    %v3177 = vand.u32 %v3176, 4294901760
    %3178 = vmatpush.msra.mxu0 %v3177
    %v3179 = vand.u32 %v2377, 4294901760
    %v3180 = vsub.f32 %v2377, %v3179
    %v3181 = vand.u32 %v3180, 4294901760
    %v3182 = vsub.f32 %v3180, %v3181
    %v3183 = vand.u32 %v3182, 4294901760
    %3184 = vmatpush.msra.mxu0 %v3183
    %v3185 = vand.u32 %v3044, 4294901760
    %3186 = vmatmul.f32.gmra.mxu0 %v3185
    %v3187 = vpop.f32.mrf.mxu0
    %v3188 = vadd.f32 %v3096, %v3187
    %v3189 = vand.u32 %v3047, 4294901760
    %3190 = vmatmul.f32.gmra.mxu0 %v3189
    %v3191 = vpop.f32.mrf.mxu0
    %v3192 = vadd.f32 %v3104, %v3191
    %v3193 = vand.u32 %v3050, 4294901760
    %3194 = vmatmul.f32.gmra.mxu0 %v3193
    %v3195 = vpop.f32.mrf.mxu0
    %v3196 = vadd.f32 %v3112, %v3195
    %v3197 = vand.u32 %v3053, 4294901760
    %3198 = vmatmul.f32.gmra.mxu0 %v3197
    %v3199 = vpop.f32.mrf.mxu0
    %v3200 = vadd.f32 %v3120, %v3199
    %v3201 = vand.u32 %v3056, 4294901760
    %3202 = vmatmul.f32.gmra.mxu0 %v3201
    %v3203 = vpop.f32.mrf.mxu0
    %v3204 = vadd.f32 %v3128, %v3203
    %v3205 = vand.u32 %v3059, 4294901760
    %3206 = vmatmul.f32.gmra.mxu0 %v3205
    %v3207 = vpop.f32.mrf.mxu0
    %v3208 = vadd.f32 %v3136, %v3207
    %v3209 = vand.u32 %v3062, 4294901760
    %3210 = vmatmul.f32.gmra.mxu0 %v3209
    %v3211 = vpop.f32.mrf.mxu0
    %v3212 = vadd.f32 %v3144, %v3211
    %v3213 = vand.u32 %v3065, 4294901760
    %3214 = vmatmul.f32.gmra.mxu0 %v3213
    %v3215 = vpop.f32.mrf.mxu0
    %v3216 = vadd.f32 %v3152, %v3215
    %3217 = vdwg.mxu0
    %3218 = vmatpush.msra.mxu0 0.0
    %3219 = vmatpush.msra.mxu0 0.0
    %3220 = vmatpush.msra.mxu0 0.0
    %3221 = vmatpush.msra.mxu0 0.0
    %3222 = vmatpush.msra.mxu0 0.0
    %3223 = vmatpush.msra.mxu0 0.0
    %3224 = vmatpush.msra.mxu0 0.0
    %3225 = vmatpush.msra.mxu0 0.0
    %3226 = vmatpush.msra.mxu0 0.0
    %3227 = vmatpush.msra.mxu0 0.0
    %3228 = vmatpush.msra.mxu0 0.0
    %3229 = vmatpush.msra.mxu0 0.0
    %3230 = vmatpush.msra.mxu0 0.0
    %v3231 = vand.u32 %v3068, 4294901760
    %v3232 = vsub.f32 %v3068, %v3231
    %3233 = vmatpush.msra.mxu0 %v3232
    %v3234 = vand.u32 %v2378, 4294901760
    %v3235 = vsub.f32 %v2378, %v3234
    %3236 = vmatpush.msra.mxu0 %v3235
    %v3237 = vand.u32 %v2377, 4294901760
    %v3238 = vsub.f32 %v2377, %v3237
    %3239 = vmatpush.msra.mxu0 %v3238
    %v3240 = vand.u32 %v3044, 4294901760
    %v3241 = vsub.f32 %v3044, %v3240
    %3242 = vmatmul.f32.gmra.mxu0 %v3241
    %v3243 = vpop.f32.mrf.mxu0
    %v3244 = vadd.f32 %v3188, %v3243
    %v3245 = vand.u32 %v3047, 4294901760
    %v3246 = vsub.f32 %v3047, %v3245
    %3247 = vmatmul.f32.gmra.mxu0 %v3246
    %v3248 = vpop.f32.mrf.mxu0
    %v3249 = vadd.f32 %v3192, %v3248
    %v3250 = vand.u32 %v3050, 4294901760
    %v3251 = vsub.f32 %v3050, %v3250
    %3252 = vmatmul.f32.gmra.mxu0 %v3251
    %v3253 = vpop.f32.mrf.mxu0
    %v3254 = vadd.f32 %v3196, %v3253
    %v3255 = vand.u32 %v3053, 4294901760
    %v3256 = vsub.f32 %v3053, %v3255
    %3257 = vmatmul.f32.gmra.mxu0 %v3256
    %v3258 = vpop.f32.mrf.mxu0
    %v3259 = vadd.f32 %v3200, %v3258
    %v3260 = vand.u32 %v3056, 4294901760
    %v3261 = vsub.f32 %v3056, %v3260
    %3262 = vmatmul.f32.gmra.mxu0 %v3261
    %v3263 = vpop.f32.mrf.mxu0
    %v3264 = vadd.f32 %v3204, %v3263
    %v3265 = vand.u32 %v3059, 4294901760
    %v3266 = vsub.f32 %v3059, %v3265
    %3267 = vmatmul.f32.gmra.mxu0 %v3266
    %v3268 = vpop.f32.mrf.mxu0
    %v3269 = vadd.f32 %v3208, %v3268
    %v3270 = vand.u32 %v3062, 4294901760
    %v3271 = vsub.f32 %v3062, %v3270
    %3272 = vmatmul.f32.gmra.mxu0 %v3271
    %v3273 = vpop.f32.mrf.mxu0
    %v3274 = vadd.f32 %v3212, %v3273
    %v3275 = vand.u32 %v3065, 4294901760
    %v3276 = vsub.f32 %v3065, %v3275
    %3277 = vmatmul.f32.gmra.mxu0 %v3276
    %v3278 = vpop.f32.mrf.mxu0
    %v3279 = vadd.f32 %v3216, %v3278
    %3280 = vdwg.mxu0
    %3281 = vmatpush.msra.mxu0 0.0
    %3282 = vmatpush.msra.mxu0 0.0
    %3283 = vmatpush.msra.mxu0 0.0
    %3284 = vmatpush.msra.mxu0 0.0
    %3285 = vmatpush.msra.mxu0 0.0
    %3286 = vmatpush.msra.mxu0 0.0
    %3287 = vmatpush.msra.mxu0 0.0
    %3288 = vmatpush.msra.mxu0 0.0
    %3289 = vmatpush.msra.mxu0 0.0
    %3290 = vmatpush.msra.mxu0 0.0
    %3291 = vmatpush.msra.mxu0 0.0
    %3292 = vmatpush.msra.mxu0 0.0
    %3293 = vmatpush.msra.mxu0 0.0
    %v3294 = vand.u32 %v3068, 4294901760
    %3295 = vmatpush.msra.mxu0 %v3294
    %v3296 = vand.u32 %v2378, 4294901760
    %3297 = vmatpush.msra.mxu0 %v3296
    %v3298 = vand.u32 %v2377, 4294901760
    %3299 = vmatpush.msra.mxu0 %v3298
    %v3300 = vand.u32 %v3044, 4294901760
    %v3301 = vsub.f32 %v3044, %v3300
    %v3302 = vand.u32 %v3301, 4294901760
    %3303 = vmatmul.f32.gmra.mxu0 %v3302
    %v3304 = vpop.f32.mrf.mxu0
    %v3305 = vadd.f32 %v3244, %v3304
    %v3306 = vand.u32 %v3047, 4294901760
    %v3307 = vsub.f32 %v3047, %v3306
    %v3308 = vand.u32 %v3307, 4294901760
    %3309 = vmatmul.f32.gmra.mxu0 %v3308
    %v3310 = vpop.f32.mrf.mxu0
    %v3311 = vadd.f32 %v3249, %v3310
    %v3312 = vand.u32 %v3050, 4294901760
    %v3313 = vsub.f32 %v3050, %v3312
    %v3314 = vand.u32 %v3313, 4294901760
    %3315 = vmatmul.f32.gmra.mxu0 %v3314
    %v3316 = vpop.f32.mrf.mxu0
    %v3317 = vadd.f32 %v3254, %v3316
    %v3318 = vand.u32 %v3053, 4294901760
    %v3319 = vsub.f32 %v3053, %v3318
    %v3320 = vand.u32 %v3319, 4294901760
    %3321 = vmatmul.f32.gmra.mxu0 %v3320
    %v3322 = vpop.f32.mrf.mxu0
    %v3323 = vadd.f32 %v3259, %v3322
    %v3324 = vand.u32 %v3056, 4294901760
    %v3325 = vsub.f32 %v3056, %v3324
    %v3326 = vand.u32 %v3325, 4294901760
    %3327 = vmatmul.f32.gmra.mxu0 %v3326
    %v3328 = vpop.f32.mrf.mxu0
    %v3329 = vadd.f32 %v3264, %v3328
    %v3330 = vand.u32 %v3059, 4294901760
    %v3331 = vsub.f32 %v3059, %v3330
    %v3332 = vand.u32 %v3331, 4294901760
    %3333 = vmatmul.f32.gmra.mxu0 %v3332
    %v3334 = vpop.f32.mrf.mxu0
    %v3335 = vadd.f32 %v3269, %v3334
    %v3336 = vand.u32 %v3062, 4294901760
    %v3337 = vsub.f32 %v3062, %v3336
    %v3338 = vand.u32 %v3337, 4294901760
    %3339 = vmatmul.f32.gmra.mxu0 %v3338
    %v3340 = vpop.f32.mrf.mxu0
    %v3341 = vadd.f32 %v3274, %v3340
    %v3342 = vand.u32 %v3065, 4294901760
    %v3343 = vsub.f32 %v3065, %v3342
    %v3344 = vand.u32 %v3343, 4294901760
    %3345 = vmatmul.f32.gmra.mxu0 %v3344
    %v3346 = vpop.f32.mrf.mxu0
    %v3347 = vadd.f32 %v3279, %v3346
    %3348 = vdwg.mxu0
    %3349 = vmatpush.msra.mxu0 0.0
    %3350 = vmatpush.msra.mxu0 0.0
    %3351 = vmatpush.msra.mxu0 0.0
    %3352 = vmatpush.msra.mxu0 0.0
    %3353 = vmatpush.msra.mxu0 0.0
    %3354 = vmatpush.msra.mxu0 0.0
    %3355 = vmatpush.msra.mxu0 0.0
    %3356 = vmatpush.msra.mxu0 0.0
    %3357 = vmatpush.msra.mxu0 0.0
    %3358 = vmatpush.msra.mxu0 0.0
    %3359 = vmatpush.msra.mxu0 0.0
    %3360 = vmatpush.msra.mxu0 0.0
    %3361 = vmatpush.msra.mxu0 0.0
    %v3362 = vand.u32 %v3068, 4294901760
    %v3363 = vsub.f32 %v3068, %v3362
    %v3364 = vand.u32 %v3363, 4294901760
    %3365 = vmatpush.msra.mxu0 %v3364
    %v3366 = vand.u32 %v2378, 4294901760
    %v3367 = vsub.f32 %v2378, %v3366
    %v3368 = vand.u32 %v3367, 4294901760
    %3369 = vmatpush.msra.mxu0 %v3368
    %v3370 = vand.u32 %v2377, 4294901760
    %v3371 = vsub.f32 %v2377, %v3370
    %v3372 = vand.u32 %v3371, 4294901760
    %3373 = vmatpush.msra.mxu0 %v3372
    %v3374 = vand.u32 %v3044, 4294901760
    %3375 = vmatmul.f32.gmra.mxu0 %v3374
    %v3376 = vpop.f32.mrf.mxu0
    %v3377 = vadd.f32 %v3305, %v3376
    %v3378 = vand.u32 %v3047, 4294901760
    %3379 = vmatmul.f32.gmra.mxu0 %v3378
    %v3380 = vpop.f32.mrf.mxu0
    %v3381 = vadd.f32 %v3311, %v3380
    %v3382 = vand.u32 %v3050, 4294901760
    %3383 = vmatmul.f32.gmra.mxu0 %v3382
    %v3384 = vpop.f32.mrf.mxu0
    %v3385 = vadd.f32 %v3317, %v3384
    %v3386 = vand.u32 %v3053, 4294901760
    %3387 = vmatmul.f32.gmra.mxu0 %v3386
    %v3388 = vpop.f32.mrf.mxu0
    %v3389 = vadd.f32 %v3323, %v3388
    %v3390 = vand.u32 %v3056, 4294901760
    %3391 = vmatmul.f32.gmra.mxu0 %v3390
    %v3392 = vpop.f32.mrf.mxu0
    %v3393 = vadd.f32 %v3329, %v3392
    %v3394 = vand.u32 %v3059, 4294901760
    %3395 = vmatmul.f32.gmra.mxu0 %v3394
    %v3396 = vpop.f32.mrf.mxu0
    %v3397 = vadd.f32 %v3335, %v3396
    %v3398 = vand.u32 %v3062, 4294901760
    %3399 = vmatmul.f32.gmra.mxu0 %v3398
    %v3400 = vpop.f32.mrf.mxu0
    %v3401 = vadd.f32 %v3341, %v3400
    %v3402 = vand.u32 %v3065, 4294901760
    %3403 = vmatmul.f32.gmra.mxu0 %v3402
    %v3404 = vpop.f32.mrf.mxu0
    %v3405 = vadd.f32 %v3347, %v3404
    %3406 = vdwg.mxu0
    %3407 = vmatpush.msra.mxu0 0.0
    %3408 = vmatpush.msra.mxu0 0.0
    %3409 = vmatpush.msra.mxu0 0.0
    %3410 = vmatpush.msra.mxu0 0.0
    %3411 = vmatpush.msra.mxu0 0.0
    %3412 = vmatpush.msra.mxu0 0.0
    %3413 = vmatpush.msra.mxu0 0.0
    %3414 = vmatpush.msra.mxu0 0.0
    %3415 = vmatpush.msra.mxu0 0.0
    %3416 = vmatpush.msra.mxu0 0.0
    %3417 = vmatpush.msra.mxu0 0.0
    %3418 = vmatpush.msra.mxu0 0.0
    %3419 = vmatpush.msra.mxu0 0.0
    %v3420 = vand.u32 %v3068, 4294901760
    %3421 = vmatpush.msra.mxu0 %v3420
    %v3422 = vand.u32 %v2378, 4294901760
    %3423 = vmatpush.msra.mxu0 %v3422
    %v3424 = vand.u32 %v2377, 4294901760
    %3425 = vmatpush.msra.mxu0 %v3424
    %v3426 = vand.u32 %v3044, 4294901760
    %3427 = vmatmul.f32.gmra.mxu0 %v3426
    %v3428 = vpop.f32.mrf.mxu0
    %v3429 = vadd.f32 %v3377, %v3428
    %v3430 = vand.u32 %v3047, 4294901760
    %3431 = vmatmul.f32.gmra.mxu0 %v3430
    %v3432 = vpop.f32.mrf.mxu0
    %v3433 = vadd.f32 %v3381, %v3432
    %v3434 = vand.u32 %v3050, 4294901760
    %3435 = vmatmul.f32.gmra.mxu0 %v3434
    %v3436 = vpop.f32.mrf.mxu0
    %v3437 = vadd.f32 %v3385, %v3436
    %v3438 = vand.u32 %v3053, 4294901760
    %3439 = vmatmul.f32.gmra.mxu0 %v3438
    %v3440 = vpop.f32.mrf.mxu0
    %v3441 = vadd.f32 %v3389, %v3440
    %v3442 = vand.u32 %v3056, 4294901760
    %3443 = vmatmul.f32.gmra.mxu0 %v3442
    %v3444 = vpop.f32.mrf.mxu0
    %v3445 = vadd.f32 %v3393, %v3444
    %v3446 = vand.u32 %v3059, 4294901760
    %3447 = vmatmul.f32.gmra.mxu0 %v3446
    %v3448 = vpop.f32.mrf.mxu0
    %v3449 = vadd.f32 %v3397, %v3448
    %v3450 = vand.u32 %v3062, 4294901760
    %3451 = vmatmul.f32.gmra.mxu0 %v3450
    %v3452 = vpop.f32.mrf.mxu0
    %v3453 = vadd.f32 %v3401, %v3452
    %v3454 = vand.u32 %v3065, 4294901760
    %3455 = vmatmul.f32.gmra.mxu0 %v3454
    %v3456 = vpop.f32.mrf.mxu0
    %v3457 = vadd.f32 %v3405, %v3456
    %3458 = vdwg.mxu0
    %v3459 = vld [vmem:[%s9] sm:$0xff]
    %v3460 = vld [vmem:[%s9 + $0x8] sm:$0xff]
    %v3461 = vld [vmem:[%s9 + $0x10] sm:$0xff]
    %v3462 = vld [vmem:[%s9 + $0x18] sm:$0xff]
    %v3463 = vld [vmem:[%s9 + $0x20] sm:$0xff]
    %v3464 = vld [vmem:[%s9 + $0x28] sm:$0xff]
    %v3465 = vld [vmem:[%s9 + $0x30] sm:$0xff]
    %v3466 = vld [vmem:[%s9 + $0x38] sm:$0xff]
    %v3468 = vsel %vm465, %v3429, 0
    %v3471 = vsel %vm465, %v3433, 0
    %v3474 = vsel %vm465, %v3437, 0
    %v3477 = vsel %vm465, %v3441, 0
    %v3480 = vsel %vm465, %v3445, 0
    %v3483 = vsel %vm465, %v3449, 0
    %v3486 = vsel %vm465, %v3453, 0
    %v3489 = vsel %vm465, %v3457, 0
    %3491 = vmatpush.msra.mxu0 0.0
    %3492 = vmatpush.msra.mxu0 0.0
    %3493 = vmatpush.msra.mxu0 0.0
    %3494 = vmatpush.msra.mxu0 0.0
    %3495 = vmatpush.msra.mxu0 0.0
    %3496 = vmatpush.msra.mxu0 0.0
    %3497 = vmatpush.msra.mxu0 0.0
    %3498 = vmatpush.msra.mxu0 0.0
    %3499 = vmatpush.msra.mxu0 0.0
    %3500 = vmatpush.msra.mxu0 0.0
    %3501 = vmatpush.msra.mxu0 0.0
    %3502 = vmatpush.msra.mxu0 0.0
    %v3503 = vand.u32 %v3466, 4294901760
    %3504 = vmatpush.msra.mxu0 %v3503
    %v3505 = vand.u32 %v3465, 4294901760
    %3506 = vmatpush.msra.mxu0 %v3505
    %v3507 = vand.u32 %v3464, 4294901760
    %3508 = vmatpush.msra.mxu0 %v3507
    %v3509 = vand.u32 %v3463, 4294901760
    %3510 = vmatpush.msra.mxu0 %v3509
    %v3511 = vand.u32 %v3468, 4294901760
    %v3512 = vsub.f32 %v3468, %v3511
    %v3513 = vand.u32 %v3512, 4294901760
    %v3514 = vsub.f32 %v3512, %v3513
    %v3515 = vand.u32 %v3514, 4294901760
    %3516 = vmatmul.f32.gmra.mxu0 %v3515
    %v3517 = vpop.f32.mrf.mxu0
    %v3518 = vadd.f32 0.0, %v3517
    %v3519 = vand.u32 %v3471, 4294901760
    %v3520 = vsub.f32 %v3471, %v3519
    %v3521 = vand.u32 %v3520, 4294901760
    %v3522 = vsub.f32 %v3520, %v3521
    %v3523 = vand.u32 %v3522, 4294901760
    %3524 = vmatmul.f32.gmra.mxu0 %v3523
    %v3525 = vpop.f32.mrf.mxu0
    %v3526 = vadd.f32 0.0, %v3525
    %v3527 = vand.u32 %v3474, 4294901760
    %v3528 = vsub.f32 %v3474, %v3527
    %v3529 = vand.u32 %v3528, 4294901760
    %v3530 = vsub.f32 %v3528, %v3529
    %v3531 = vand.u32 %v3530, 4294901760
    %3532 = vmatmul.f32.gmra.mxu0 %v3531
    %v3533 = vpop.f32.mrf.mxu0
    %v3534 = vadd.f32 0.0, %v3533
    %v3535 = vand.u32 %v3477, 4294901760
    %v3536 = vsub.f32 %v3477, %v3535
    %v3537 = vand.u32 %v3536, 4294901760
    %v3538 = vsub.f32 %v3536, %v3537
    %v3539 = vand.u32 %v3538, 4294901760
    %3540 = vmatmul.f32.gmra.mxu0 %v3539
    %v3541 = vpop.f32.mrf.mxu0
    %v3542 = vadd.f32 0.0, %v3541
    %v3543 = vand.u32 %v3480, 4294901760
    %v3544 = vsub.f32 %v3480, %v3543
    %v3545 = vand.u32 %v3544, 4294901760
    %v3546 = vsub.f32 %v3544, %v3545
    %v3547 = vand.u32 %v3546, 4294901760
    %3548 = vmatmul.f32.gmra.mxu0 %v3547
    %v3549 = vpop.f32.mrf.mxu0
    %v3550 = vadd.f32 0.0, %v3549
    %v3551 = vand.u32 %v3483, 4294901760
    %v3552 = vsub.f32 %v3483, %v3551
    %v3553 = vand.u32 %v3552, 4294901760
    %v3554 = vsub.f32 %v3552, %v3553
    %v3555 = vand.u32 %v3554, 4294901760
    %3556 = vmatmul.f32.gmra.mxu0 %v3555
    %v3557 = vpop.f32.mrf.mxu0
    %v3558 = vadd.f32 0.0, %v3557
    %v3559 = vand.u32 %v3486, 4294901760
    %v3560 = vsub.f32 %v3486, %v3559
    %v3561 = vand.u32 %v3560, 4294901760
    %v3562 = vsub.f32 %v3560, %v3561
    %v3563 = vand.u32 %v3562, 4294901760
    %3564 = vmatmul.f32.gmra.mxu0 %v3563
    %v3565 = vpop.f32.mrf.mxu0
    %v3566 = vadd.f32 0.0, %v3565
    %v3567 = vand.u32 %v3489, 4294901760
    %v3568 = vsub.f32 %v3489, %v3567
    %v3569 = vand.u32 %v3568, 4294901760
    %v3570 = vsub.f32 %v3568, %v3569
    %v3571 = vand.u32 %v3570, 4294901760
    %3572 = vmatmul.f32.gmra.mxu0 %v3571
    %v3573 = vpop.f32.mrf.mxu0
    %v3574 = vadd.f32 0.0, %v3573
    %3575 = vdwg.mxu0
    %3576 = vmatpush.msra.mxu0 0.0
    %3577 = vmatpush.msra.mxu0 0.0
    %3578 = vmatpush.msra.mxu0 0.0
    %3579 = vmatpush.msra.mxu0 0.0
    %3580 = vmatpush.msra.mxu0 0.0
    %3581 = vmatpush.msra.mxu0 0.0
    %3582 = vmatpush.msra.mxu0 0.0
    %3583 = vmatpush.msra.mxu0 0.0
    %3584 = vmatpush.msra.mxu0 0.0
    %3585 = vmatpush.msra.mxu0 0.0
    %3586 = vmatpush.msra.mxu0 0.0
    %3587 = vmatpush.msra.mxu0 0.0
    %v3588 = vand.u32 %v3466, 4294901760
    %v3589 = vsub.f32 %v3466, %v3588
    %v3590 = vand.u32 %v3589, 4294901760
    %v3591 = vsub.f32 %v3589, %v3590
    %v3592 = vand.u32 %v3591, 4294901760
    %3593 = vmatpush.msra.mxu0 %v3592
    %v3594 = vand.u32 %v3465, 4294901760
    %v3595 = vsub.f32 %v3465, %v3594
    %v3596 = vand.u32 %v3595, 4294901760
    %v3597 = vsub.f32 %v3595, %v3596
    %v3598 = vand.u32 %v3597, 4294901760
    %3599 = vmatpush.msra.mxu0 %v3598
    %v3600 = vand.u32 %v3464, 4294901760
    %v3601 = vsub.f32 %v3464, %v3600
    %v3602 = vand.u32 %v3601, 4294901760
    %v3603 = vsub.f32 %v3601, %v3602
    %v3604 = vand.u32 %v3603, 4294901760
    %3605 = vmatpush.msra.mxu0 %v3604
    %v3606 = vand.u32 %v3463, 4294901760
    %v3607 = vsub.f32 %v3463, %v3606
    %v3608 = vand.u32 %v3607, 4294901760
    %v3609 = vsub.f32 %v3607, %v3608
    %v3610 = vand.u32 %v3609, 4294901760
    %3611 = vmatpush.msra.mxu0 %v3610
    %v3612 = vand.u32 %v3468, 4294901760
    %3613 = vmatmul.f32.gmra.mxu0 %v3612
    %v3614 = vpop.f32.mrf.mxu0
    %v3615 = vadd.f32 %v3518, %v3614
    %v3616 = vand.u32 %v3471, 4294901760
    %3617 = vmatmul.f32.gmra.mxu0 %v3616
    %v3618 = vpop.f32.mrf.mxu0
    %v3619 = vadd.f32 %v3526, %v3618
    %v3620 = vand.u32 %v3474, 4294901760
    %3621 = vmatmul.f32.gmra.mxu0 %v3620
    %v3622 = vpop.f32.mrf.mxu0
    %v3623 = vadd.f32 %v3534, %v3622
    %v3624 = vand.u32 %v3477, 4294901760
    %3625 = vmatmul.f32.gmra.mxu0 %v3624
    %v3626 = vpop.f32.mrf.mxu0
    %v3627 = vadd.f32 %v3542, %v3626
    %v3628 = vand.u32 %v3480, 4294901760
    %3629 = vmatmul.f32.gmra.mxu0 %v3628
    %v3630 = vpop.f32.mrf.mxu0
    %v3631 = vadd.f32 %v3550, %v3630
    %v3632 = vand.u32 %v3483, 4294901760
    %3633 = vmatmul.f32.gmra.mxu0 %v3632
    %v3634 = vpop.f32.mrf.mxu0
    %v3635 = vadd.f32 %v3558, %v3634
    %v3636 = vand.u32 %v3486, 4294901760
    %3637 = vmatmul.f32.gmra.mxu0 %v3636
    %v3638 = vpop.f32.mrf.mxu0
    %v3639 = vadd.f32 %v3566, %v3638
    %v3640 = vand.u32 %v3489, 4294901760
    %3641 = vmatmul.f32.gmra.mxu0 %v3640
    %v3642 = vpop.f32.mrf.mxu0
    %v3643 = vadd.f32 %v3574, %v3642
    %3644 = vdwg.mxu0
    %3645 = vmatpush.msra.mxu0 0.0
    %3646 = vmatpush.msra.mxu0 0.0
    %3647 = vmatpush.msra.mxu0 0.0
    %3648 = vmatpush.msra.mxu0 0.0
    %3649 = vmatpush.msra.mxu0 0.0
    %3650 = vmatpush.msra.mxu0 0.0
    %3651 = vmatpush.msra.mxu0 0.0
    %3652 = vmatpush.msra.mxu0 0.0
    %3653 = vmatpush.msra.mxu0 0.0
    %3654 = vmatpush.msra.mxu0 0.0
    %3655 = vmatpush.msra.mxu0 0.0
    %3656 = vmatpush.msra.mxu0 0.0
    %v3657 = vand.u32 %v3466, 4294901760
    %v3658 = vsub.f32 %v3466, %v3657
    %3659 = vmatpush.msra.mxu0 %v3658
    %v3660 = vand.u32 %v3465, 4294901760
    %v3661 = vsub.f32 %v3465, %v3660
    %3662 = vmatpush.msra.mxu0 %v3661
    %v3663 = vand.u32 %v3464, 4294901760
    %v3664 = vsub.f32 %v3464, %v3663
    %3665 = vmatpush.msra.mxu0 %v3664
    %v3666 = vand.u32 %v3463, 4294901760
    %v3667 = vsub.f32 %v3463, %v3666
    %3668 = vmatpush.msra.mxu0 %v3667
    %v3669 = vand.u32 %v3468, 4294901760
    %v3670 = vsub.f32 %v3468, %v3669
    %3671 = vmatmul.f32.gmra.mxu0 %v3670
    %v3672 = vpop.f32.mrf.mxu0
    %v3673 = vadd.f32 %v3615, %v3672
    %v3674 = vand.u32 %v3471, 4294901760
    %v3675 = vsub.f32 %v3471, %v3674
    %3676 = vmatmul.f32.gmra.mxu0 %v3675
    %v3677 = vpop.f32.mrf.mxu0
    %v3678 = vadd.f32 %v3619, %v3677
    %v3679 = vand.u32 %v3474, 4294901760
    %v3680 = vsub.f32 %v3474, %v3679
    %3681 = vmatmul.f32.gmra.mxu0 %v3680
    %v3682 = vpop.f32.mrf.mxu0
    %v3683 = vadd.f32 %v3623, %v3682
    %v3684 = vand.u32 %v3477, 4294901760
    %v3685 = vsub.f32 %v3477, %v3684
    %3686 = vmatmul.f32.gmra.mxu0 %v3685
    %v3687 = vpop.f32.mrf.mxu0
    %v3688 = vadd.f32 %v3627, %v3687
    %v3689 = vand.u32 %v3480, 4294901760
    %v3690 = vsub.f32 %v3480, %v3689
    %3691 = vmatmul.f32.gmra.mxu0 %v3690
    %v3692 = vpop.f32.mrf.mxu0
    %v3693 = vadd.f32 %v3631, %v3692
    %v3694 = vand.u32 %v3483, 4294901760
    %v3695 = vsub.f32 %v3483, %v3694
    %3696 = vmatmul.f32.gmra.mxu0 %v3695
    %v3697 = vpop.f32.mrf.mxu0
    %v3698 = vadd.f32 %v3635, %v3697
    %v3699 = vand.u32 %v3486, 4294901760
    %v3700 = vsub.f32 %v3486, %v3699
    %3701 = vmatmul.f32.gmra.mxu0 %v3700
    %v3702 = vpop.f32.mrf.mxu0
    %v3703 = vadd.f32 %v3639, %v3702
    %v3704 = vand.u32 %v3489, 4294901760
    %v3705 = vsub.f32 %v3489, %v3704
    %3706 = vmatmul.f32.gmra.mxu0 %v3705
    %v3707 = vpop.f32.mrf.mxu0
    %v3708 = vadd.f32 %v3643, %v3707
    %3709 = vdwg.mxu0
    %3710 = vmatpush.msra.mxu0 0.0
    %3711 = vmatpush.msra.mxu0 0.0
    %3712 = vmatpush.msra.mxu0 0.0
    %3713 = vmatpush.msra.mxu0 0.0
    %3714 = vmatpush.msra.mxu0 0.0
    %3715 = vmatpush.msra.mxu0 0.0
    %3716 = vmatpush.msra.mxu0 0.0
    %3717 = vmatpush.msra.mxu0 0.0
    %3718 = vmatpush.msra.mxu0 0.0
    %3719 = vmatpush.msra.mxu0 0.0
    %3720 = vmatpush.msra.mxu0 0.0
    %3721 = vmatpush.msra.mxu0 0.0
    %v3722 = vand.u32 %v3466, 4294901760
    %3723 = vmatpush.msra.mxu0 %v3722
    %v3724 = vand.u32 %v3465, 4294901760
    %3725 = vmatpush.msra.mxu0 %v3724
    %v3726 = vand.u32 %v3464, 4294901760
    %3727 = vmatpush.msra.mxu0 %v3726
    %v3728 = vand.u32 %v3463, 4294901760
    %3729 = vmatpush.msra.mxu0 %v3728
    %v3730 = vand.u32 %v3468, 4294901760
    %v3731 = vsub.f32 %v3468, %v3730
    %v3732 = vand.u32 %v3731, 4294901760
    %3733 = vmatmul.f32.gmra.mxu0 %v3732
    %v3734 = vpop.f32.mrf.mxu0
    %v3735 = vadd.f32 %v3673, %v3734
    %v3736 = vand.u32 %v3471, 4294901760
    %v3737 = vsub.f32 %v3471, %v3736
    %v3738 = vand.u32 %v3737, 4294901760
    %3739 = vmatmul.f32.gmra.mxu0 %v3738
    %v3740 = vpop.f32.mrf.mxu0
    %v3741 = vadd.f32 %v3678, %v3740
    %v3742 = vand.u32 %v3474, 4294901760
    %v3743 = vsub.f32 %v3474, %v3742
    %v3744 = vand.u32 %v3743, 4294901760
    %3745 = vmatmul.f32.gmra.mxu0 %v3744
    %v3746 = vpop.f32.mrf.mxu0
    %v3747 = vadd.f32 %v3683, %v3746
    %v3748 = vand.u32 %v3477, 4294901760
    %v3749 = vsub.f32 %v3477, %v3748
    %v3750 = vand.u32 %v3749, 4294901760
    %3751 = vmatmul.f32.gmra.mxu0 %v3750
    %v3752 = vpop.f32.mrf.mxu0
    %v3753 = vadd.f32 %v3688, %v3752
    %v3754 = vand.u32 %v3480, 4294901760
    %v3755 = vsub.f32 %v3480, %v3754
    %v3756 = vand.u32 %v3755, 4294901760
    %3757 = vmatmul.f32.gmra.mxu0 %v3756
    %v3758 = vpop.f32.mrf.mxu0
    %v3759 = vadd.f32 %v3693, %v3758
    %v3760 = vand.u32 %v3483, 4294901760
    %v3761 = vsub.f32 %v3483, %v3760
    %v3762 = vand.u32 %v3761, 4294901760
    %3763 = vmatmul.f32.gmra.mxu0 %v3762
    %v3764 = vpop.f32.mrf.mxu0
    %v3765 = vadd.f32 %v3698, %v3764
    %v3766 = vand.u32 %v3486, 4294901760
    %v3767 = vsub.f32 %v3486, %v3766
    %v3768 = vand.u32 %v3767, 4294901760
    %3769 = vmatmul.f32.gmra.mxu0 %v3768
    %v3770 = vpop.f32.mrf.mxu0
    %v3771 = vadd.f32 %v3703, %v3770
    %v3772 = vand.u32 %v3489, 4294901760
    %v3773 = vsub.f32 %v3489, %v3772
    %v3774 = vand.u32 %v3773, 4294901760
    %3775 = vmatmul.f32.gmra.mxu0 %v3774
    %v3776 = vpop.f32.mrf.mxu0
    %v3777 = vadd.f32 %v3708, %v3776
    %3778 = vdwg.mxu0
    %3779 = vmatpush.msra.mxu0 0.0
    %3780 = vmatpush.msra.mxu0 0.0
    %3781 = vmatpush.msra.mxu0 0.0
    %3782 = vmatpush.msra.mxu0 0.0
    %3783 = vmatpush.msra.mxu0 0.0
    %3784 = vmatpush.msra.mxu0 0.0
    %3785 = vmatpush.msra.mxu0 0.0
    %3786 = vmatpush.msra.mxu0 0.0
    %3787 = vmatpush.msra.mxu0 0.0
    %3788 = vmatpush.msra.mxu0 0.0
    %3789 = vmatpush.msra.mxu0 0.0
    %3790 = vmatpush.msra.mxu0 0.0
    %v3791 = vand.u32 %v3466, 4294901760
    %v3792 = vsub.f32 %v3466, %v3791
    %v3793 = vand.u32 %v3792, 4294901760
    %3794 = vmatpush.msra.mxu0 %v3793
    %v3795 = vand.u32 %v3465, 4294901760
    %v3796 = vsub.f32 %v3465, %v3795
    %v3797 = vand.u32 %v3796, 4294901760
    %3798 = vmatpush.msra.mxu0 %v3797
    %v3799 = vand.u32 %v3464, 4294901760
    %v3800 = vsub.f32 %v3464, %v3799
    %v3801 = vand.u32 %v3800, 4294901760
    %3802 = vmatpush.msra.mxu0 %v3801
    %v3803 = vand.u32 %v3463, 4294901760
    %v3804 = vsub.f32 %v3463, %v3803
    %v3805 = vand.u32 %v3804, 4294901760
    %3806 = vmatpush.msra.mxu0 %v3805
    %v3807 = vand.u32 %v3468, 4294901760
    %3808 = vmatmul.f32.gmra.mxu0 %v3807
    %v3809 = vpop.f32.mrf.mxu0
    %v3810 = vadd.f32 %v3735, %v3809
    %v3811 = vand.u32 %v3471, 4294901760
    %3812 = vmatmul.f32.gmra.mxu0 %v3811
    %v3813 = vpop.f32.mrf.mxu0
    %v3814 = vadd.f32 %v3741, %v3813
    %v3815 = vand.u32 %v3474, 4294901760
    %3816 = vmatmul.f32.gmra.mxu0 %v3815
    %v3817 = vpop.f32.mrf.mxu0
    %v3818 = vadd.f32 %v3747, %v3817
    %v3819 = vand.u32 %v3477, 4294901760
    %3820 = vmatmul.f32.gmra.mxu0 %v3819
    %v3821 = vpop.f32.mrf.mxu0
    %v3822 = vadd.f32 %v3753, %v3821
    %v3823 = vand.u32 %v3480, 4294901760
    %3824 = vmatmul.f32.gmra.mxu0 %v3823
    %v3825 = vpop.f32.mrf.mxu0
    %v3826 = vadd.f32 %v3759, %v3825
    %v3827 = vand.u32 %v3483, 4294901760
    %3828 = vmatmul.f32.gmra.mxu0 %v3827
    %v3829 = vpop.f32.mrf.mxu0
    %v3830 = vadd.f32 %v3765, %v3829
    %v3831 = vand.u32 %v3486, 4294901760
    %3832 = vmatmul.f32.gmra.mxu0 %v3831
    %v3833 = vpop.f32.mrf.mxu0
    %v3834 = vadd.f32 %v3771, %v3833
    %v3835 = vand.u32 %v3489, 4294901760
    %3836 = vmatmul.f32.gmra.mxu0 %v3835
    %v3837 = vpop.f32.mrf.mxu0
    %v3838 = vadd.f32 %v3777, %v3837
    %3839 = vdwg.mxu0
    %3840 = vmatpush.msra.mxu0 0.0
    %3841 = vmatpush.msra.mxu0 0.0
    %3842 = vmatpush.msra.mxu0 0.0
    %3843 = vmatpush.msra.mxu0 0.0
    %3844 = vmatpush.msra.mxu0 0.0
    %3845 = vmatpush.msra.mxu0 0.0
    %3846 = vmatpush.msra.mxu0 0.0
    %3847 = vmatpush.msra.mxu0 0.0
    %3848 = vmatpush.msra.mxu0 0.0
    %3849 = vmatpush.msra.mxu0 0.0
    %3850 = vmatpush.msra.mxu0 0.0
    %3851 = vmatpush.msra.mxu0 0.0
    %v3852 = vand.u32 %v3466, 4294901760
    %3853 = vmatpush.msra.mxu0 %v3852
    %v3854 = vand.u32 %v3465, 4294901760
    %3855 = vmatpush.msra.mxu0 %v3854
    %v3856 = vand.u32 %v3464, 4294901760
    %3857 = vmatpush.msra.mxu0 %v3856
    %v3858 = vand.u32 %v3463, 4294901760
    %3859 = vmatpush.msra.mxu0 %v3858
    %v3860 = vand.u32 %v3468, 4294901760
    %3861 = vmatmul.f32.gmra.mxu0 %v3860
    %v3862 = vpop.f32.mrf.mxu0
    %v3863 = vadd.f32 %v3810, %v3862
    %v3864 = vand.u32 %v3471, 4294901760
    %3865 = vmatmul.f32.gmra.mxu0 %v3864
    %v3866 = vpop.f32.mrf.mxu0
    %v3867 = vadd.f32 %v3814, %v3866
    %v3868 = vand.u32 %v3474, 4294901760
    %3869 = vmatmul.f32.gmra.mxu0 %v3868
    %v3870 = vpop.f32.mrf.mxu0
    %v3871 = vadd.f32 %v3818, %v3870
    %v3872 = vand.u32 %v3477, 4294901760
    %3873 = vmatmul.f32.gmra.mxu0 %v3872
    %v3874 = vpop.f32.mrf.mxu0
    %v3875 = vadd.f32 %v3822, %v3874
    %v3876 = vand.u32 %v3480, 4294901760
    %3877 = vmatmul.f32.gmra.mxu0 %v3876
    %v3878 = vpop.f32.mrf.mxu0
    %v3879 = vadd.f32 %v3826, %v3878
    %v3880 = vand.u32 %v3483, 4294901760
    %3881 = vmatmul.f32.gmra.mxu0 %v3880
    %v3882 = vpop.f32.mrf.mxu0
    %v3883 = vadd.f32 %v3830, %v3882
    %v3884 = vand.u32 %v3486, 4294901760
    %3885 = vmatmul.f32.gmra.mxu0 %v3884
    %v3886 = vpop.f32.mrf.mxu0
    %v3887 = vadd.f32 %v3834, %v3886
    %v3888 = vand.u32 %v3489, 4294901760
    %3889 = vmatmul.f32.gmra.mxu0 %v3888
    %v3890 = vpop.f32.mrf.mxu0
    %v3891 = vadd.f32 %v3838, %v3890
    %3892 = vdwg.mxu0
    %3893 = vmatpush.msra.mxu0 0.0
    %3894 = vmatpush.msra.mxu0 0.0
    %3895 = vmatpush.msra.mxu0 0.0
    %3896 = vmatpush.msra.mxu0 0.0
    %3897 = vmatpush.msra.mxu0 0.0
    %3898 = vmatpush.msra.mxu0 0.0
    %3899 = vmatpush.msra.mxu0 0.0
    %3900 = vmatpush.msra.mxu0 0.0
    %3901 = vmatpush.msra.mxu0 0.0
    %3902 = vmatpush.msra.mxu0 0.0
    %3903 = vmatpush.msra.mxu0 0.0
    %3904 = vmatpush.msra.mxu0 0.0
    %v3905 = vand.u32 %v3462, 4294901760
    %3906 = vmatpush.msra.mxu0 %v3905
    %v3907 = vand.u32 %v3461, 4294901760
    %3908 = vmatpush.msra.mxu0 %v3907
    %v3909 = vand.u32 %v3460, 4294901760
    %3910 = vmatpush.msra.mxu0 %v3909
    %v3911 = vand.u32 %v3459, 4294901760
    %3912 = vmatpush.msra.mxu0 %v3911
    %v3913 = vand.u32 %v2428, 4294901760
    %v3914 = vsub.f32 %v2428, %v3913
    %v3915 = vand.u32 %v3914, 4294901760
    %v3916 = vsub.f32 %v3914, %v3915
    %v3917 = vand.u32 %v3916, 4294901760
    %3918 = vmatmul.f32.gmra.mxu0 %v3917
    %v3919 = vpop.f32.mrf.mxu0
    %v3920 = vadd.f32 %v3863, %v3919
    %v3921 = vand.u32 %v2430, 4294901760
    %v3922 = vsub.f32 %v2430, %v3921
    %v3923 = vand.u32 %v3922, 4294901760
    %v3924 = vsub.f32 %v3922, %v3923
    %v3925 = vand.u32 %v3924, 4294901760
    %3926 = vmatmul.f32.gmra.mxu0 %v3925
    %v3927 = vpop.f32.mrf.mxu0
    %v3928 = vadd.f32 %v3867, %v3927
    %v3929 = vand.u32 %v2432, 4294901760
    %v3930 = vsub.f32 %v2432, %v3929
    %v3931 = vand.u32 %v3930, 4294901760
    %v3932 = vsub.f32 %v3930, %v3931
    %v3933 = vand.u32 %v3932, 4294901760
    %3934 = vmatmul.f32.gmra.mxu0 %v3933
    %v3935 = vpop.f32.mrf.mxu0
    %v3936 = vadd.f32 %v3871, %v3935
    %v3937 = vand.u32 %v2434, 4294901760
    %v3938 = vsub.f32 %v2434, %v3937
    %v3939 = vand.u32 %v3938, 4294901760
    %v3940 = vsub.f32 %v3938, %v3939
    %v3941 = vand.u32 %v3940, 4294901760
    %3942 = vmatmul.f32.gmra.mxu0 %v3941
    %v3943 = vpop.f32.mrf.mxu0
    %v3944 = vadd.f32 %v3875, %v3943
    %v3945 = vand.u32 %v2436, 4294901760
    %v3946 = vsub.f32 %v2436, %v3945
    %v3947 = vand.u32 %v3946, 4294901760
    %v3948 = vsub.f32 %v3946, %v3947
    %v3949 = vand.u32 %v3948, 4294901760
    %3950 = vmatmul.f32.gmra.mxu0 %v3949
    %v3951 = vpop.f32.mrf.mxu0
    %v3952 = vadd.f32 %v3879, %v3951
    %v3953 = vand.u32 %v2438, 4294901760
    %v3954 = vsub.f32 %v2438, %v3953
    %v3955 = vand.u32 %v3954, 4294901760
    %v3956 = vsub.f32 %v3954, %v3955
    %v3957 = vand.u32 %v3956, 4294901760
    %3958 = vmatmul.f32.gmra.mxu0 %v3957
    %v3959 = vpop.f32.mrf.mxu0
    %v3960 = vadd.f32 %v3883, %v3959
    %v3961 = vand.u32 %v2440, 4294901760
    %v3962 = vsub.f32 %v2440, %v3961
    %v3963 = vand.u32 %v3962, 4294901760
    %v3964 = vsub.f32 %v3962, %v3963
    %v3965 = vand.u32 %v3964, 4294901760
    %3966 = vmatmul.f32.gmra.mxu0 %v3965
    %v3967 = vpop.f32.mrf.mxu0
    %v3968 = vadd.f32 %v3887, %v3967
    %v3969 = vand.u32 %v2442, 4294901760
    %v3970 = vsub.f32 %v2442, %v3969
    %v3971 = vand.u32 %v3970, 4294901760
    %v3972 = vsub.f32 %v3970, %v3971
    %v3973 = vand.u32 %v3972, 4294901760
    %3974 = vmatmul.f32.gmra.mxu0 %v3973
    %v3975 = vpop.f32.mrf.mxu0
    %v3976 = vadd.f32 %v3891, %v3975
    %3977 = vdwg.mxu0
    %3978 = vmatpush.msra.mxu0 0.0
    %3979 = vmatpush.msra.mxu0 0.0
    %3980 = vmatpush.msra.mxu0 0.0
    %3981 = vmatpush.msra.mxu0 0.0
    %3982 = vmatpush.msra.mxu0 0.0
    %3983 = vmatpush.msra.mxu0 0.0
    %3984 = vmatpush.msra.mxu0 0.0
    %3985 = vmatpush.msra.mxu0 0.0
    %3986 = vmatpush.msra.mxu0 0.0
    %3987 = vmatpush.msra.mxu0 0.0
    %3988 = vmatpush.msra.mxu0 0.0
    %3989 = vmatpush.msra.mxu0 0.0
    %v3990 = vand.u32 %v3462, 4294901760
    %v3991 = vsub.f32 %v3462, %v3990
    %v3992 = vand.u32 %v3991, 4294901760
    %v3993 = vsub.f32 %v3991, %v3992
    %v3994 = vand.u32 %v3993, 4294901760
    %3995 = vmatpush.msra.mxu0 %v3994
    %v3996 = vand.u32 %v3461, 4294901760
    %v3997 = vsub.f32 %v3461, %v3996
    %v3998 = vand.u32 %v3997, 4294901760
    %v3999 = vsub.f32 %v3997, %v3998
    %v4000 = vand.u32 %v3999, 4294901760
    %4001 = vmatpush.msra.mxu0 %v4000
    %v4002 = vand.u32 %v3460, 4294901760
    %v4003 = vsub.f32 %v3460, %v4002
    %v4004 = vand.u32 %v4003, 4294901760
    %v4005 = vsub.f32 %v4003, %v4004
    %v4006 = vand.u32 %v4005, 4294901760
    %4007 = vmatpush.msra.mxu0 %v4006
    %v4008 = vand.u32 %v3459, 4294901760
    %v4009 = vsub.f32 %v3459, %v4008
    %v4010 = vand.u32 %v4009, 4294901760
    %v4011 = vsub.f32 %v4009, %v4010
    %v4012 = vand.u32 %v4011, 4294901760
    %4013 = vmatpush.msra.mxu0 %v4012
    %v4014 = vand.u32 %v2428, 4294901760
    %4015 = vmatmul.f32.gmra.mxu0 %v4014
    %v4016 = vpop.f32.mrf.mxu0
    %v4017 = vadd.f32 %v3920, %v4016
    %v4018 = vand.u32 %v2430, 4294901760
    %4019 = vmatmul.f32.gmra.mxu0 %v4018
    %v4020 = vpop.f32.mrf.mxu0
    %v4021 = vadd.f32 %v3928, %v4020
    %v4022 = vand.u32 %v2432, 4294901760
    %4023 = vmatmul.f32.gmra.mxu0 %v4022
    %v4024 = vpop.f32.mrf.mxu0
    %v4025 = vadd.f32 %v3936, %v4024
    %v4026 = vand.u32 %v2434, 4294901760
    %4027 = vmatmul.f32.gmra.mxu0 %v4026
    %v4028 = vpop.f32.mrf.mxu0
    %v4029 = vadd.f32 %v3944, %v4028
    %v4030 = vand.u32 %v2436, 4294901760
    %4031 = vmatmul.f32.gmra.mxu0 %v4030
    %v4032 = vpop.f32.mrf.mxu0
    %v4033 = vadd.f32 %v3952, %v4032
    %v4034 = vand.u32 %v2438, 4294901760
    %4035 = vmatmul.f32.gmra.mxu0 %v4034
    %v4036 = vpop.f32.mrf.mxu0
    %v4037 = vadd.f32 %v3960, %v4036
    %v4038 = vand.u32 %v2440, 4294901760
    %4039 = vmatmul.f32.gmra.mxu0 %v4038
    %v4040 = vpop.f32.mrf.mxu0
    %v4041 = vadd.f32 %v3968, %v4040
    %v4042 = vand.u32 %v2442, 4294901760
    %4043 = vmatmul.f32.gmra.mxu0 %v4042
    %v4044 = vpop.f32.mrf.mxu0
    %v4045 = vadd.f32 %v3976, %v4044
    %4046 = vdwg.mxu0
    %4047 = vmatpush.msra.mxu0 0.0
    %4048 = vmatpush.msra.mxu0 0.0
    %4049 = vmatpush.msra.mxu0 0.0
    %4050 = vmatpush.msra.mxu0 0.0
    %4051 = vmatpush.msra.mxu0 0.0
    %4052 = vmatpush.msra.mxu0 0.0
    %4053 = vmatpush.msra.mxu0 0.0
    %4054 = vmatpush.msra.mxu0 0.0
    %4055 = vmatpush.msra.mxu0 0.0
    %4056 = vmatpush.msra.mxu0 0.0
    %4057 = vmatpush.msra.mxu0 0.0
    %4058 = vmatpush.msra.mxu0 0.0
    %v4059 = vand.u32 %v3462, 4294901760
    %v4060 = vsub.f32 %v3462, %v4059
    %4061 = vmatpush.msra.mxu0 %v4060
    %v4062 = vand.u32 %v3461, 4294901760
    %v4063 = vsub.f32 %v3461, %v4062
    %4064 = vmatpush.msra.mxu0 %v4063
    %v4065 = vand.u32 %v3460, 4294901760
    %v4066 = vsub.f32 %v3460, %v4065
    %4067 = vmatpush.msra.mxu0 %v4066
    %v4068 = vand.u32 %v3459, 4294901760
    %v4069 = vsub.f32 %v3459, %v4068
    %4070 = vmatpush.msra.mxu0 %v4069
    %v4071 = vand.u32 %v2428, 4294901760
    %v4072 = vsub.f32 %v2428, %v4071
    %4073 = vmatmul.f32.gmra.mxu0 %v4072
    %v4074 = vpop.f32.mrf.mxu0
    %v4075 = vadd.f32 %v4017, %v4074
    %v4076 = vand.u32 %v2430, 4294901760
    %v4077 = vsub.f32 %v2430, %v4076
    %4078 = vmatmul.f32.gmra.mxu0 %v4077
    %v4079 = vpop.f32.mrf.mxu0
    %v4080 = vadd.f32 %v4021, %v4079
    %v4081 = vand.u32 %v2432, 4294901760
    %v4082 = vsub.f32 %v2432, %v4081
    %4083 = vmatmul.f32.gmra.mxu0 %v4082
    %v4084 = vpop.f32.mrf.mxu0
    %v4085 = vadd.f32 %v4025, %v4084
    %v4086 = vand.u32 %v2434, 4294901760
    %v4087 = vsub.f32 %v2434, %v4086
    %4088 = vmatmul.f32.gmra.mxu0 %v4087
    %v4089 = vpop.f32.mrf.mxu0
    %v4090 = vadd.f32 %v4029, %v4089
    %v4091 = vand.u32 %v2436, 4294901760
    %v4092 = vsub.f32 %v2436, %v4091
    %4093 = vmatmul.f32.gmra.mxu0 %v4092
    %v4094 = vpop.f32.mrf.mxu0
    %v4095 = vadd.f32 %v4033, %v4094
    %v4096 = vand.u32 %v2438, 4294901760
    %v4097 = vsub.f32 %v2438, %v4096
    %4098 = vmatmul.f32.gmra.mxu0 %v4097
    %v4099 = vpop.f32.mrf.mxu0
    %v4100 = vadd.f32 %v4037, %v4099
    %v4101 = vand.u32 %v2440, 4294901760
    %v4102 = vsub.f32 %v2440, %v4101
    %4103 = vmatmul.f32.gmra.mxu0 %v4102
    %v4104 = vpop.f32.mrf.mxu0
    %v4105 = vadd.f32 %v4041, %v4104
    %v4106 = vand.u32 %v2442, 4294901760
    %v4107 = vsub.f32 %v2442, %v4106
    %4108 = vmatmul.f32.gmra.mxu0 %v4107
    %v4109 = vpop.f32.mrf.mxu0
    %v4110 = vadd.f32 %v4045, %v4109
    %4111 = vdwg.mxu0
    %4112 = vmatpush.msra.mxu0 0.0
    %4113 = vmatpush.msra.mxu0 0.0
    %4114 = vmatpush.msra.mxu0 0.0
    %4115 = vmatpush.msra.mxu0 0.0
    %4116 = vmatpush.msra.mxu0 0.0
    %4117 = vmatpush.msra.mxu0 0.0
    %4118 = vmatpush.msra.mxu0 0.0
    %4119 = vmatpush.msra.mxu0 0.0
    %4120 = vmatpush.msra.mxu0 0.0
    %4121 = vmatpush.msra.mxu0 0.0
    %4122 = vmatpush.msra.mxu0 0.0
    %4123 = vmatpush.msra.mxu0 0.0
    %v4124 = vand.u32 %v3462, 4294901760
    %4125 = vmatpush.msra.mxu0 %v4124
    %v4126 = vand.u32 %v3461, 4294901760
    %4127 = vmatpush.msra.mxu0 %v4126
    %v4128 = vand.u32 %v3460, 4294901760
    %4129 = vmatpush.msra.mxu0 %v4128
    %v4130 = vand.u32 %v3459, 4294901760
    %4131 = vmatpush.msra.mxu0 %v4130
    %v4132 = vand.u32 %v2428, 4294901760
    %v4133 = vsub.f32 %v2428, %v4132
    %v4134 = vand.u32 %v4133, 4294901760
    %4135 = vmatmul.f32.gmra.mxu0 %v4134
    %v4136 = vpop.f32.mrf.mxu0
    %v4137 = vadd.f32 %v4075, %v4136
    %v4138 = vand.u32 %v2430, 4294901760
    %v4139 = vsub.f32 %v2430, %v4138
    %v4140 = vand.u32 %v4139, 4294901760
    %4141 = vmatmul.f32.gmra.mxu0 %v4140
    %v4142 = vpop.f32.mrf.mxu0
    %v4143 = vadd.f32 %v4080, %v4142
    %v4144 = vand.u32 %v2432, 4294901760
    %v4145 = vsub.f32 %v2432, %v4144
    %v4146 = vand.u32 %v4145, 4294901760
    %4147 = vmatmul.f32.gmra.mxu0 %v4146
    %v4148 = vpop.f32.mrf.mxu0
    %v4149 = vadd.f32 %v4085, %v4148
    %v4150 = vand.u32 %v2434, 4294901760
    %v4151 = vsub.f32 %v2434, %v4150
    %v4152 = vand.u32 %v4151, 4294901760
    %4153 = vmatmul.f32.gmra.mxu0 %v4152
    %v4154 = vpop.f32.mrf.mxu0
    %v4155 = vadd.f32 %v4090, %v4154
    %v4156 = vand.u32 %v2436, 4294901760
    %v4157 = vsub.f32 %v2436, %v4156
    %v4158 = vand.u32 %v4157, 4294901760
    %4159 = vmatmul.f32.gmra.mxu0 %v4158
    %v4160 = vpop.f32.mrf.mxu0
    %v4161 = vadd.f32 %v4095, %v4160
    %v4162 = vand.u32 %v2438, 4294901760
    %v4163 = vsub.f32 %v2438, %v4162
    %v4164 = vand.u32 %v4163, 4294901760
    %4165 = vmatmul.f32.gmra.mxu0 %v4164
    %v4166 = vpop.f32.mrf.mxu0
    %v4167 = vadd.f32 %v4100, %v4166
    %v4168 = vand.u32 %v2440, 4294901760
    %v4169 = vsub.f32 %v2440, %v4168
    %v4170 = vand.u32 %v4169, 4294901760
    %4171 = vmatmul.f32.gmra.mxu0 %v4170
    %v4172 = vpop.f32.mrf.mxu0
    %v4173 = vadd.f32 %v4105, %v4172
    %v4174 = vand.u32 %v2442, 4294901760
    %v4175 = vsub.f32 %v2442, %v4174
    %v4176 = vand.u32 %v4175, 4294901760
    %4177 = vmatmul.f32.gmra.mxu0 %v4176
    %v4178 = vpop.f32.mrf.mxu0
    %v4179 = vadd.f32 %v4110, %v4178
    %4180 = vdwg.mxu0
    %4181 = vmatpush.msra.mxu0 0.0
    %4182 = vmatpush.msra.mxu0 0.0
    %4183 = vmatpush.msra.mxu0 0.0
    %4184 = vmatpush.msra.mxu0 0.0
    %4185 = vmatpush.msra.mxu0 0.0
    %4186 = vmatpush.msra.mxu0 0.0
    %4187 = vmatpush.msra.mxu0 0.0
    %4188 = vmatpush.msra.mxu0 0.0
    %4189 = vmatpush.msra.mxu0 0.0
    %4190 = vmatpush.msra.mxu0 0.0
    %4191 = vmatpush.msra.mxu0 0.0
    %4192 = vmatpush.msra.mxu0 0.0
    %v4193 = vand.u32 %v3462, 4294901760
    %v4194 = vsub.f32 %v3462, %v4193
    %v4195 = vand.u32 %v4194, 4294901760
    %4196 = vmatpush.msra.mxu0 %v4195
    %v4197 = vand.u32 %v3461, 4294901760
    %v4198 = vsub.f32 %v3461, %v4197
    %v4199 = vand.u32 %v4198, 4294901760
    %4200 = vmatpush.msra.mxu0 %v4199
    %v4201 = vand.u32 %v3460, 4294901760
    %v4202 = vsub.f32 %v3460, %v4201
    %v4203 = vand.u32 %v4202, 4294901760
    %4204 = vmatpush.msra.mxu0 %v4203
    %v4205 = vand.u32 %v3459, 4294901760
    %v4206 = vsub.f32 %v3459, %v4205
    %v4207 = vand.u32 %v4206, 4294901760
    %4208 = vmatpush.msra.mxu0 %v4207
    %v4209 = vand.u32 %v2428, 4294901760
    %4210 = vmatmul.f32.gmra.mxu0 %v4209
    %v4211 = vpop.f32.mrf.mxu0
    %v4212 = vadd.f32 %v4137, %v4211
    %v4213 = vand.u32 %v2430, 4294901760
    %4214 = vmatmul.f32.gmra.mxu0 %v4213
    %v4215 = vpop.f32.mrf.mxu0
    %v4216 = vadd.f32 %v4143, %v4215
    %v4217 = vand.u32 %v2432, 4294901760
    %4218 = vmatmul.f32.gmra.mxu0 %v4217
    %v4219 = vpop.f32.mrf.mxu0
    %v4220 = vadd.f32 %v4149, %v4219
    %v4221 = vand.u32 %v2434, 4294901760
    %4222 = vmatmul.f32.gmra.mxu0 %v4221
    %v4223 = vpop.f32.mrf.mxu0
    %v4224 = vadd.f32 %v4155, %v4223
    %v4225 = vand.u32 %v2436, 4294901760
    %4226 = vmatmul.f32.gmra.mxu0 %v4225
    %v4227 = vpop.f32.mrf.mxu0
    %v4228 = vadd.f32 %v4161, %v4227
    %v4229 = vand.u32 %v2438, 4294901760
    %4230 = vmatmul.f32.gmra.mxu0 %v4229
    %v4231 = vpop.f32.mrf.mxu0
    %v4232 = vadd.f32 %v4167, %v4231
    %v4233 = vand.u32 %v2440, 4294901760
    %4234 = vmatmul.f32.gmra.mxu0 %v4233
    %v4235 = vpop.f32.mrf.mxu0
    %v4236 = vadd.f32 %v4173, %v4235
    %v4237 = vand.u32 %v2442, 4294901760
    %4238 = vmatmul.f32.gmra.mxu0 %v4237
    %v4239 = vpop.f32.mrf.mxu0
    %v4240 = vadd.f32 %v4179, %v4239
    %4241 = vdwg.mxu0
    %4242 = vmatpush.msra.mxu0 0.0
    %4243 = vmatpush.msra.mxu0 0.0
    %4244 = vmatpush.msra.mxu0 0.0
    %4245 = vmatpush.msra.mxu0 0.0
    %4246 = vmatpush.msra.mxu0 0.0
    %4247 = vmatpush.msra.mxu0 0.0
    %4248 = vmatpush.msra.mxu0 0.0
    %4249 = vmatpush.msra.mxu0 0.0
    %4250 = vmatpush.msra.mxu0 0.0
    %4251 = vmatpush.msra.mxu0 0.0
    %4252 = vmatpush.msra.mxu0 0.0
    %4253 = vmatpush.msra.mxu0 0.0
    %v4254 = vand.u32 %v3462, 4294901760
    %4255 = vmatpush.msra.mxu0 %v4254
    %v4256 = vand.u32 %v3461, 4294901760
    %4257 = vmatpush.msra.mxu0 %v4256
    %v4258 = vand.u32 %v3460, 4294901760
    %4259 = vmatpush.msra.mxu0 %v4258
    %v4260 = vand.u32 %v3459, 4294901760
    %4261 = vmatpush.msra.mxu0 %v4260
    %v4262 = vand.u32 %v2428, 4294901760
    %4263 = vmatmul.f32.gmra.mxu0 %v4262
    %v4264 = vpop.f32.mrf.mxu0
    %v4265 = vadd.f32 %v4212, %v4264
    %v4266 = vand.u32 %v2430, 4294901760
    %4267 = vmatmul.f32.gmra.mxu0 %v4266
    %v4268 = vpop.f32.mrf.mxu0
    %v4269 = vadd.f32 %v4216, %v4268
    %v4270 = vand.u32 %v2432, 4294901760
    %4271 = vmatmul.f32.gmra.mxu0 %v4270
    %v4272 = vpop.f32.mrf.mxu0
    %v4273 = vadd.f32 %v4220, %v4272
    %v4274 = vand.u32 %v2434, 4294901760
    %4275 = vmatmul.f32.gmra.mxu0 %v4274
    %v4276 = vpop.f32.mrf.mxu0
    %v4277 = vadd.f32 %v4224, %v4276
    %v4278 = vand.u32 %v2436, 4294901760
    %4279 = vmatmul.f32.gmra.mxu0 %v4278
    %v4280 = vpop.f32.mrf.mxu0
    %v4281 = vadd.f32 %v4228, %v4280
    %v4282 = vand.u32 %v2438, 4294901760
    %4283 = vmatmul.f32.gmra.mxu0 %v4282
    %v4284 = vpop.f32.mrf.mxu0
    %v4285 = vadd.f32 %v4232, %v4284
    %v4286 = vand.u32 %v2440, 4294901760
    %4287 = vmatmul.f32.gmra.mxu0 %v4286
    %v4288 = vpop.f32.mrf.mxu0
    %v4289 = vadd.f32 %v4236, %v4288
    %v4290 = vand.u32 %v2442, 4294901760
    %4291 = vmatmul.f32.gmra.mxu0 %v4290
    %v4292 = vpop.f32.mrf.mxu0
    %v4293 = vadd.f32 %v4240, %v4292
    %4294 = vdwg.mxu0
    %v4295 = vld [vmem:[%s10] sm:$0x1]
    %v4297 = vperm.slane %v4295, 0
    %v4299 = vadd.f32 %v4265, %v4297
    %v4300 = vadd.f32 %v4269, %v4297
    %v4301 = vadd.f32 %v4273, %v4297
    %v4302 = vadd.f32 %v4277, %v4297
    %v4303 = vadd.f32 %v4281, %v4297
    %v4304 = vadd.f32 %v4285, %v4297
    %v4305 = vadd.f32 %v4289, %v4297
    %v4306 = vadd.f32 %v4293, %v4297
    %vm4307 = vcmask 64512
    %4308 = vst.msk [vmem:[%s11] sm:$0xff] %vm4307, %v4299
    %4309 = vst.msk [vmem:[%s11 + $0x8] sm:$0xff] %vm4307, %v4300
    %4310 = vst.msk [vmem:[%s11 + $0x10] sm:$0xff] %vm4307, %v4301
    %4311 = vst.msk [vmem:[%s11 + $0x18] sm:$0xff] %vm4307, %v4302
    %4312 = vst.msk [vmem:[%s11 + $0x20] sm:$0xff] %vm4307, %v4303
    %4313 = vst.msk [vmem:[%s11 + $0x28] sm:$0xff] %vm4307, %v4304
    %4314 = vst.msk [vmem:[%s11 + $0x30] sm:$0xff] %vm4307, %v4305
    %4315 = vst.msk [vmem:[%s11 + $0x38] sm:$0xff] %vm4307, %v4306
    // Predicated region
    $region46: #{tpu_custom_call.1} parent=1 // pred_check
      _
    $region47: #{tpu_custom_call.1} parent=1 // pred_check_branch
      %4317 = sbr.rel (0) target = $region49
    $region48: #{tpu_custom_call.1} parent=1 // pred_region
      _
    $region49: #{tpu_custom_call.1} parent=1 // pred_fallthru
      _
    // Predicated region
    $region50: #{tpu_custom_call.1} parent=1 // pred_check
      _
    $region51: #{tpu_custom_call.1} parent=1 // pred_check_branch
      %4319 = sbr.rel (0) target = $region53
    $region52: #{tpu_custom_call.1} parent=1 // pred_region
      %4321 = vsyncadd [#allocation3], 0
      %s4323 = sshll.u32 [#allocation2], 4
      %s4324 = int_to_ptr.vmem [resolvable:$true] %s4323
      %s4325 = sshll.u32 %s12, 4
      %s4326 = int_to_ptr.hbm [resolvable:$true] %s4325
      %4328 = dma.vmem_to_hbm [thread:$0]  %s4324, 128, %s4326, [#allocation3]
    $region53: #{tpu_custom_call.1} parent=1 // pred_fallthru
      _
    // Predicated region
    $region54: #{tpu_custom_call.1} parent=1 // pred_check
      _
    $region55: #{tpu_custom_call.1} parent=1 // pred_check_branch
      %4330 = sbr.rel (0) target = $region57
    $region56: #{tpu_custom_call.1} parent=1 // pred_region
      %4332 = vsyncadd [#allocation5], 0
      %s4334 = sshll.u32 [#allocation4], 4
      %s4335 = int_to_ptr.vmem [resolvable:$true] %s4334
      %s4336 = sshll.u32 %s13, 4
      %s4337 = int_to_ptr.hbm [resolvable:$true] %s4336
      %4339 = dma.vmem_to_hbm [thread:$0]  %s4335, 128, %s4337, [#allocation5]
    $region57: #{tpu_custom_call.1} parent=1 // pred_fallthru
      _
    // Predicated region
    $region58: #{tpu_custom_call.1} parent=1 // pred_check
      _
    $region59: #{tpu_custom_call.1} parent=1 // pred_check_branch
      %4341 = sbr.rel (0) target = $region61
    $region60: #{tpu_custom_call.1} parent=1 // pred_region
      _
    $region61: #{tpu_custom_call.1} parent=1 // pred_fallthru
      _
    // Predicated region
    $region62: #{tpu_custom_call.1} parent=1 // pred_check
      _
    $region63: #{tpu_custom_call.1} parent=1 // pred_check_branch
      %4343 = sbr.rel (0) target = $region65
    $region64: #{tpu_custom_call.1} parent=1 // pred_region
      %4345 = dma.done [#allocation3], 128
    $region65: #{tpu_custom_call.1} parent=1 // pred_fallthru
      _
    // Predicated region
    $region66: #{tpu_custom_call.1} parent=1 // pred_check
      _
    $region67: #{tpu_custom_call.1} parent=1 // pred_check_branch
      %4347 = sbr.rel (0) target = $region69
    $region68: #{tpu_custom_call.1} parent=1 // pred_region
      %4349 = dma.done [#allocation5], 128
    $region69: #{tpu_custom_call.1} parent=1 // pred_fallthru
      _
    %4350 = vsyncpa [#allocation3], 1
    %4351 = vsyncpa [#allocation5], 1

</llo_original>
